<compile_context>
chip_gen: v7x
topology: tpu7x:2x2x1
jax: 0.10.0
libtpu: 0.0.40
codegen_flags: <defaults>
</compile_context>

<pallas_src>
import math
from functools import partial

import jax
import jax.numpy as jnp
import numpy as np
from jax import lax
from jax.experimental import pallas as pl
from jax.experimental.pallas import tpu as pltpu


# --------------------------------------------------------------------------
# Hardware-aware sizing helpers
# --------------------------------------------------------------------------
def _round_up(v, m):
    return (v + m - 1) // m * m


def _tpu_vmem_limit_bytes():
    """Explicit scoped-VMEM limit: generous but safe on every generation."""
    try:
        cap = int(pltpu.get_tpu_info().vmem_capacity_bytes)
    except Exception:
        cap = 64 << 20          # conservative fallback (v7x physical)
    return int(min(cap * 3 // 4, 96 << 20))


def _num_tensorcores():
    """Best-effort TensorCore count; 1 on v5e/v6e or if undetectable."""
    try:
        info = pltpu.get_tpu_info()
        for name in ("num_cores", "core_count", "num_tensorcores",
                     "tensorcores_per_chip"):
            v = getattr(info, name, None)
            if v:
                return int(v)
    except Exception:
        pass
    return 1


def _pick_batch_block(batch, c, hw, in_itemsize, out_itemsize,
                      budget_bytes, min_steps=1):
    """Largest divisor of `batch` whose *real* VMEM footprint fits the budget.

    Accounts for (8,128)-tile padding, input AND output blocks, x2 double
    buffering, and the in-kernel f32 temporaries.  Requires >= min_steps grid
    steps only when more than one TensorCore was detected (v7x); on 1-TC
    chips the largest fitting block is always taken.
    """
    c_pad = _round_up(max(c, 1), 8)
    hw_pad = _round_up(max(hw, 1), 128)

    def need(bb):
        tile = bb * c_pad * hw_pad
        io = 2 * tile * (in_itemsize + out_itemsize)   # double-buffered in+out
        temps = 2 * tile * 4                           # xg (+ upcast) f32 temps
        small = 16 * bb * hw_pad * 4                   # pools / conv temporaries
        return io + temps + small

    best = 1
    for bb in range(1, batch + 1):
        if batch % bb:
            continue
        if need(bb) > budget_bytes:
            continue
        if batch // bb < min(min_steps, batch):
            continue
        best = bb
    return best


# --------------------------------------------------------------------------
# Fused CBAM kernel: ChannelGate + ChannelPool + 7x7 conv (folded BN) + gate
# --------------------------------------------------------------------------
def _cbam_kernel(x_ref, w1_ref, b1_ref, w2t_ref, b2_ref, cm_ref, wb_ref,
                 o_ref, *, spatial, width):
    # x_ref: (Bb, C, HW)  w1: (Cr, C)  b1: (1, Cr)  w2t: (Cr, C)  b2: (1, C)
    # cm_ref: (7, HW) column-validity masks  wb_ref: (99,) SMEM conv w + BN b
    W = width
    Bb, C, HW = x_ref.shape
    x = x_ref[...]                                      # input dtype

    # ---- ChannelGate (only the max-pool branch reaches the gate; see header)
    mx = jnp.max(x, axis=-1).astype(jnp.float32)        # (Bb, C)  exact max
    # Tiny MLP on the VPU/XLU (broadcast-multiply + reduce); f32 accumulation.
    h = jnp.sum(w1_ref[...][None, :, :] * mx[:, None, :], axis=-1)     # (Bb,Cr)
    h = jnp.maximum(h + b1_ref[...], 0.0)
    att = jnp.sum(w2t_ref[...][None, :, :] * h[:, :, None], axis=1)    # (Bb,C)
    att = att + b2_ref[...]
    cscale = jax.nn.sigmoid(att)                        # (Bb, C) f32

    # Gating multiply in the input dtype (no full-tensor f32 copy for bf16).
    xg = x * cscale.astype(x.dtype)[:, :, None]         # (Bb, C, HW)

    if not spatial:
        o_ref[...] = xg.astype(o_ref.dtype)
        return

    # ---- fused ChannelPool (max/mean over channels), kept in registers.
    xg32 = xg.astype(jnp.float32)
    pmax = jnp.max(xg32, axis=1)                        # (Bb, HW)
    pmean = jnp.mean(xg32, axis=1)                      # (Bb, HW)

    # ---- 7x7 conv directly on the flattened HW axis.
    # Zero-pad the flattened pools once; each tap (dy,dx) is then a static
    # slice at offset dy*W+dx, with a precomputed column mask killing the
    # positions whose column index wraps across a row boundary.
    PADF = 3 * W + 3
    zer = jnp.zeros((Bb, PADF), jnp.float32)
    pmax_p = jnp.concatenate([zer, pmax, zer], axis=-1)     # (Bb, HW+2*PADF)
    pmean_p = jnp.concatenate([zer, pmean, zer], axis=-1)
    cm = cm_ref[...]                                        # (7, HW)

    acc0 = jnp.zeros((Bb, HW), jnp.float32)
    acc1 = jnp.zeros((Bb, HW), jnp.float32)
    for dy in range(7):
        for dx in range(7):
            off = (dy - 3) * W + (dx - 3)
            s0 = pmax_p[:, PADF + off:PADF + off + HW]
            s1 = pmean_p[:, PADF + off:PADF + off + HW]
            tap = wb_ref[dy * 7 + dx] * s0 + wb_ref[49 + dy * 7 + dx] * s1
            contrib = cm[dx:dx + 1, :] * tap
            if dy % 2 == 0:
                acc0 = acc0 + contrib
            else:
                acc1 = acc1 + contrib
    y = acc0 + acc1 + wb_ref[2 * 7 * 7]                 # folded BatchNorm bias
    sscale = jax.nn.sigmoid(y)                          # (Bb, HW) f32

    out = xg * sscale.astype(x.dtype)[:, None, :]       # broadcast over C
    o_ref[...] = out.astype(o_ref.dtype)


def cbam_forward(x, params, spatial=True, eps=1e-5):
    """x: (B, C, H, W). Single fused pallas_call over batch blocks."""
    B, C, H, W = x.shape
    HW = H * W
    w1, b1, w2, b2 = params["w1"], params["b1"], params["w2"], params["b2"]
    Cr = w1.shape[0]
    x_flat = x.reshape(B, C, HW)

    # Column-validity masks for the 7x7 taps on the flattened HW axis.
    col = np.arange(HW) % W
    cmask = jnp.asarray(np.stack(
        [((col + d >= 0) & (col + d < W)).astype(np.float32)
         for d in range(-3, 4)], axis=0))                          # (7, HW)

    # Fold eval-mode BatchNorm (running stats + affine) into the conv weights.
    # TODO(synk): training-mode BatchNorm (batch statistics) not implemented.
    s = (params["bn_gamma"] / jnp.sqrt(params["bn_var"] + eps)).astype(jnp.float32)
    w_eff = (params["conv_w"][0].astype(jnp.float32) * s).reshape(-1)   # (98,)
    b_eff = (params["bn_beta"] - params["bn_mean"] * s).reshape(-1).astype(jnp.float32)
    wb = jnp.concatenate([w_eff, b_eff])                               # (99,)

    vmem_limit = _tpu_vmem_limit_bytes()
    budget = min(vmem_limit // 2, 12 << 20)
    bb = _pick_batch_block(B, C, HW, x.dtype.itemsize, x.dtype.itemsize,
                           budget, min_steps=_num_tensorcores())

    kern = partial(_cbam_kernel, spatial=spatial, width=W)
    out = pl.pallas_call(
        kern,
        out_shape=jax.ShapeDtypeStruct((B, C, HW), x.dtype),
        grid_spec=pltpu.PrefetchScalarGridSpec(
            num_scalar_prefetch=0,
            grid=(B // bb,),
            in_specs=[
                pl.BlockSpec((bb, C, HW), lambda i: (i, 0, 0)),     # x
                pl.BlockSpec((Cr, C), lambda i: (0, 0)),            # w1
                pl.BlockSpec((1, Cr), lambda i: (0, 0)),            # b1
                pl.BlockSpec((Cr, C), lambda i: (0, 0)),            # w2^T
                pl.BlockSpec((1, C), lambda i: (0, 0)),             # b2
                pl.BlockSpec((7, HW), lambda i: (0, 0)),            # col masks
                pl.BlockSpec(memory_space=pltpu.MemorySpace.SMEM),  # conv+BN
            ],
            out_specs=pl.BlockSpec((bb, C, HW), lambda i: (i, 0, 0)),
        ),
        compiler_params=pltpu.CompilerParams(
            dimension_semantics=("parallel",),
            vmem_limit_bytes=vmem_limit),
    )(x_flat,
      w1.astype(jnp.float32),
      b1.reshape(1, Cr).astype(jnp.float32),
      w2.T.astype(jnp.float32),
      b2.reshape(1, C).astype(jnp.float32),
      cmask, wb)
    return out.reshape(B, C, H, W)


# --------------------------------------------------------------------------
# Pure-JAX reference mirroring the PyTorch forward semantics
# --------------------------------------------------------------------------
def cbam_ref(x, params, spatial=True, eps=1e-5):
    hi = lax.Precision.HIGHEST
    w1, b1, w2, b2 = params["w1"], params["b1"], params["w2"], params["b2"]
    # ChannelGate (only the 'max' branch reaches the gate; see header note).
    mx = jnp.max(x, axis=(2, 3))
    h = jnp.maximum(jnp.matmul(mx, w1.T, precision=hi) + b1, 0.0)
    att = jnp.matmul(h, w2.T, precision=hi) + b2
    xg = x * jax.nn.sigmoid(att)[:, :, None, None]
    if not spatial:
        return xg
    # SpatialGate.
    comp = jnp.concatenate([jnp.max(xg, axis=1, keepdims=True),
                            jnp.mean(xg, axis=1, keepdims=True)], axis=1)
    conv = lax.conv_general_dilated(
        comp, params["conv_w"], window_strides=(1, 1),
        padding=((3, 3), (3, 3)),
        dimension_numbers=("NCHW", "OIHW", "NCHW"), precision=hi)
    s = (params["bn_gamma"] / jnp.sqrt(params["bn_var"] + eps)).reshape(1, -1, 1, 1)
    y = (conv - params["bn_mean"].reshape(1, -1, 1, 1)) * s \
        + params["bn_beta"].reshape(1, -1, 1, 1)
    return xg * jax.nn.sigmoid(y)


if __name__ == "__main__":
    B, C, H, W = 2, 64, 16, 16
    reduction_ratio = 16
    Cr = C // reduction_ratio

    key = jax.random.PRNGKey(0)
    kx, k1, k2, k3, k4, k5 = jax.random.split(key, 6)

    x = jax.random.normal(kx, (B, C, H, W), dtype=jnp.float32)

    # PyTorch-style uniform(-1/sqrt(fan_in), 1/sqrt(fan_in)) Linear init.
    bound1 = 1.0 / np.sqrt(C)
    w1 = jax.random.uniform(k1, (Cr, C), jnp.float32, -bound1, bound1)
    b1 = jax.random.uniform(k2, (Cr,), jnp.float32, -bound1, bound1)
    bound2 = 1.0 / np.sqrt(Cr)
    w2 = jax.random.uniform(k3, (C, Cr), jnp.float32, -bound2, bound2)
    b2 = jax.random.uniform(k4, (C,), jnp.float32, -bound2, bound2)

    # SpatialGate: Conv2d(2, 1, 7, padding=3, bias=False) + BatchNorm2d(1).
    bound_c = 1.0 / np.sqrt(2 * 7 * 7)
    conv_w = jax.random.uniform(k5, (1, 2, 7, 7), jnp.float32, -bound_c, bound_c)
    bn_gamma = jnp.ones((1,), jnp.float32)
    bn_beta = jnp.zeros((1,), jnp.float32)
    bn_mean = jnp.zeros((1,), jnp.float32)
    bn_var = jnp.ones((1,), jnp.float32)

    params = dict(w1=w1, b1=b1, w2=w2, b2=b2, conv_w=conv_w,
                  bn_gamma=bn_gamma, bn_beta=bn_beta,
                  bn_mean=bn_mean, bn_var=bn_var)

    out = jax.block_until_ready(cbam_forward(x, params, spatial=True))
    ref = jax.block_until_ready(cbam_ref(x, params, spatial=True))

    assert out.shape == (B, C, H, W)
    np.testing.assert_allclose(np.asarray(out), np.asarray(ref),
                               rtol=2e-5, atol=2e-5)
    print("KERNEL_OK")
</pallas_src>

<mosaic_0001>
module attributes {stable_mosaic.version = 11 : i64} {
  func.func @_cbam_kernel(%arg0: i32, %arg1: memref<2x64x256xf32, #tpu.memory_space<vmem>>, %arg2: memref<4x64xf32, #tpu.memory_space<vmem>>, %arg3: memref<1x4xf32, #tpu.memory_space<vmem>>, %arg4: memref<4x64xf32, #tpu.memory_space<vmem>>, %arg5: memref<1x64xf32, #tpu.memory_space<vmem>>, %arg6: memref<7x256xf32, #tpu.memory_space<vmem>>, %arg7: memref<99xf32, #tpu.memory_space<smem>>, %arg8: memref<2x64x256xf32, #tpu.memory_space<vmem>>) attributes {dimension_semantics = [#tpu.dimension_semantics<parallel>], iteration_bounds = array<i64: 1>, scalar_prefetch = 0 : i64, scratch_operands = 0 : i64, tpu.core_type = #tpu.core_type<tc>, window_params = [{transform_indices = @transform_0, window_bounds = array<i64: 2, 64, 256>}, {pipeline_mode = #tpu.pipeline_mode<synchronous>, transform_indices = @transform_1, window_bounds = array<i64: 4, 64>}, {pipeline_mode = #tpu.pipeline_mode<synchronous>, transform_indices = @transform_2, window_bounds = array<i64: 1, 4>}, {pipeline_mode = #tpu.pipeline_mode<synchronous>, transform_indices = @transform_3, window_bounds = array<i64: 4, 64>}, {pipeline_mode = #tpu.pipeline_mode<synchronous>, transform_indices = @transform_4, window_bounds = array<i64: 1, 64>}, {pipeline_mode = #tpu.pipeline_mode<synchronous>, transform_indices = @transform_5, window_bounds = array<i64: 7, 256>}, {transform_indices = @transform_6, window_bounds = array<i64: 99>}, {transform_indices = @transform_7, window_bounds = array<i64: 2, 64, 256>}]} {
    %c0 = arith.constant 0 : index
    %c0_0 = arith.constant 0 : index
    %c0_1 = arith.constant 0 : index
    %0 = vector.load %arg1[%c0, %c0_0, %c0_1] : memref<2x64x256xf32, #tpu.memory_space<vmem>>, vector<2x64x256xf32>
    %cst = arith.constant dense<0xFF800000> : vector<2x64xf32>
    %1 = vector.multi_reduction <maximumf>, %0, %cst [2] : vector<2x64x256xf32> to vector<2x64xf32>
    %c0_2 = arith.constant 0 : index
    %c0_3 = arith.constant 0 : index
    %2 = vector.load %arg2[%c0_2, %c0_3] : memref<4x64xf32, #tpu.memory_space<vmem>>, vector<4x64xf32>
    %3 = vector.shape_cast %2 : vector<4x64xf32> to vector<1x4x64xf32>
    %4 = vector.shape_cast %1 : vector<2x64xf32> to vector<2x1x64xf32>
    %5 = vector.broadcast %3 : vector<1x4x64xf32> to vector<2x4x64xf32>
    %6 = vector.broadcast %4 : vector<2x1x64xf32> to vector<2x4x64xf32>
    %7 = arith.mulf %5, %6 : vector<2x4x64xf32>
    %cst_4 = arith.constant dense<0.000000e+00> : vector<2x4xf32>
    %8 = vector.multi_reduction <add>, %7, %cst_4 [2] : vector<2x4x64xf32> to vector<2x4xf32>
    %c0_5 = arith.constant 0 : index
    %c0_6 = arith.constant 0 : index
    %9 = vector.load %arg3[%c0_5, %c0_6] : memref<1x4xf32, #tpu.memory_space<vmem>>, vector<1x4xf32>
    %10 = vector.broadcast %9 : vector<1x4xf32> to vector<2x4xf32>
    %11 = arith.addf %8, %10 : vector<2x4xf32>
    %cst_7 = arith.constant 0.000000e+00 : f32
    %12 = vector.broadcast %cst_7 : f32 to vector<2x4xf32>
    %13 = arith.maximumf %11, %12 : vector<2x4xf32>
    %c0_8 = arith.constant 0 : index
    %c0_9 = arith.constant 0 : index
    %14 = vector.load %arg4[%c0_8, %c0_9] : memref<4x64xf32, #tpu.memory_space<vmem>>, vector<4x64xf32>
    %15 = vector.shape_cast %14 : vector<4x64xf32> to vector<1x4x64xf32>
    %16 = vector.shape_cast %13 : vector<2x4xf32> to vector<2x4x1xf32>
    %17 = vector.broadcast %15 : vector<1x4x64xf32> to vector<2x4x64xf32>
    %18 = vector.broadcast %16 : vector<2x4x1xf32> to vector<2x4x64xf32>
    %19 = arith.mulf %17, %18 : vector<2x4x64xf32>
    %cst_10 = arith.constant dense<0.000000e+00> : vector<2x64xf32>
    %20 = vector.multi_reduction <add>, %19, %cst_10 [1] : vector<2x4x64xf32> to vector<2x64xf32>
    %c0_11 = arith.constant 0 : index
    %c0_12 = arith.constant 0 : index
    %21 = vector.load %arg5[%c0_11, %c0_12] : memref<1x64xf32, #tpu.memory_space<vmem>>, vector<1x64xf32>
    %22 = vector.broadcast %21 : vector<1x64xf32> to vector<2x64xf32>
    %23 = arith.addf %20, %22 : vector<2x64xf32>
    %24 = arith.negf %23 : vector<2x64xf32>
    %25 = math.exp %24 : vector<2x64xf32>
    %cst_13 = arith.constant 1.000000e+00 : f32
    %26 = vector.broadcast %cst_13 : f32 to vector<2x64xf32>
    %27 = arith.addf %26, %25 : vector<2x64xf32>
    %28 = arith.divf %26, %27 : vector<2x64xf32>
    %29 = vector.shape_cast %28 : vector<2x64xf32> to vector<2x64x1xf32>
    %30 = vector.broadcast %29 : vector<2x64x1xf32> to vector<2x64x256xf32>
    %31 = arith.mulf %0, %30 : vector<2x64x256xf32>
    %cst_14 = arith.constant dense<0xFF800000> : vector<2x256xf32>
    %32 = vector.multi_reduction <maximumf>, %31, %cst_14 [1] : vector<2x64x256xf32> to vector<2x256xf32>
    %cst_15 = arith.constant dense<0.000000e+00> : vector<2x256xf32>
    %33 = vector.multi_reduction <add>, %31, %cst_15 [1] : vector<2x64x256xf32> to vector<2x256xf32>
    %cst_16 = arith.constant 6.400000e+01 : f32
    %34 = vector.broadcast %cst_16 : f32 to vector<2x256xf32>
    %35 = arith.divf %33, %34 : vector<2x256xf32>
    %cst_17 = arith.constant 0.000000e+00 : f32
    %36 = vector.broadcast %cst_17 : f32 to vector<2x51xf32>
    %37 = tpu.concatenate %36, %32, %36 in 1 : vector<2x51xf32>, vector<2x256xf32>, vector<2x51xf32> -> vector<2x358xf32>
    %38 = tpu.concatenate %36, %35, %36 in 1 : vector<2x51xf32>, vector<2x256xf32>, vector<2x51xf32> -> vector<2x358xf32>
    %c0_18 = arith.constant 0 : index
    %c0_19 = arith.constant 0 : index
    %39 = vector.load %arg6[%c0_18, %c0_19] : memref<7x256xf32, #tpu.memory_space<vmem>>, vector<7x256xf32>
    %cst_20 = arith.constant 0.000000e+00 : f32
    %40 = vector.broadcast %cst_20 : f32 to vector<2x256xf32>
    %cst_21 = arith.constant 0.000000e+00 : f32
    %41 = vector.broadcast %cst_21 : f32 to vector<2x256xf32>
    %42 = vector.extract_strided_slice %37 {offsets = [0, 0], sizes = [2, 256], strides = [1, 1]} : vector<2x358xf32> to vector<2x256xf32>
    %43 = vector.extract_strided_slice %38 {offsets = [0, 0], sizes = [2, 256], strides = [1, 1]} : vector<2x358xf32> to vector<2x256xf32>
    %c0_22 = arith.constant 0 : index
    %44 = memref.load %arg7[%c0_22] : memref<99xf32, #tpu.memory_space<smem>>
    %45 = vector.broadcast %44 : f32 to vector<2x256xf32>
    %46 = arith.mulf %45, %42 : vector<2x256xf32>
    %c49 = arith.constant 49 : index
    %47 = memref.load %arg7[%c49] : memref<99xf32, #tpu.memory_space<smem>>
    %48 = vector.broadcast %47 : f32 to vector<2x256xf32>
    %49 = arith.mulf %48, %43 : vector<2x256xf32>
    %50 = arith.addf %46, %49 : vector<2x256xf32>
    %51 = vector.extract_strided_slice %39 {offsets = [0, 0], sizes = [1, 256], strides = [1, 1]} : vector<7x256xf32> to vector<1x256xf32>
    %52 = vector.broadcast %51 : vector<1x256xf32> to vector<2x256xf32>
    %53 = arith.mulf %52, %50 : vector<2x256xf32>
    %54 = arith.addf %40, %53 : vector<2x256xf32>
    %55 = vector.extract_strided_slice %37 {offsets = [0, 1], sizes = [2, 256], strides = [1, 1]} : vector<2x358xf32> to vector<2x256xf32>
    %56 = vector.extract_strided_slice %38 {offsets = [0, 1], sizes = [2, 256], strides = [1, 1]} : vector<2x358xf32> to vector<2x256xf32>
    %c1 = arith.constant 1 : index
    %57 = memref.load %arg7[%c1] : memref<99xf32, #tpu.memory_space<smem>>
    %58 = vector.broadcast %57 : f32 to vector<2x256xf32>
    %59 = arith.mulf %58, %55 : vector<2x256xf32>
    %c50 = arith.constant 50 : index
    %60 = memref.load %arg7[%c50] : memref<99xf32, #tpu.memory_space<smem>>
    %61 = vector.broadcast %60 : f32 to vector<2x256xf32>
    %62 = arith.mulf %61, %56 : vector<2x256xf32>
    %63 = arith.addf %59, %62 : vector<2x256xf32>
    %64 = vector.extract_strided_slice %39 {offsets = [1, 0], sizes = [1, 256], strides = [1, 1]} : vector<7x256xf32> to vector<1x256xf32>
    %65 = vector.broadcast %64 : vector<1x256xf32> to vector<2x256xf32>
    %66 = arith.mulf %65, %63 : vector<2x256xf32>
    %67 = arith.addf %54, %66 : vector<2x256xf32>
    %68 = vector.extract_strided_slice %37 {offsets = [0, 2], sizes = [2, 256], strides = [1, 1]} : vector<2x358xf32> to vector<2x256xf32>
    %69 = vector.extract_strided_slice %38 {offsets = [0, 2], sizes = [2, 256], strides = [1, 1]} : vector<2x358xf32> to vector<2x256xf32>
    %c2 = arith.constant 2 : index
    %70 = memref.load %arg7[%c2] : memref<99xf32, #tpu.memory_space<smem>>
    %71 = vector.broadcast %70 : f32 to vector<2x256xf32>
    %72 = arith.mulf %71, %68 : vector<2x256xf32>
    %c51 = arith.constant 51 : index
    %73 = memref.load %arg7[%c51] : memref<99xf32, #tpu.memory_space<smem>>
    %74 = vector.broadcast %73 : f32 to vector<2x256xf32>
    %75 = arith.mulf %74, %69 : vector<2x256xf32>
    %76 = arith.addf %72, %75 : vector<2x256xf32>
    %77 = vector.extract_strided_slice %39 {offsets = [2, 0], sizes = [1, 256], strides = [1, 1]} : vector<7x256xf32> to vector<1x256xf32>
    %78 = vector.broadcast %77 : vector<1x256xf32> to vector<2x256xf32>
    %79 = arith.mulf %78, %76 : vector<2x256xf32>
    %80 = arith.addf %67, %79 : vector<2x256xf32>
    %81 = vector.extract_strided_slice %37 {offsets = [0, 3], sizes = [2, 256], strides = [1, 1]} : vector<2x358xf32> to vector<2x256xf32>
    %82 = vector.extract_strided_slice %38 {offsets = [0, 3], sizes = [2, 256], strides = [1, 1]} : vector<2x358xf32> to vector<2x256xf32>
    %c3 = arith.constant 3 : index
    %83 = memref.load %arg7[%c3] : memref<99xf32, #tpu.memory_space<smem>>
    %84 = vector.broadcast %83 : f32 to vector<2x256xf32>
    %85 = arith.mulf %84, %81 : vector<2x256xf32>
    %c52 = arith.constant 52 : index
    %86 = memref.load %arg7[%c52] : memref<99xf32, #tpu.memory_space<smem>>
    %87 = vector.broadcast %86 : f32 to vector<2x256xf32>
    %88 = arith.mulf %87, %82 : vector<2x256xf32>
    %89 = arith.addf %85, %88 : vector<2x256xf32>
    %90 = vector.extract_strided_slice %39 {offsets = [3, 0], sizes = [1, 256], strides = [1, 1]} : vector<7x256xf32> to vector<1x256xf32>
    %91 = vector.broadcast %90 : vector<1x256xf32> to vector<2x256xf32>
    %92 = arith.mulf %91, %89 : vector<2x256xf32>
    %93 = arith.addf %80, %92 : vector<2x256xf32>
    %94 = vector.extract_strided_slice %37 {offsets = [0, 4], sizes = [2, 256], strides = [1, 1]} : vector<2x358xf32> to vector<2x256xf32>
    %95 = vector.extract_strided_slice %38 {offsets = [0, 4], sizes = [2, 256], strides = [1, 1]} : vector<2x358xf32> to vector<2x256xf32>
    %c4 = arith.constant 4 : index
    %96 = memref.load %arg7[%c4] : memref<99xf32, #tpu.memory_space<smem>>
    %97 = vector.broadcast %96 : f32 to vector<2x256xf32>
    %98 = arith.mulf %97, %94 : vector<2x256xf32>
    %c53 = arith.constant 53 : index
    %99 = memref.load %arg7[%c53] : memref<99xf32, #tpu.memory_space<smem>>
    %100 = vector.broadcast %99 : f32 to vector<2x256xf32>
    %101 = arith.mulf %100, %95 : vector<2x256xf32>
    %102 = arith.addf %98, %101 : vector<2x256xf32>
    %103 = vector.extract_strided_slice %39 {offsets = [4, 0], sizes = [1, 256], strides = [1, 1]} : vector<7x256xf32> to vector<1x256xf32>
    %104 = vector.broadcast %103 : vector<1x256xf32> to vector<2x256xf32>
    %105 = arith.mulf %104, %102 : vector<2x256xf32>
    %106 = arith.addf %93, %105 : vector<2x256xf32>
    %107 = vector.extract_strided_slice %37 {offsets = [0, 5], sizes = [2, 256], strides = [1, 1]} : vector<2x358xf32> to vector<2x256xf32>
    %108 = vector.extract_strided_slice %38 {offsets = [0, 5], sizes = [2, 256], strides = [1, 1]} : vector<2x358xf32> to vector<2x256xf32>
    %c5 = arith.constant 5 : index
    %109 = memref.load %arg7[%c5] : memref<99xf32, #tpu.memory_space<smem>>
    %110 = vector.broadcast %109 : f32 to vector<2x256xf32>
    %111 = arith.mulf %110, %107 : vector<2x256xf32>
    %c54 = arith.constant 54 : index
    %112 = memref.load %arg7[%c54] : memref<99xf32, #tpu.memory_space<smem>>
    %113 = vector.broadcast %112 : f32 to vector<2x256xf32>
    %114 = arith.mulf %113, %108 : vector<2x256xf32>
    %115 = arith.addf %111, %114 : vector<2x256xf32>
    %116 = vector.extract_strided_slice %39 {offsets = [5, 0], sizes = [1, 256], strides = [1, 1]} : vector<7x256xf32> to vector<1x256xf32>
    %117 = vector.broadcast %116 : vector<1x256xf32> to vector<2x256xf32>
    %118 = arith.mulf %117, %115 : vector<2x256xf32>
    %119 = arith.addf %106, %118 : vector<2x256xf32>
    %120 = vector.extract_strided_slice %37 {offsets = [0, 6], sizes = [2, 256], strides = [1, 1]} : vector<2x358xf32> to vector<2x256xf32>
    %121 = vector.extract_strided_slice %38 {offsets = [0, 6], sizes = [2, 256], strides = [1, 1]} : vector<2x358xf32> to vector<2x256xf32>
    %c6 = arith.constant 6 : index
    %122 = memref.load %arg7[%c6] : memref<99xf32, #tpu.memory_space<smem>>
    %123 = vector.broadcast %122 : f32 to vector<2x256xf32>
    %124 = arith.mulf %123, %120 : vector<2x256xf32>
    %c55 = arith.constant 55 : index
    %125 = memref.load %arg7[%c55] : memref<99xf32, #tpu.memory_space<smem>>
    %126 = vector.broadcast %125 : f32 to vector<2x256xf32>
    %127 = arith.mulf %126, %121 : vector<2x256xf32>
    %128 = arith.addf %124, %127 : vector<2x256xf32>
    %129 = vector.extract_strided_slice %39 {offsets = [6, 0], sizes = [1, 256], strides = [1, 1]} : vector<7x256xf32> to vector<1x256xf32>
    %130 = vector.broadcast %129 : vector<1x256xf32> to vector<2x256xf32>
    %131 = arith.mulf %130, %128 : vector<2x256xf32>
    %132 = arith.addf %119, %131 : vector<2x256xf32>
    %133 = vector.extract_strided_slice %37 {offsets = [0, 16], sizes = [2, 256], strides = [1, 1]} : vector<2x358xf32> to vector<2x256xf32>
    %134 = vector.extract_strided_slice %38 {offsets = [0, 16], sizes = [2, 256], strides = [1, 1]} : vector<2x358xf32> to vector<2x256xf32>
    %c7 = arith.constant 7 : index
    %135 = memref.load %arg7[%c7] : memref<99xf32, #tpu.memory_space<smem>>
    %136 = vector.broadcast %135 : f32 to vector<2x256xf32>
    %137 = arith.mulf %136, %133 : vector<2x256xf32>
    %c56 = arith.constant 56 : index
    %138 = memref.load %arg7[%c56] : memref<99xf32, #tpu.memory_space<smem>>
    %139 = vector.broadcast %138 : f32 to vector<2x256xf32>
    %140 = arith.mulf %139, %134 : vector<2x256xf32>
    %141 = arith.addf %137, %140 : vector<2x256xf32>
    %142 = vector.extract_strided_slice %39 {offsets = [0, 0], sizes = [1, 256], strides = [1, 1]} : vector<7x256xf32> to vector<1x256xf32>
    %143 = vector.broadcast %142 : vector<1x256xf32> to vector<2x256xf32>
    %144 = arith.mulf %143, %141 : vector<2x256xf32>
    %145 = arith.addf %41, %144 : vector<2x256xf32>
    %146 = vector.extract_strided_slice %37 {offsets = [0, 17], sizes = [2, 256], strides = [1, 1]} : vector<2x358xf32> to vector<2x256xf32>
    %147 = vector.extract_strided_slice %38 {offsets = [0, 17], sizes = [2, 256], strides = [1, 1]} : vector<2x358xf32> to vector<2x256xf32>
    %c8 = arith.constant 8 : index
    %148 = memref.load %arg7[%c8] : memref<99xf32, #tpu.memory_space<smem>>
    %149 = vector.broadcast %148 : f32 to vector<2x256xf32>
    %150 = arith.mulf %149, %146 : vector<2x256xf32>
    %c57 = arith.constant 57 : index
    %151 = memref.load %arg7[%c57] : memref<99xf32, #tpu.memory_space<smem>>
    %152 = vector.broadcast %151 : f32 to vector<2x256xf32>
    %153 = arith.mulf %152, %147 : vector<2x256xf32>
    %154 = arith.addf %150, %153 : vector<2x256xf32>
    %155 = vector.extract_strided_slice %39 {offsets = [1, 0], sizes = [1, 256], strides = [1, 1]} : vector<7x256xf32> to vector<1x256xf32>
    %156 = vector.broadcast %155 : vector<1x256xf32> to vector<2x256xf32>
    %157 = arith.mulf %156, %154 : vector<2x256xf32>
    %158 = arith.addf %145, %157 : vector<2x256xf32>
    %159 = vector.extract_strided_slice %37 {offsets = [0, 18], sizes = [2, 256], strides = [1, 1]} : vector<2x358xf32> to vector<2x256xf32>
    %160 = vector.extract_strided_slice %38 {offsets = [0, 18], sizes = [2, 256], strides = [1, 1]} : vector<2x358xf32> to vector<2x256xf32>
    %c9 = arith.constant 9 : index
    %161 = memref.load %arg7[%c9] : memref<99xf32, #tpu.memory_space<smem>>
    %162 = vector.broadcast %161 : f32 to vector<2x256xf32>
    %163 = arith.mulf %162, %159 : vector<2x256xf32>
    %c58 = arith.constant 58 : index
    %164 = memref.load %arg7[%c58] : memref<99xf32, #tpu.memory_space<smem>>
    %165 = vector.broadcast %164 : f32 to vector<2x256xf32>
    %166 = arith.mulf %165, %160 : vector<2x256xf32>
    %167 = arith.addf %163, %166 : vector<2x256xf32>
    %168 = vector.extract_strided_slice %39 {offsets = [2, 0], sizes = [1, 256], strides = [1, 1]} : vector<7x256xf32> to vector<1x256xf32>
    %169 = vector.broadcast %168 : vector<1x256xf32> to vector<2x256xf32>
    %170 = arith.mulf %169, %167 : vector<2x256xf32>
    %171 = arith.addf %158, %170 : vector<2x256xf32>
    %172 = vector.extract_strided_slice %37 {offsets = [0, 19], sizes = [2, 256], strides = [1, 1]} : vector<2x358xf32> to vector<2x256xf32>
    %173 = vector.extract_strided_slice %38 {offsets = [0, 19], sizes = [2, 256], strides = [1, 1]} : vector<2x358xf32> to vector<2x256xf32>
    %c10 = arith.constant 10 : index
    %174 = memref.load %arg7[%c10] : memref<99xf32, #tpu.memory_space<smem>>
    %175 = vector.broadcast %174 : f32 to vector<2x256xf32>
    %176 = arith.mulf %175, %172 : vector<2x256xf32>
    %c59 = arith.constant 59 : index
    %177 = memref.load %arg7[%c59] : memref<99xf32, #tpu.memory_space<smem>>
    %178 = vector.broadcast %177 : f32 to vector<2x256xf32>
    %179 = arith.mulf %178, %173 : vector<2x256xf32>
    %180 = arith.addf %176, %179 : vector<2x256xf32>
    %181 = vector.extract_strided_slice %39 {offsets = [3, 0], sizes = [1, 256], strides = [1, 1]} : vector<7x256xf32> to vector<1x256xf32>
    %182 = vector.broadcast %181 : vector<1x256xf32> to vector<2x256xf32>
    %183 = arith.mulf %182, %180 : vector<2x256xf32>
    %184 = arith.addf %171, %183 : vector<2x256xf32>
    %185 = vector.extract_strided_slice %37 {offsets = [0, 20], sizes = [2, 256], strides = [1, 1]} : vector<2x358xf32> to vector<2x256xf32>
    %186 = vector.extract_strided_slice %38 {offsets = [0, 20], sizes = [2, 256], strides = [1, 1]} : vector<2x358xf32> to vector<2x256xf32>
    %c11 = arith.constant 11 : index
    %187 = memref.load %arg7[%c11] : memref<99xf32, #tpu.memory_space<smem>>
    %188 = vector.broadcast %187 : f32 to vector<2x256xf32>
    %189 = arith.mulf %188, %185 : vector<2x256xf32>
    %c60 = arith.constant 60 : index
    %190 = memref.load %arg7[%c60] : memref<99xf32, #tpu.memory_space<smem>>
    %191 = vector.broadcast %190 : f32 to vector<2x256xf32>
    %192 = arith.mulf %191, %186 : vector<2x256xf32>
    %193 = arith.addf %189, %192 : vector<2x256xf32>
    %194 = vector.extract_strided_slice %39 {offsets = [4, 0], sizes = [1, 256], strides = [1, 1]} : vector<7x256xf32> to vector<1x256xf32>
    %195 = vector.broadcast %194 : vector<1x256xf32> to vector<2x256xf32>
    %196 = arith.mulf %195, %193 : vector<2x256xf32>
    %197 = arith.addf %184, %196 : vector<2x256xf32>
    %198 = vector.extract_strided_slice %37 {offsets = [0, 21], sizes = [2, 256], strides = [1, 1]} : vector<2x358xf32> to vector<2x256xf32>
    %199 = vector.extract_strided_slice %38 {offsets = [0, 21], sizes = [2, 256], strides = [1, 1]} : vector<2x358xf32> to vector<2x256xf32>
    %c12 = arith.constant 12 : index
    %200 = memref.load %arg7[%c12] : memref<99xf32, #tpu.memory_space<smem>>
    %201 = vector.broadcast %200 : f32 to vector<2x256xf32>
    %202 = arith.mulf %201, %198 : vector<2x256xf32>
    %c61 = arith.constant 61 : index
    %203 = memref.load %arg7[%c61] : memref<99xf32, #tpu.memory_space<smem>>
    %204 = vector.broadcast %203 : f32 to vector<2x256xf32>
    %205 = arith.mulf %204, %199 : vector<2x256xf32>
    %206 = arith.addf %202, %205 : vector<2x256xf32>
    %207 = vector.extract_strided_slice %39 {offsets = [5, 0], sizes = [1, 256], strides = [1, 1]} : vector<7x256xf32> to vector<1x256xf32>
    %208 = vector.broadcast %207 : vector<1x256xf32> to vector<2x256xf32>
    %209 = arith.mulf %208, %206 : vector<2x256xf32>
    %210 = arith.addf %197, %209 : vector<2x256xf32>
    %211 = vector.extract_strided_slice %37 {offsets = [0, 22], sizes = [2, 256], strides = [1, 1]} : vector<2x358xf32> to vector<2x256xf32>
    %212 = vector.extract_strided_slice %38 {offsets = [0, 22], sizes = [2, 256], strides = [1, 1]} : vector<2x358xf32> to vector<2x256xf32>
    %c13 = arith.constant 13 : index
    %213 = memref.load %arg7[%c13] : memref<99xf32, #tpu.memory_space<smem>>
    %214 = vector.broadcast %213 : f32 to vector<2x256xf32>
    %215 = arith.mulf %214, %211 : vector<2x256xf32>
    %c62 = arith.constant 62 : index
    %216 = memref.load %arg7[%c62] : memref<99xf32, #tpu.memory_space<smem>>
    %217 = vector.broadcast %216 : f32 to vector<2x256xf32>
    %218 = arith.mulf %217, %212 : vector<2x256xf32>
    %219 = arith.addf %215, %218 : vector<2x256xf32>
    %220 = vector.extract_strided_slice %39 {offsets = [6, 0], sizes = [1, 256], strides = [1, 1]} : vector<7x256xf32> to vector<1x256xf32>
    %221 = vector.broadcast %220 : vector<1x256xf32> to vector<2x256xf32>
    %222 = arith.mulf %221, %219 : vector<2x256xf32>
    %223 = arith.addf %210, %222 : vector<2x256xf32>
    %224 = vector.extract_strided_slice %37 {offsets = [0, 32], sizes = [2, 256], strides = [1, 1]} : vector<2x358xf32> to vector<2x256xf32>
    %225 = vector.extract_strided_slice %38 {offsets = [0, 32], sizes = [2, 256], strides = [1, 1]} : vector<2x358xf32> to vector<2x256xf32>
    %c14 = arith.constant 14 : index
    %226 = memref.load %arg7[%c14] : memref<99xf32, #tpu.memory_space<smem>>
    %227 = vector.broadcast %226 : f32 to vector<2x256xf32>
    %228 = arith.mulf %227, %224 : vector<2x256xf32>
    %c63 = arith.constant 63 : index
    %229 = memref.load %arg7[%c63] : memref<99xf32, #tpu.memory_space<smem>>
    %230 = vector.broadcast %229 : f32 to vector<2x256xf32>
    %231 = arith.mulf %230, %225 : vector<2x256xf32>
    %232 = arith.addf %228, %231 : vector<2x256xf32>
    %233 = vector.extract_strided_slice %39 {offsets = [0, 0], sizes = [1, 256], strides = [1, 1]} : vector<7x256xf32> to vector<1x256xf32>
    %234 = vector.broadcast %233 : vector<1x256xf32> to vector<2x256xf32>
    %235 = arith.mulf %234, %232 : vector<2x256xf32>
    %236 = arith.addf %132, %235 : vector<2x256xf32>
    %237 = vector.extract_strided_slice %37 {offsets = [0, 33], sizes = [2, 256], strides = [1, 1]} : vector<2x358xf32> to vector<2x256xf32>
    %238 = vector.extract_strided_slice %38 {offsets = [0, 33], sizes = [2, 256], strides = [1, 1]} : vector<2x358xf32> to vector<2x256xf32>
    %c15 = arith.constant 15 : index
    %239 = memref.load %arg7[%c15] : memref<99xf32, #tpu.memory_space<smem>>
    %240 = vector.broadcast %239 : f32 to vector<2x256xf32>
    %241 = arith.mulf %240, %237 : vector<2x256xf32>
    %c64 = arith.constant 64 : index
    %242 = memref.load %arg7[%c64] : memref<99xf32, #tpu.memory_space<smem>>
    %243 = vector.broadcast %242 : f32 to vector<2x256xf32>
    %244 = arith.mulf %243, %238 : vector<2x256xf32>
    %245 = arith.addf %241, %244 : vector<2x256xf32>
    %246 = vector.extract_strided_slice %39 {offsets = [1, 0], sizes = [1, 256], strides = [1, 1]} : vector<7x256xf32> to vector<1x256xf32>
    %247 = vector.broadcast %246 : vector<1x256xf32> to vector<2x256xf32>
    %248 = arith.mulf %247, %245 : vector<2x256xf32>
    %249 = arith.addf %236, %248 : vector<2x256xf32>
    %250 = vector.extract_strided_slice %37 {offsets = [0, 34], sizes = [2, 256], strides = [1, 1]} : vector<2x358xf32> to vector<2x256xf32>
    %251 = vector.extract_strided_slice %38 {offsets = [0, 34], sizes = [2, 256], strides = [1, 1]} : vector<2x358xf32> to vector<2x256xf32>
    %c16 = arith.constant 16 : index
    %252 = memref.load %arg7[%c16] : memref<99xf32, #tpu.memory_space<smem>>
    %253 = vector.broadcast %252 : f32 to vector<2x256xf32>
    %254 = arith.mulf %253, %250 : vector<2x256xf32>
    %c65 = arith.constant 65 : index
    %255 = memref.load %arg7[%c65] : memref<99xf32, #tpu.memory_space<smem>>
    %256 = vector.broadcast %255 : f32 to vector<2x256xf32>
    %257 = arith.mulf %256, %251 : vector<2x256xf32>
    %258 = arith.addf %254, %257 : vector<2x256xf32>
    %259 = vector.extract_strided_slice %39 {offsets = [2, 0], sizes = [1, 256], strides = [1, 1]} : vector<7x256xf32> to vector<1x256xf32>
    %260 = vector.broadcast %259 : vector<1x256xf32> to vector<2x256xf32>
    %261 = arith.mulf %260, %258 : vector<2x256xf32>
    %262 = arith.addf %249, %261 : vector<2x256xf32>
    %263 = vector.extract_strided_slice %37 {offsets = [0, 35], sizes = [2, 256], strides = [1, 1]} : vector<2x358xf32> to vector<2x256xf32>
    %264 = vector.extract_strided_slice %38 {offsets = [0, 35], sizes = [2, 256], strides = [1, 1]} : vector<2x358xf32> to vector<2x256xf32>
    %c17 = arith.constant 17 : index
    %265 = memref.load %arg7[%c17] : memref<99xf32, #tpu.memory_space<smem>>
    %266 = vector.broadcast %265 : f32 to vector<2x256xf32>
    %267 = arith.mulf %266, %263 : vector<2x256xf32>
    %c66 = arith.constant 66 : index
    %268 = memref.load %arg7[%c66] : memref<99xf32, #tpu.memory_space<smem>>
    %269 = vector.broadcast %268 : f32 to vector<2x256xf32>
    %270 = arith.mulf %269, %264 : vector<2x256xf32>
    %271 = arith.addf %267, %270 : vector<2x256xf32>
    %272 = vector.extract_strided_slice %39 {offsets = [3, 0], sizes = [1, 256], strides = [1, 1]} : vector<7x256xf32> to vector<1x256xf32>
    %273 = vector.broadcast %272 : vector<1x256xf32> to vector<2x256xf32>
    %274 = arith.mulf %273, %271 : vector<2x256xf32>
    %275 = arith.addf %262, %274 : vector<2x256xf32>
    %276 = vector.extract_strided_slice %37 {offsets = [0, 36], sizes = [2, 256], strides = [1, 1]} : vector<2x358xf32> to vector<2x256xf32>
    %277 = vector.extract_strided_slice %38 {offsets = [0, 36], sizes = [2, 256], strides = [1, 1]} : vector<2x358xf32> to vector<2x256xf32>
    %c18 = arith.constant 18 : index
    %278 = memref.load %arg7[%c18] : memref<99xf32, #tpu.memory_space<smem>>
    %279 = vector.broadcast %278 : f32 to vector<2x256xf32>
    %280 = arith.mulf %279, %276 : vector<2x256xf32>
    %c67 = arith.constant 67 : index
    %281 = memref.load %arg7[%c67] : memref<99xf32, #tpu.memory_space<smem>>
    %282 = vector.broadcast %281 : f32 to vector<2x256xf32>
    %283 = arith.mulf %282, %277 : vector<2x256xf32>
    %284 = arith.addf %280, %283 : vector<2x256xf32>
    %285 = vector.extract_strided_slice %39 {offsets = [4, 0], sizes = [1, 256], strides = [1, 1]} : vector<7x256xf32> to vector<1x256xf32>
    %286 = vector.broadcast %285 : vector<1x256xf32> to vector<2x256xf32>
    %287 = arith.mulf %286, %284 : vector<2x256xf32>
    %288 = arith.addf %275, %287 : vector<2x256xf32>
    %289 = vector.extract_strided_slice %37 {offsets = [0, 37], sizes = [2, 256], strides = [1, 1]} : vector<2x358xf32> to vector<2x256xf32>
    %290 = vector.extract_strided_slice %38 {offsets = [0, 37], sizes = [2, 256], strides = [1, 1]} : vector<2x358xf32> to vector<2x256xf32>
    %c19 = arith.constant 19 : index
    %291 = memref.load %arg7[%c19] : memref<99xf32, #tpu.memory_space<smem>>
    %292 = vector.broadcast %291 : f32 to vector<2x256xf32>
    %293 = arith.mulf %292, %289 : vector<2x256xf32>
    %c68 = arith.constant 68 : index
    %294 = memref.load %arg7[%c68] : memref<99xf32, #tpu.memory_space<smem>>
    %295 = vector.broadcast %294 : f32 to vector<2x256xf32>
    %296 = arith.mulf %295, %290 : vector<2x256xf32>
    %297 = arith.addf %293, %296 : vector<2x256xf32>
    %298 = vector.extract_strided_slice %39 {offsets = [5, 0], sizes = [1, 256], strides = [1, 1]} : vector<7x256xf32> to vector<1x256xf32>
    %299 = vector.broadcast %298 : vector<1x256xf32> to vector<2x256xf32>
    %300 = arith.mulf %299, %297 : vector<2x256xf32>
    %301 = arith.addf %288, %300 : vector<2x256xf32>
    %302 = vector.extract_strided_slice %37 {offsets = [0, 38], sizes = [2, 256], strides = [1, 1]} : vector<2x358xf32> to vector<2x256xf32>
    %303 = vector.extract_strided_slice %38 {offsets = [0, 38], sizes = [2, 256], strides = [1, 1]} : vector<2x358xf32> to vector<2x256xf32>
    %c20 = arith.constant 20 : index
    %304 = memref.load %arg7[%c20] : memref<99xf32, #tpu.memory_space<smem>>
    %305 = vector.broadcast %304 : f32 to vector<2x256xf32>
    %306 = arith.mulf %305, %302 : vector<2x256xf32>
    %c69 = arith.constant 69 : index
    %307 = memref.load %arg7[%c69] : memref<99xf32, #tpu.memory_space<smem>>
    %308 = vector.broadcast %307 : f32 to vector<2x256xf32>
    %309 = arith.mulf %308, %303 : vector<2x256xf32>
    %310 = arith.addf %306, %309 : vector<2x256xf32>
    %311 = vector.extract_strided_slice %39 {offsets = [6, 0], sizes = [1, 256], strides = [1, 1]} : vector<7x256xf32> to vector<1x256xf32>
    %312 = vector.broadcast %311 : vector<1x256xf32> to vector<2x256xf32>
    %313 = arith.mulf %312, %310 : vector<2x256xf32>
    %314 = arith.addf %301, %313 : vector<2x256xf32>
    %315 = vector.extract_strided_slice %37 {offsets = [0, 48], sizes = [2, 256], strides = [1, 1]} : vector<2x358xf32> to vector<2x256xf32>
    %316 = vector.extract_strided_slice %38 {offsets = [0, 48], sizes = [2, 256], strides = [1, 1]} : vector<2x358xf32> to vector<2x256xf32>
    %c21 = arith.constant 21 : index
    %317 = memref.load %arg7[%c21] : memref<99xf32, #tpu.memory_space<smem>>
    %318 = vector.broadcast %317 : f32 to vector<2x256xf32>
    %319 = arith.mulf %318, %315 : vector<2x256xf32>
    %c70 = arith.constant 70 : index
    %320 = memref.load %arg7[%c70] : memref<99xf32, #tpu.memory_space<smem>>
    %321 = vector.broadcast %320 : f32 to vector<2x256xf32>
    %322 = arith.mulf %321, %316 : vector<2x256xf32>
    %323 = arith.addf %319, %322 : vector<2x256xf32>
    %324 = vector.extract_strided_slice %39 {offsets = [0, 0], sizes = [1, 256], strides = [1, 1]} : vector<7x256xf32> to vector<1x256xf32>
    %325 = vector.broadcast %324 : vector<1x256xf32> to vector<2x256xf32>
    %326 = arith.mulf %325, %323 : vector<2x256xf32>
    %327 = arith.addf %223, %326 : vector<2x256xf32>
    %328 = vector.extract_strided_slice %37 {offsets = [0, 49], sizes = [2, 256], strides = [1, 1]} : vector<2x358xf32> to vector<2x256xf32>
    %329 = vector.extract_strided_slice %38 {offsets = [0, 49], sizes = [2, 256], strides = [1, 1]} : vector<2x358xf32> to vector<2x256xf32>
    %c22 = arith.constant 22 : index
    %330 = memref.load %arg7[%c22] : memref<99xf32, #tpu.memory_space<smem>>
    %331 = vector.broadcast %330 : f32 to vector<2x256xf32>
    %332 = arith.mulf %331, %328 : vector<2x256xf32>
    %c71 = arith.constant 71 : index
    %333 = memref.load %arg7[%c71] : memref<99xf32, #tpu.memory_space<smem>>
    %334 = vector.broadcast %333 : f32 to vector<2x256xf32>
    %335 = arith.mulf %334, %329 : vector<2x256xf32>
    %336 = arith.addf %332, %335 : vector<2x256xf32>
    %337 = vector.extract_strided_slice %39 {offsets = [1, 0], sizes = [1, 256], strides = [1, 1]} : vector<7x256xf32> to vector<1x256xf32>
    %338 = vector.broadcast %337 : vector<1x256xf32> to vector<2x256xf32>
    %339 = arith.mulf %338, %336 : vector<2x256xf32>
    %340 = arith.addf %327, %339 : vector<2x256xf32>
    %341 = vector.extract_strided_slice %37 {offsets = [0, 50], sizes = [2, 256], strides = [1, 1]} : vector<2x358xf32> to vector<2x256xf32>
    %342 = vector.extract_strided_slice %38 {offsets = [0, 50], sizes = [2, 256], strides = [1, 1]} : vector<2x358xf32> to vector<2x256xf32>
    %c23 = arith.constant 23 : index
    %343 = memref.load %arg7[%c23] : memref<99xf32, #tpu.memory_space<smem>>
    %344 = vector.broadcast %343 : f32 to vector<2x256xf32>
    %345 = arith.mulf %344, %341 : vector<2x256xf32>
    %c72 = arith.constant 72 : index
    %346 = memref.load %arg7[%c72] : memref<99xf32, #tpu.memory_space<smem>>
    %347 = vector.broadcast %346 : f32 to vector<2x256xf32>
    %348 = arith.mulf %347, %342 : vector<2x256xf32>
    %349 = arith.addf %345, %348 : vector<2x256xf32>
    %350 = vector.extract_strided_slice %39 {offsets = [2, 0], sizes = [1, 256], strides = [1, 1]} : vector<7x256xf32> to vector<1x256xf32>
    %351 = vector.broadcast %350 : vector<1x256xf32> to vector<2x256xf32>
    %352 = arith.mulf %351, %349 : vector<2x256xf32>
    %353 = arith.addf %340, %352 : vector<2x256xf32>
    %354 = vector.extract_strided_slice %37 {offsets = [0, 51], sizes = [2, 256], strides = [1, 1]} : vector<2x358xf32> to vector<2x256xf32>
    %355 = vector.extract_strided_slice %38 {offsets = [0, 51], sizes = [2, 256], strides = [1, 1]} : vector<2x358xf32> to vector<2x256xf32>
    %c24 = arith.constant 24 : index
    %356 = memref.load %arg7[%c24] : memref<99xf32, #tpu.memory_space<smem>>
    %357 = vector.broadcast %356 : f32 to vector<2x256xf32>
    %358 = arith.mulf %357, %354 : vector<2x256xf32>
    %c73 = arith.constant 73 : index
    %359 = memref.load %arg7[%c73] : memref<99xf32, #tpu.memory_space<smem>>
    %360 = vector.broadcast %359 : f32 to vector<2x256xf32>
    %361 = arith.mulf %360, %355 : vector<2x256xf32>
    %362 = arith.addf %358, %361 : vector<2x256xf32>
    %363 = vector.extract_strided_slice %39 {offsets = [3, 0], sizes = [1, 256], strides = [1, 1]} : vector<7x256xf32> to vector<1x256xf32>
    %364 = vector.broadcast %363 : vector<1x256xf32> to vector<2x256xf32>
    %365 = arith.mulf %364, %362 : vector<2x256xf32>
    %366 = arith.addf %353, %365 : vector<2x256xf32>
    %367 = vector.extract_strided_slice %37 {offsets = [0, 52], sizes = [2, 256], strides = [1, 1]} : vector<2x358xf32> to vector<2x256xf32>
    %368 = vector.extract_strided_slice %38 {offsets = [0, 52], sizes = [2, 256], strides = [1, 1]} : vector<2x358xf32> to vector<2x256xf32>
    %c25 = arith.constant 25 : index
    %369 = memref.load %arg7[%c25] : memref<99xf32, #tpu.memory_space<smem>>
    %370 = vector.broadcast %369 : f32 to vector<2x256xf32>
    %371 = arith.mulf %370, %367 : vector<2x256xf32>
    %c74 = arith.constant 74 : index
    %372 = memref.load %arg7[%c74] : memref<99xf32, #tpu.memory_space<smem>>
    %373 = vector.broadcast %372 : f32 to vector<2x256xf32>
    %374 = arith.mulf %373, %368 : vector<2x256xf32>
    %375 = arith.addf %371, %374 : vector<2x256xf32>
    %376 = vector.extract_strided_slice %39 {offsets = [4, 0], sizes = [1, 256], strides = [1, 1]} : vector<7x256xf32> to vector<1x256xf32>
    %377 = vector.broadcast %376 : vector<1x256xf32> to vector<2x256xf32>
    %378 = arith.mulf %377, %375 : vector<2x256xf32>
    %379 = arith.addf %366, %378 : vector<2x256xf32>
    %380 = vector.extract_strided_slice %37 {offsets = [0, 53], sizes = [2, 256], strides = [1, 1]} : vector<2x358xf32> to vector<2x256xf32>
    %381 = vector.extract_strided_slice %38 {offsets = [0, 53], sizes = [2, 256], strides = [1, 1]} : vector<2x358xf32> to vector<2x256xf32>
    %c26 = arith.constant 26 : index
    %382 = memref.load %arg7[%c26] : memref<99xf32, #tpu.memory_space<smem>>
    %383 = vector.broadcast %382 : f32 to vector<2x256xf32>
    %384 = arith.mulf %383, %380 : vector<2x256xf32>
    %c75 = arith.constant 75 : index
    %385 = memref.load %arg7[%c75] : memref<99xf32, #tpu.memory_space<smem>>
    %386 = vector.broadcast %385 : f32 to vector<2x256xf32>
    %387 = arith.mulf %386, %381 : vector<2x256xf32>
    %388 = arith.addf %384, %387 : vector<2x256xf32>
    %389 = vector.extract_strided_slice %39 {offsets = [5, 0], sizes = [1, 256], strides = [1, 1]} : vector<7x256xf32> to vector<1x256xf32>
    %390 = vector.broadcast %389 : vector<1x256xf32> to vector<2x256xf32>
    %391 = arith.mulf %390, %388 : vector<2x256xf32>
    %392 = arith.addf %379, %391 : vector<2x256xf32>
    %393 = vector.extract_strided_slice %37 {offsets = [0, 54], sizes = [2, 256], strides = [1, 1]} : vector<2x358xf32> to vector<2x256xf32>
    %394 = vector.extract_strided_slice %38 {offsets = [0, 54], sizes = [2, 256], strides = [1, 1]} : vector<2x358xf32> to vector<2x256xf32>
    %c27 = arith.constant 27 : index
    %395 = memref.load %arg7[%c27] : memref<99xf32, #tpu.memory_space<smem>>
    %396 = vector.broadcast %395 : f32 to vector<2x256xf32>
    %397 = arith.mulf %396, %393 : vector<2x256xf32>
    %c76 = arith.constant 76 : index
    %398 = memref.load %arg7[%c76] : memref<99xf32, #tpu.memory_space<smem>>
    %399 = vector.broadcast %398 : f32 to vector<2x256xf32>
    %400 = arith.mulf %399, %394 : vector<2x256xf32>
    %401 = arith.addf %397, %400 : vector<2x256xf32>
    %402 = vector.extract_strided_slice %39 {offsets = [6, 0], sizes = [1, 256], strides = [1, 1]} : vector<7x256xf32> to vector<1x256xf32>
    %403 = vector.broadcast %402 : vector<1x256xf32> to vector<2x256xf32>
    %404 = arith.mulf %403, %401 : vector<2x256xf32>
    %405 = arith.addf %392, %404 : vector<2x256xf32>
    %406 = vector.extract_strided_slice %37 {offsets = [0, 64], sizes = [2, 256], strides = [1, 1]} : vector<2x358xf32> to vector<2x256xf32>
    %407 = vector.extract_strided_slice %38 {offsets = [0, 64], sizes = [2, 256], strides = [1, 1]} : vector<2x358xf32> to vector<2x256xf32>
    %c28 = arith.constant 28 : index
    %408 = memref.load %arg7[%c28] : memref<99xf32, #tpu.memory_space<smem>>
    %409 = vector.broadcast %408 : f32 to vector<2x256xf32>
    %410 = arith.mulf %409, %406 : vector<2x256xf32>
    %c77 = arith.constant 77 : index
    %411 = memref.load %arg7[%c77] : memref<99xf32, #tpu.memory_space<smem>>
    %412 = vector.broadcast %411 : f32 to vector<2x256xf32>
    %413 = arith.mulf %412, %407 : vector<2x256xf32>
    %414 = arith.addf %410, %413 : vector<2x256xf32>
    %415 = vector.extract_strided_slice %39 {offsets = [0, 0], sizes = [1, 256], strides = [1, 1]} : vector<7x256xf32> to vector<1x256xf32>
    %416 = vector.broadcast %415 : vector<1x256xf32> to vector<2x256xf32>
    %417 = arith.mulf %416, %414 : vector<2x256xf32>
    %418 = arith.addf %314, %417 : vector<2x256xf32>
    %419 = vector.extract_strided_slice %37 {offsets = [0, 65], sizes = [2, 256], strides = [1, 1]} : vector<2x358xf32> to vector<2x256xf32>
    %420 = vector.extract_strided_slice %38 {offsets = [0, 65], sizes = [2, 256], strides = [1, 1]} : vector<2x358xf32> to vector<2x256xf32>
    %c29 = arith.constant 29 : index
    %421 = memref.load %arg7[%c29] : memref<99xf32, #tpu.memory_space<smem>>
    %422 = vector.broadcast %421 : f32 to vector<2x256xf32>
    %423 = arith.mulf %422, %419 : vector<2x256xf32>
    %c78 = arith.constant 78 : index
    %424 = memref.load %arg7[%c78] : memref<99xf32, #tpu.memory_space<smem>>
    %425 = vector.broadcast %424 : f32 to vector<2x256xf32>
    %426 = arith.mulf %425, %420 : vector<2x256xf32>
    %427 = arith.addf %423, %426 : vector<2x256xf32>
    %428 = vector.extract_strided_slice %39 {offsets = [1, 0], sizes = [1, 256], strides = [1, 1]} : vector<7x256xf32> to vector<1x256xf32>
    %429 = vector.broadcast %428 : vector<1x256xf32> to vector<2x256xf32>
    %430 = arith.mulf %429, %427 : vector<2x256xf32>
    %431 = arith.addf %418, %430 : vector<2x256xf32>
    %432 = vector.extract_strided_slice %37 {offsets = [0, 66], sizes = [2, 256], strides = [1, 1]} : vector<2x358xf32> to vector<2x256xf32>
    %433 = vector.extract_strided_slice %38 {offsets = [0, 66], sizes = [2, 256], strides = [1, 1]} : vector<2x358xf32> to vector<2x256xf32>
    %c30 = arith.constant 30 : index
    %434 = memref.load %arg7[%c30] : memref<99xf32, #tpu.memory_space<smem>>
    %435 = vector.broadcast %434 : f32 to vector<2x256xf32>
    %436 = arith.mulf %435, %432 : vector<2x256xf32>
    %c79 = arith.constant 79 : index
    %437 = memref.load %arg7[%c79] : memref<99xf32, #tpu.memory_space<smem>>
    %438 = vector.broadcast %437 : f32 to vector<2x256xf32>
    %439 = arith.mulf %438, %433 : vector<2x256xf32>
    %440 = arith.addf %436, %439 : vector<2x256xf32>
    %441 = vector.extract_strided_slice %39 {offsets = [2, 0], sizes = [1, 256], strides = [1, 1]} : vector<7x256xf32> to vector<1x256xf32>
    %442 = vector.broadcast %441 : vector<1x256xf32> to vector<2x256xf32>
    %443 = arith.mulf %442, %440 : vector<2x256xf32>
    %444 = arith.addf %431, %443 : vector<2x256xf32>
    %445 = vector.extract_strided_slice %37 {offsets = [0, 67], sizes = [2, 256], strides = [1, 1]} : vector<2x358xf32> to vector<2x256xf32>
    %446 = vector.extract_strided_slice %38 {offsets = [0, 67], sizes = [2, 256], strides = [1, 1]} : vector<2x358xf32> to vector<2x256xf32>
    %c31 = arith.constant 31 : index
    %447 = memref.load %arg7[%c31] : memref<99xf32, #tpu.memory_space<smem>>
    %448 = vector.broadcast %447 : f32 to vector<2x256xf32>
    %449 = arith.mulf %448, %445 : vector<2x256xf32>
    %c80 = arith.constant 80 : index
    %450 = memref.load %arg7[%c80] : memref<99xf32, #tpu.memory_space<smem>>
    %451 = vector.broadcast %450 : f32 to vector<2x256xf32>
    %452 = arith.mulf %451, %446 : vector<2x256xf32>
    %453 = arith.addf %449, %452 : vector<2x256xf32>
    %454 = vector.extract_strided_slice %39 {offsets = [3, 0], sizes = [1, 256], strides = [1, 1]} : vector<7x256xf32> to vector<1x256xf32>
    %455 = vector.broadcast %454 : vector<1x256xf32> to vector<2x256xf32>
    %456 = arith.mulf %455, %453 : vector<2x256xf32>
    %457 = arith.addf %444, %456 : vector<2x256xf32>
    %458 = vector.extract_strided_slice %37 {offsets = [0, 68], sizes = [2, 256], strides = [1, 1]} : vector<2x358xf32> to vector<2x256xf32>
    %459 = vector.extract_strided_slice %38 {offsets = [0, 68], sizes = [2, 256], strides = [1, 1]} : vector<2x358xf32> to vector<2x256xf32>
    %c32 = arith.constant 32 : index
    %460 = memref.load %arg7[%c32] : memref<99xf32, #tpu.memory_space<smem>>
    %461 = vector.broadcast %460 : f32 to vector<2x256xf32>
    %462 = arith.mulf %461, %458 : vector<2x256xf32>
    %c81 = arith.constant 81 : index
    %463 = memref.load %arg7[%c81] : memref<99xf32, #tpu.memory_space<smem>>
    %464 = vector.broadcast %463 : f32 to vector<2x256xf32>
    %465 = arith.mulf %464, %459 : vector<2x256xf32>
    %466 = arith.addf %462, %465 : vector<2x256xf32>
    %467 = vector.extract_strided_slice %39 {offsets = [4, 0], sizes = [1, 256], strides = [1, 1]} : vector<7x256xf32> to vector<1x256xf32>
    %468 = vector.broadcast %467 : vector<1x256xf32> to vector<2x256xf32>
    %469 = arith.mulf %468, %466 : vector<2x256xf32>
    %470 = arith.addf %457, %469 : vector<2x256xf32>
    %471 = vector.extract_strided_slice %37 {offsets = [0, 69], sizes = [2, 256], strides = [1, 1]} : vector<2x358xf32> to vector<2x256xf32>
    %472 = vector.extract_strided_slice %38 {offsets = [0, 69], sizes = [2, 256], strides = [1, 1]} : vector<2x358xf32> to vector<2x256xf32>
    %c33 = arith.constant 33 : index
    %473 = memref.load %arg7[%c33] : memref<99xf32, #tpu.memory_space<smem>>
    %474 = vector.broadcast %473 : f32 to vector<2x256xf32>
    %475 = arith.mulf %474, %471 : vector<2x256xf32>
    %c82 = arith.constant 82 : index
    %476 = memref.load %arg7[%c82] : memref<99xf32, #tpu.memory_space<smem>>
    %477 = vector.broadcast %476 : f32 to vector<2x256xf32>
    %478 = arith.mulf %477, %472 : vector<2x256xf32>
    %479 = arith.addf %475, %478 : vector<2x256xf32>
    %480 = vector.extract_strided_slice %39 {offsets = [5, 0], sizes = [1, 256], strides = [1, 1]} : vector<7x256xf32> to vector<1x256xf32>
    %481 = vector.broadcast %480 : vector<1x256xf32> to vector<2x256xf32>
    %482 = arith.mulf %481, %479 : vector<2x256xf32>
    %483 = arith.addf %470, %482 : vector<2x256xf32>
    %484 = vector.extract_strided_slice %37 {offsets = [0, 70], sizes = [2, 256], strides = [1, 1]} : vector<2x358xf32> to vector<2x256xf32>
    %485 = vector.extract_strided_slice %38 {offsets = [0, 70], sizes = [2, 256], strides = [1, 1]} : vector<2x358xf32> to vector<2x256xf32>
    %c34 = arith.constant 34 : index
    %486 = memref.load %arg7[%c34] : memref<99xf32, #tpu.memory_space<smem>>
    %487 = vector.broadcast %486 : f32 to vector<2x256xf32>
    %488 = arith.mulf %487, %484 : vector<2x256xf32>
    %c83 = arith.constant 83 : index
    %489 = memref.load %arg7[%c83] : memref<99xf32, #tpu.memory_space<smem>>
    %490 = vector.broadcast %489 : f32 to vector<2x256xf32>
    %491 = arith.mulf %490, %485 : vector<2x256xf32>
    %492 = arith.addf %488, %491 : vector<2x256xf32>
    %493 = vector.extract_strided_slice %39 {offsets = [6, 0], sizes = [1, 256], strides = [1, 1]} : vector<7x256xf32> to vector<1x256xf32>
    %494 = vector.broadcast %493 : vector<1x256xf32> to vector<2x256xf32>
    %495 = arith.mulf %494, %492 : vector<2x256xf32>
    %496 = arith.addf %483, %495 : vector<2x256xf32>
    %497 = vector.extract_strided_slice %37 {offsets = [0, 80], sizes = [2, 256], strides = [1, 1]} : vector<2x358xf32> to vector<2x256xf32>
    %498 = vector.extract_strided_slice %38 {offsets = [0, 80], sizes = [2, 256], strides = [1, 1]} : vector<2x358xf32> to vector<2x256xf32>
    %c35 = arith.constant 35 : index
    %499 = memref.load %arg7[%c35] : memref<99xf32, #tpu.memory_space<smem>>
    %500 = vector.broadcast %499 : f32 to vector<2x256xf32>
    %501 = arith.mulf %500, %497 : vector<2x256xf32>
    %c84 = arith.constant 84 : index
    %502 = memref.load %arg7[%c84] : memref<99xf32, #tpu.memory_space<smem>>
    %503 = vector.broadcast %502 : f32 to vector<2x256xf32>
    %504 = arith.mulf %503, %498 : vector<2x256xf32>
    %505 = arith.addf %501, %504 : vector<2x256xf32>
    %506 = vector.extract_strided_slice %39 {offsets = [0, 0], sizes = [1, 256], strides = [1, 1]} : vector<7x256xf32> to vector<1x256xf32>
    %507 = vector.broadcast %506 : vector<1x256xf32> to vector<2x256xf32>
    %508 = arith.mulf %507, %505 : vector<2x256xf32>
    %509 = arith.addf %405, %508 : vector<2x256xf32>
    %510 = vector.extract_strided_slice %37 {offsets = [0, 81], sizes = [2, 256], strides = [1, 1]} : vector<2x358xf32> to vector<2x256xf32>
    %511 = vector.extract_strided_slice %38 {offsets = [0, 81], sizes = [2, 256], strides = [1, 1]} : vector<2x358xf32> to vector<2x256xf32>
    %c36 = arith.constant 36 : index
    %512 = memref.load %arg7[%c36] : memref<99xf32, #tpu.memory_space<smem>>
    %513 = vector.broadcast %512 : f32 to vector<2x256xf32>
    %514 = arith.mulf %513, %510 : vector<2x256xf32>
    %c85 = arith.constant 85 : index
    %515 = memref.load %arg7[%c85] : memref<99xf32, #tpu.memory_space<smem>>
    %516 = vector.broadcast %515 : f32 to vector<2x256xf32>
    %517 = arith.mulf %516, %511 : vector<2x256xf32>
    %518 = arith.addf %514, %517 : vector<2x256xf32>
    %519 = vector.extract_strided_slice %39 {offsets = [1, 0], sizes = [1, 256], strides = [1, 1]} : vector<7x256xf32> to vector<1x256xf32>
    %520 = vector.broadcast %519 : vector<1x256xf32> to vector<2x256xf32>
    %521 = arith.mulf %520, %518 : vector<2x256xf32>
    %522 = arith.addf %509, %521 : vector<2x256xf32>
    %523 = vector.extract_strided_slice %37 {offsets = [0, 82], sizes = [2, 256], strides = [1, 1]} : vector<2x358xf32> to vector<2x256xf32>
    %524 = vector.extract_strided_slice %38 {offsets = [0, 82], sizes = [2, 256], strides = [1, 1]} : vector<2x358xf32> to vector<2x256xf32>
    %c37 = arith.constant 37 : index
    %525 = memref.load %arg7[%c37] : memref<99xf32, #tpu.memory_space<smem>>
    %526 = vector.broadcast %525 : f32 to vector<2x256xf32>
    %527 = arith.mulf %526, %523 : vector<2x256xf32>
    %c86 = arith.constant 86 : index
    %528 = memref.load %arg7[%c86] : memref<99xf32, #tpu.memory_space<smem>>
    %529 = vector.broadcast %528 : f32 to vector<2x256xf32>
    %530 = arith.mulf %529, %524 : vector<2x256xf32>
    %531 = arith.addf %527, %530 : vector<2x256xf32>
    %532 = vector.extract_strided_slice %39 {offsets = [2, 0], sizes = [1, 256], strides = [1, 1]} : vector<7x256xf32> to vector<1x256xf32>
    %533 = vector.broadcast %532 : vector<1x256xf32> to vector<2x256xf32>
    %534 = arith.mulf %533, %531 : vector<2x256xf32>
    %535 = arith.addf %522, %534 : vector<2x256xf32>
    %536 = vector.extract_strided_slice %37 {offsets = [0, 83], sizes = [2, 256], strides = [1, 1]} : vector<2x358xf32> to vector<2x256xf32>
    %537 = vector.extract_strided_slice %38 {offsets = [0, 83], sizes = [2, 256], strides = [1, 1]} : vector<2x358xf32> to vector<2x256xf32>
    %c38 = arith.constant 38 : index
    %538 = memref.load %arg7[%c38] : memref<99xf32, #tpu.memory_space<smem>>
    %539 = vector.broadcast %538 : f32 to vector<2x256xf32>
    %540 = arith.mulf %539, %536 : vector<2x256xf32>
    %c87 = arith.constant 87 : index
    %541 = memref.load %arg7[%c87] : memref<99xf32, #tpu.memory_space<smem>>
    %542 = vector.broadcast %541 : f32 to vector<2x256xf32>
    %543 = arith.mulf %542, %537 : vector<2x256xf32>
    %544 = arith.addf %540, %543 : vector<2x256xf32>
    %545 = vector.extract_strided_slice %39 {offsets = [3, 0], sizes = [1, 256], strides = [1, 1]} : vector<7x256xf32> to vector<1x256xf32>
    %546 = vector.broadcast %545 : vector<1x256xf32> to vector<2x256xf32>
    %547 = arith.mulf %546, %544 : vector<2x256xf32>
    %548 = arith.addf %535, %547 : vector<2x256xf32>
    %549 = vector.extract_strided_slice %37 {offsets = [0, 84], sizes = [2, 256], strides = [1, 1]} : vector<2x358xf32> to vector<2x256xf32>
    %550 = vector.extract_strided_slice %38 {offsets = [0, 84], sizes = [2, 256], strides = [1, 1]} : vector<2x358xf32> to vector<2x256xf32>
    %c39 = arith.constant 39 : index
    %551 = memref.load %arg7[%c39] : memref<99xf32, #tpu.memory_space<smem>>
    %552 = vector.broadcast %551 : f32 to vector<2x256xf32>
    %553 = arith.mulf %552, %549 : vector<2x256xf32>
    %c88 = arith.constant 88 : index
    %554 = memref.load %arg7[%c88] : memref<99xf32, #tpu.memory_space<smem>>
    %555 = vector.broadcast %554 : f32 to vector<2x256xf32>
    %556 = arith.mulf %555, %550 : vector<2x256xf32>
    %557 = arith.addf %553, %556 : vector<2x256xf32>
    %558 = vector.extract_strided_slice %39 {offsets = [4, 0], sizes = [1, 256], strides = [1, 1]} : vector<7x256xf32> to vector<1x256xf32>
    %559 = vector.broadcast %558 : vector<1x256xf32> to vector<2x256xf32>
    %560 = arith.mulf %559, %557 : vector<2x256xf32>
    %561 = arith.addf %548, %560 : vector<2x256xf32>
    %562 = vector.extract_strided_slice %37 {offsets = [0, 85], sizes = [2, 256], strides = [1, 1]} : vector<2x358xf32> to vector<2x256xf32>
    %563 = vector.extract_strided_slice %38 {offsets = [0, 85], sizes = [2, 256], strides = [1, 1]} : vector<2x358xf32> to vector<2x256xf32>
    %c40 = arith.constant 40 : index
    %564 = memref.load %arg7[%c40] : memref<99xf32, #tpu.memory_space<smem>>
    %565 = vector.broadcast %564 : f32 to vector<2x256xf32>
    %566 = arith.mulf %565, %562 : vector<2x256xf32>
    %c89 = arith.constant 89 : index
    %567 = memref.load %arg7[%c89] : memref<99xf32, #tpu.memory_space<smem>>
    %568 = vector.broadcast %567 : f32 to vector<2x256xf32>
    %569 = arith.mulf %568, %563 : vector<2x256xf32>
    %570 = arith.addf %566, %569 : vector<2x256xf32>
    %571 = vector.extract_strided_slice %39 {offsets = [5, 0], sizes = [1, 256], strides = [1, 1]} : vector<7x256xf32> to vector<1x256xf32>
    %572 = vector.broadcast %571 : vector<1x256xf32> to vector<2x256xf32>
    %573 = arith.mulf %572, %570 : vector<2x256xf32>
    %574 = arith.addf %561, %573 : vector<2x256xf32>
    %575 = vector.extract_strided_slice %37 {offsets = [0, 86], sizes = [2, 256], strides = [1, 1]} : vector<2x358xf32> to vector<2x256xf32>
    %576 = vector.extract_strided_slice %38 {offsets = [0, 86], sizes = [2, 256], strides = [1, 1]} : vector<2x358xf32> to vector<2x256xf32>
    %c41 = arith.constant 41 : index
    %577 = memref.load %arg7[%c41] : memref<99xf32, #tpu.memory_space<smem>>
    %578 = vector.broadcast %577 : f32 to vector<2x256xf32>
    %579 = arith.mulf %578, %575 : vector<2x256xf32>
    %c90 = arith.constant 90 : index
    %580 = memref.load %arg7[%c90] : memref<99xf32, #tpu.memory_space<smem>>
    %581 = vector.broadcast %580 : f32 to vector<2x256xf32>
    %582 = arith.mulf %581, %576 : vector<2x256xf32>
    %583 = arith.addf %579, %582 : vector<2x256xf32>
    %584 = vector.extract_strided_slice %39 {offsets = [6, 0], sizes = [1, 256], strides = [1, 1]} : vector<7x256xf32> to vector<1x256xf32>
    %585 = vector.broadcast %584 : vector<1x256xf32> to vector<2x256xf32>
    %586 = arith.mulf %585, %583 : vector<2x256xf32>
    %587 = arith.addf %574, %586 : vector<2x256xf32>
    %588 = vector.extract_strided_slice %37 {offsets = [0, 96], sizes = [2, 256], strides = [1, 1]} : vector<2x358xf32> to vector<2x256xf32>
    %589 = vector.extract_strided_slice %38 {offsets = [0, 96], sizes = [2, 256], strides = [1, 1]} : vector<2x358xf32> to vector<2x256xf32>
    %c42 = arith.constant 42 : index
    %590 = memref.load %arg7[%c42] : memref<99xf32, #tpu.memory_space<smem>>
    %591 = vector.broadcast %590 : f32 to vector<2x256xf32>
    %592 = arith.mulf %591, %588 : vector<2x256xf32>
    %c91 = arith.constant 91 : index
    %593 = memref.load %arg7[%c91] : memref<99xf32, #tpu.memory_space<smem>>
    %594 = vector.broadcast %593 : f32 to vector<2x256xf32>
    %595 = arith.mulf %594, %589 : vector<2x256xf32>
    %596 = arith.addf %592, %595 : vector<2x256xf32>
    %597 = vector.extract_strided_slice %39 {offsets = [0, 0], sizes = [1, 256], strides = [1, 1]} : vector<7x256xf32> to vector<1x256xf32>
    %598 = vector.broadcast %597 : vector<1x256xf32> to vector<2x256xf32>
    %599 = arith.mulf %598, %596 : vector<2x256xf32>
    %600 = arith.addf %496, %599 : vector<2x256xf32>
    %601 = vector.extract_strided_slice %37 {offsets = [0, 97], sizes = [2, 256], strides = [1, 1]} : vector<2x358xf32> to vector<2x256xf32>
    %602 = vector.extract_strided_slice %38 {offsets = [0, 97], sizes = [2, 256], strides = [1, 1]} : vector<2x358xf32> to vector<2x256xf32>
    %c43 = arith.constant 43 : index
    %603 = memref.load %arg7[%c43] : memref<99xf32, #tpu.memory_space<smem>>
    %604 = vector.broadcast %603 : f32 to vector<2x256xf32>
    %605 = arith.mulf %604, %601 : vector<2x256xf32>
    %c92 = arith.constant 92 : index
    %606 = memref.load %arg7[%c92] : memref<99xf32, #tpu.memory_space<smem>>
    %607 = vector.broadcast %606 : f32 to vector<2x256xf32>
    %608 = arith.mulf %607, %602 : vector<2x256xf32>
    %609 = arith.addf %605, %608 : vector<2x256xf32>
    %610 = vector.extract_strided_slice %39 {offsets = [1, 0], sizes = [1, 256], strides = [1, 1]} : vector<7x256xf32> to vector<1x256xf32>
    %611 = vector.broadcast %610 : vector<1x256xf32> to vector<2x256xf32>
    %612 = arith.mulf %611, %609 : vector<2x256xf32>
    %613 = arith.addf %600, %612 : vector<2x256xf32>
    %614 = vector.extract_strided_slice %37 {offsets = [0, 98], sizes = [2, 256], strides = [1, 1]} : vector<2x358xf32> to vector<2x256xf32>
    %615 = vector.extract_strided_slice %38 {offsets = [0, 98], sizes = [2, 256], strides = [1, 1]} : vector<2x358xf32> to vector<2x256xf32>
    %c44 = arith.constant 44 : index
    %616 = memref.load %arg7[%c44] : memref<99xf32, #tpu.memory_space<smem>>
    %617 = vector.broadcast %616 : f32 to vector<2x256xf32>
    %618 = arith.mulf %617, %614 : vector<2x256xf32>
    %c93 = arith.constant 93 : index
    %619 = memref.load %arg7[%c93] : memref<99xf32, #tpu.memory_space<smem>>
    %620 = vector.broadcast %619 : f32 to vector<2x256xf32>
    %621 = arith.mulf %620, %615 : vector<2x256xf32>
    %622 = arith.addf %618, %621 : vector<2x256xf32>
    %623 = vector.extract_strided_slice %39 {offsets = [2, 0], sizes = [1, 256], strides = [1, 1]} : vector<7x256xf32> to vector<1x256xf32>
    %624 = vector.broadcast %623 : vector<1x256xf32> to vector<2x256xf32>
    %625 = arith.mulf %624, %622 : vector<2x256xf32>
    %626 = arith.addf %613, %625 : vector<2x256xf32>
    %627 = vector.extract_strided_slice %37 {offsets = [0, 99], sizes = [2, 256], strides = [1, 1]} : vector<2x358xf32> to vector<2x256xf32>
    %628 = vector.extract_strided_slice %38 {offsets = [0, 99], sizes = [2, 256], strides = [1, 1]} : vector<2x358xf32> to vector<2x256xf32>
    %c45 = arith.constant 45 : index
    %629 = memref.load %arg7[%c45] : memref<99xf32, #tpu.memory_space<smem>>
    %630 = vector.broadcast %629 : f32 to vector<2x256xf32>
    %631 = arith.mulf %630, %627 : vector<2x256xf32>
    %c94 = arith.constant 94 : index
    %632 = memref.load %arg7[%c94] : memref<99xf32, #tpu.memory_space<smem>>
    %633 = vector.broadcast %632 : f32 to vector<2x256xf32>
    %634 = arith.mulf %633, %628 : vector<2x256xf32>
    %635 = arith.addf %631, %634 : vector<2x256xf32>
    %636 = vector.extract_strided_slice %39 {offsets = [3, 0], sizes = [1, 256], strides = [1, 1]} : vector<7x256xf32> to vector<1x256xf32>
    %637 = vector.broadcast %636 : vector<1x256xf32> to vector<2x256xf32>
    %638 = arith.mulf %637, %635 : vector<2x256xf32>
    %639 = arith.addf %626, %638 : vector<2x256xf32>
    %640 = vector.extract_strided_slice %37 {offsets = [0, 100], sizes = [2, 256], strides = [1, 1]} : vector<2x358xf32> to vector<2x256xf32>
    %641 = vector.extract_strided_slice %38 {offsets = [0, 100], sizes = [2, 256], strides = [1, 1]} : vector<2x358xf32> to vector<2x256xf32>
    %c46 = arith.constant 46 : index
    %642 = memref.load %arg7[%c46] : memref<99xf32, #tpu.memory_space<smem>>
    %643 = vector.broadcast %642 : f32 to vector<2x256xf32>
    %644 = arith.mulf %643, %640 : vector<2x256xf32>
    %c95 = arith.constant 95 : index
    %645 = memref.load %arg7[%c95] : memref<99xf32, #tpu.memory_space<smem>>
    %646 = vector.broadcast %645 : f32 to vector<2x256xf32>
    %647 = arith.mulf %646, %641 : vector<2x256xf32>
    %648 = arith.addf %644, %647 : vector<2x256xf32>
    %649 = vector.extract_strided_slice %39 {offsets = [4, 0], sizes = [1, 256], strides = [1, 1]} : vector<7x256xf32> to vector<1x256xf32>
    %650 = vector.broadcast %649 : vector<1x256xf32> to vector<2x256xf32>
    %651 = arith.mulf %650, %648 : vector<2x256xf32>
    %652 = arith.addf %639, %651 : vector<2x256xf32>
    %653 = vector.extract_strided_slice %37 {offsets = [0, 101], sizes = [2, 256], strides = [1, 1]} : vector<2x358xf32> to vector<2x256xf32>
    %654 = vector.extract_strided_slice %38 {offsets = [0, 101], sizes = [2, 256], strides = [1, 1]} : vector<2x358xf32> to vector<2x256xf32>
    %c47 = arith.constant 47 : index
    %655 = memref.load %arg7[%c47] : memref<99xf32, #tpu.memory_space<smem>>
    %656 = vector.broadcast %655 : f32 to vector<2x256xf32>
    %657 = arith.mulf %656, %653 : vector<2x256xf32>
    %c96 = arith.constant 96 : index
    %658 = memref.load %arg7[%c96] : memref<99xf32, #tpu.memory_space<smem>>
    %659 = vector.broadcast %658 : f32 to vector<2x256xf32>
    %660 = arith.mulf %659, %654 : vector<2x256xf32>
    %661 = arith.addf %657, %660 : vector<2x256xf32>
    %662 = vector.extract_strided_slice %39 {offsets = [5, 0], sizes = [1, 256], strides = [1, 1]} : vector<7x256xf32> to vector<1x256xf32>
    %663 = vector.broadcast %662 : vector<1x256xf32> to vector<2x256xf32>
    %664 = arith.mulf %663, %661 : vector<2x256xf32>
    %665 = arith.addf %652, %664 : vector<2x256xf32>
    %666 = vector.extract_strided_slice %37 {offsets = [0, 102], sizes = [2, 256], strides = [1, 1]} : vector<2x358xf32> to vector<2x256xf32>
    %667 = vector.extract_strided_slice %38 {offsets = [0, 102], sizes = [2, 256], strides = [1, 1]} : vector<2x358xf32> to vector<2x256xf32>
    %c48 = arith.constant 48 : index
    %668 = memref.load %arg7[%c48] : memref<99xf32, #tpu.memory_space<smem>>
    %669 = vector.broadcast %668 : f32 to vector<2x256xf32>
    %670 = arith.mulf %669, %666 : vector<2x256xf32>
    %c97 = arith.constant 97 : index
    %671 = memref.load %arg7[%c97] : memref<99xf32, #tpu.memory_space<smem>>
    %672 = vector.broadcast %671 : f32 to vector<2x256xf32>
    %673 = arith.mulf %672, %667 : vector<2x256xf32>
    %674 = arith.addf %670, %673 : vector<2x256xf32>
    %675 = vector.extract_strided_slice %39 {offsets = [6, 0], sizes = [1, 256], strides = [1, 1]} : vector<7x256xf32> to vector<1x256xf32>
    %676 = vector.broadcast %675 : vector<1x256xf32> to vector<2x256xf32>
    %677 = arith.mulf %676, %674 : vector<2x256xf32>
    %678 = arith.addf %665, %677 : vector<2x256xf32>
    %679 = arith.addf %678, %587 : vector<2x256xf32>
    %c98 = arith.constant 98 : index
    %680 = memref.load %arg7[%c98] : memref<99xf32, #tpu.memory_space<smem>>
    %681 = vector.broadcast %680 : f32 to vector<2x256xf32>
    %682 = arith.addf %679, %681 : vector<2x256xf32>
    %683 = arith.negf %682 : vector<2x256xf32>
    %684 = math.exp %683 : vector<2x256xf32>
    %cst_23 = arith.constant 1.000000e+00 : f32
    %685 = vector.broadcast %cst_23 : f32 to vector<2x256xf32>
    %686 = arith.addf %685, %684 : vector<2x256xf32>
    %687 = arith.divf %685, %686 : vector<2x256xf32>
    %688 = vector.shape_cast %687 : vector<2x256xf32> to vector<2x1x256xf32>
    %689 = vector.broadcast %688 : vector<2x1x256xf32> to vector<2x64x256xf32>
    %690 = arith.mulf %31, %689 : vector<2x64x256xf32>
    %c0_24 = arith.constant 0 : index
    %c0_25 = arith.constant 0 : index
    %c0_26 = arith.constant 0 : index
    %691 = vector.load %arg8[%c0_24, %c0_25, %c0_26] : memref<2x64x256xf32, #tpu.memory_space<vmem>>, vector<2x64x256xf32>
    tpu.vector_store %arg8[%c0_24, %c0_25, %c0_26], %690 {strides = array<i32>} : memref<2x64x256xf32, #tpu.memory_space<vmem>>, vector<2x64x256xf32>,
    return
  }
  func.func @transform_0(%arg0: i32) -> (i32, i32, i32) {
    %c0_i32 = arith.constant 0 : i32
    %c0_i32_0 = arith.constant 0 : i32
    %c0_i32_1 = arith.constant 0 : i32
    return %arg0, %c0_i32, %c0_i32_0 : i32, i32, i32
  }
  func.func @transform_1(%arg0: i32) -> (i32, i32) {
    %c0_i32 = arith.constant 0 : i32
    %c0_i32_0 = arith.constant 0 : i32
    %c0_i32_1 = arith.constant 0 : i32
    return %c0_i32, %c0_i32_0 : i32, i32
  }
  func.func @transform_2(%arg0: i32) -> (i32, i32) {
    %c0_i32 = arith.constant 0 : i32
    %c0_i32_0 = arith.constant 0 : i32
    %c0_i32_1 = arith.constant 0 : i32
    return %c0_i32, %c0_i32_0 : i32, i32
  }
  func.func @transform_3(%arg0: i32) -> (i32, i32) {
    %c0_i32 = arith.constant 0 : i32
    %c0_i32_0 = arith.constant 0 : i32
    %c0_i32_1 = arith.constant 0 : i32
    return %c0_i32, %c0_i32_0 : i32, i32
  }
  func.func @transform_4(%arg0: i32) -> (i32, i32) {
    %c0_i32 = arith.constant 0 : i32
    %c0_i32_0 = arith.constant 0 : i32
    %c0_i32_1 = arith.constant 0 : i32
    return %c0_i32, %c0_i32_0 : i32, i32
  }
  func.func @transform_5(%arg0: i32) -> (i32, i32) {
    %c0_i32 = arith.constant 0 : i32
    %c0_i32_0 = arith.constant 0 : i32
    %c0_i32_1 = arith.constant 0 : i32
    return %c0_i32, %c0_i32_0 : i32, i32
  }
  func.func @transform_6(%arg0: i32) -> i32 {
    %c0_i32 = arith.constant 0 : i32
    %c0_i32_0 = arith.constant 0 : i32
    return %c0_i32 : i32
  }
  func.func @transform_7(%arg0: i32) -> (i32, i32, i32) {
    %c0_i32 = arith.constant 0 : i32
    %c0_i32_0 = arith.constant 0 : i32
    %c0_i32_1 = arith.constant 0 : i32
    return %arg0, %c0_i32, %c0_i32_0 : i32, i32, i32
  }
}

</mosaic_0001>

<llo_original>
// kernel: tpu_custom_call.1
$region0: #{tpu_custom_call.1}
  #allocation0 [shape = 'u32[]', space=smem, size = 0x4, offset = 0x4, fixed_abs, tag = 'smem constant byte address 0x4 - core index']
  #allocation1 [shape = 'u32[144,128]{1,0:T(1,128)}', space=vmem, size = 0x12000, scoped, tag = 'internal scratch']
  %s0 = inlined_call_operand.hbm [shape: f32[2,64,256], index: 0, kind: input, shape index: {}]
  %s1 = inlined_call_operand.hbm [shape: f32[4,64], index: 1, kind: input, shape index: {}]
  %s2 = inlined_call_operand.vmem [shape: f32[1,4], index: 2, kind: input, shape index: {}]
  %s3 = inlined_call_operand.hbm [shape: f32[4,64], index: 3, kind: input, shape index: {}]
  %s4 = inlined_call_operand.vmem [shape: f32[1,64], index: 4, kind: input, shape index: {}]
  %s5 = inlined_call_operand.vmem [shape: f32[7,256], index: 5, kind: input, shape index: {}]
  %s6 = inlined_call_operand.vmem [shape: f32[99], index: 6, kind: input, shape index: {}]
  %s7 = inlined_call_operand.hbm [shape: f32[2,64,256], index: 7, kind: output, shape index: {}]
  %s8 = sld [smem:[#allocation0]]
  $region54: #{tpu_custom_call.1} parent=0
    _
  %s10 = ssub.s32 1, %s8
  %s11 = scalar_select 0, %s10, %s8
  $region1: #{tpu_custom_call.1} parent=0
    #allocation2 [shape = 'u8[131072]{0}', space=vmem, size = 0x20000, scoped, tag = 'input window, operand 0, single buffered']
    #allocation3 [shape = 's32[1]{0}', space=sflag, size = 0x4, scoped, tag = 'scoped memory for tpu_custom_call.1']
    #allocation4 [shape = 's32[1]{0}', space=sflag, size = 0x4, scoped, tag = 'scoped memory for tpu_custom_call.1']
    #allocation5 [shape = 's32[1]{0}', space=sflag, size = 0x4, scoped, tag = 'scoped memory for tpu_custom_call.1']
    #allocation6 [shape = 'u8[2048]{0}', space=vmem, size = 0x800, scoped, tag = 'input window, operand 1, single buffered']
    #allocation7 [shape = 's32[1]{0}', space=sflag, size = 0x4, scoped, tag = 'scoped memory for tpu_custom_call.1']
    #allocation8 [shape = 'u8[2048]{0}', space=vmem, size = 0x800, scoped, tag = 'input window, operand 3, single buffered']
    #allocation9 [shape = 'u8[512]{0}', space=smem, size = 0x200, scoped, tag = 'input window, operand 6, single buffered']
    #allocation10 [shape = 'u8[131072]{0}', space=vmem, size = 0x20000, scoped, tag = 'output window, operand 0, single buffered']
    %12 = vsyncpa [#allocation3], 0
    %13 = vsyncpa [#allocation7], 0
    %14 = vsyncpa [#allocation5], 0
    %15 = vsyncpa [#allocation4], 0
    // Predicated region
    $region2: #{tpu_custom_call.1} parent=1 // pred_check
      _
    $region3: #{tpu_custom_call.1} parent=1 // pred_check_branch
      %17 = sbr.rel (0) target = $region5
    $region4: #{tpu_custom_call.1} parent=1 // pred_region
      %s19 = ssub.s32 4096, 4096
      %20 = vsyncadd [#allocation3], %s19
      %s21 = sshll.u32 [#allocation2], 4
      %s22 = int_to_ptr.vmem [resolvable:$true] %s21
      %27 = dma.hbm_to_vmem [thread:$0]  %s0, 4096, %s22, [#allocation3], 256, 256, 16
    $region5: #{tpu_custom_call.1} parent=1 // pred_fallthru
      _
    // Predicated region
    $region6: #{tpu_custom_call.1} parent=1 // pred_check
      _
    $region7: #{tpu_custom_call.1} parent=1 // pred_check_branch
      %29 = sbr.rel (0) target = $region9
    $region8: #{tpu_custom_call.1} parent=1 // pred_region
      %s31 = ssub.s32 64, 64
      %32 = vsyncadd [#allocation7], %s31
      %s34 = sshll.u32 [#allocation6], 4
      %s35 = int_to_ptr.vmem [resolvable:$true] %s34
      %37 = dma.hbm_to_vmem [thread:$0]  %s1, 64, %s35, [#allocation7]
    $region9: #{tpu_custom_call.1} parent=1 // pred_fallthru
      _
    // Predicated region
    $region10: #{tpu_custom_call.1} parent=1 // pred_check
      _
    $region11: #{tpu_custom_call.1} parent=1 // pred_check_branch
      %39 = sbr.rel (0) target = $region13
    $region12: #{tpu_custom_call.1} parent=1 // pred_region
      _
    $region13: #{tpu_custom_call.1} parent=1 // pred_fallthru
      _
    // Predicated region
    $region14: #{tpu_custom_call.1} parent=1 // pred_check
      _
    $region15: #{tpu_custom_call.1} parent=1 // pred_check_branch
      %41 = sbr.rel (0) target = $region17
    $region16: #{tpu_custom_call.1} parent=1 // pred_region
      %s43 = ssub.s32 64, 64
      %44 = vsyncadd [#allocation7], %s43
      %s46 = sshll.u32 [#allocation8], 4
      %s47 = int_to_ptr.vmem [resolvable:$true] %s46
      %49 = dma.hbm_to_vmem [thread:$0]  %s3, 64, %s47, [#allocation7]
    $region17: #{tpu_custom_call.1} parent=1 // pred_fallthru
      _
    // Predicated region
    $region18: #{tpu_custom_call.1} parent=1 // pred_check
      _
    $region19: #{tpu_custom_call.1} parent=1 // pred_check_branch
      %51 = sbr.rel (0) target = $region21
    $region20: #{tpu_custom_call.1} parent=1 // pred_region
      _
    $region21: #{tpu_custom_call.1} parent=1 // pred_fallthru
      _
    // Predicated region
    $region22: #{tpu_custom_call.1} parent=1 // pred_check
      _
    $region23: #{tpu_custom_call.1} parent=1 // pred_check_branch
      %53 = sbr.rel (0) target = $region25
    $region24: #{tpu_custom_call.1} parent=1 // pred_region
      _
    $region25: #{tpu_custom_call.1} parent=1 // pred_fallthru
      _
    // Predicated region
    $region26: #{tpu_custom_call.1} parent=1 // pred_check
      _
    $region27: #{tpu_custom_call.1} parent=1 // pred_check_branch
      %55 = sbr.rel (0) target = $region29
    $region28: #{tpu_custom_call.1} parent=1 // pred_region
      %s57 = ssub.s32 16, 16
      %58 = vsyncadd [#allocation5], %s57
      %s60 = sshll.u32 %s6, 4
      %s61 = int_to_ptr.vmem [resolvable:$true] %s60
      %63 = dma.vmem_to_smem %s61, 16, [#allocation9], [#allocation5]
    $region29: #{tpu_custom_call.1} parent=1 // pred_fallthru
      _
    // Predicated region
    $region30: #{tpu_custom_call.1} parent=1 // pred_check
      _
    $region31: #{tpu_custom_call.1} parent=1 // pred_check_branch
      %65 = sbr.rel (0) target = $region33
    $region32: #{tpu_custom_call.1} parent=1 // pred_region
      %66 = dma.done [#allocation3], 4096
    $region33: #{tpu_custom_call.1} parent=1 // pred_fallthru
      _
    // Predicated region
    $region34: #{tpu_custom_call.1} parent=1 // pred_check
      _
    $region35: #{tpu_custom_call.1} parent=1 // pred_check_branch
      %68 = sbr.rel (0) target = $region37
    $region36: #{tpu_custom_call.1} parent=1 // pred_region
      %69 = dma.done [#allocation7], 64
    $region37: #{tpu_custom_call.1} parent=1 // pred_fallthru
      _
    // Predicated region
    $region38: #{tpu_custom_call.1} parent=1 // pred_check
      _
    $region39: #{tpu_custom_call.1} parent=1 // pred_check_branch
      %71 = sbr.rel (0) target = $region41
    $region40: #{tpu_custom_call.1} parent=1 // pred_region
      %72 = dma.done [#allocation7], 64
    $region41: #{tpu_custom_call.1} parent=1 // pred_fallthru
      _
    // Predicated region
    $region42: #{tpu_custom_call.1} parent=1 // pred_check
      _
    $region43: #{tpu_custom_call.1} parent=1 // pred_check_branch
      %74 = sbr.rel (0) target = $region45
    $region44: #{tpu_custom_call.1} parent=1 // pred_region
      %75 = dma.done [#allocation5], 16
    $region45: #{tpu_custom_call.1} parent=1 // pred_fallthru
      _
    %76 = sfence
    %v77 = vld [vmem:[#allocation2] sm:$0xff]
    %v78 = vld [vmem:[#allocation2 + $0x8] sm:$0xff]
    %v79 = vld [vmem:[#allocation2 + $0x10] sm:$0xff]
    %v80 = vld [vmem:[#allocation2 + $0x18] sm:$0xff]
    %v81 = vld [vmem:[#allocation2 + $0x20] sm:$0xff]
    %v82 = vld [vmem:[#allocation2 + $0x28] sm:$0xff]
    %v83 = vld [vmem:[#allocation2 + $0x30] sm:$0xff]
    %v84 = vld [vmem:[#allocation2 + $0x38] sm:$0xff]
    %v85 = vld [vmem:[#allocation2 + $0x40] sm:$0xff]
    %v86 = vld [vmem:[#allocation2 + $0x48] sm:$0xff]
    %v87 = vld [vmem:[#allocation2 + $0x50] sm:$0xff]
    %v88 = vld [vmem:[#allocation2 + $0x58] sm:$0xff]
    %v89 = vld [vmem:[#allocation2 + $0x60] sm:$0xff]
    %v90 = vld [vmem:[#allocation2 + $0x68] sm:$0xff]
    %v91 = vld [vmem:[#allocation2 + $0x70] sm:$0xff]
    %v92 = vld [vmem:[#allocation2 + $0x78] sm:$0xff]
    %v93 = vld [vmem:[#allocation2 + $0x80] sm:$0xff]
    %v94 = vld [vmem:[#allocation2 + $0x88] sm:$0xff]
    %v95 = vld [vmem:[#allocation2 + $0x90] sm:$0xff]
    %v96 = vld [vmem:[#allocation2 + $0x98] sm:$0xff]
    %v97 = vld [vmem:[#allocation2 + $0xa0] sm:$0xff]
    %v98 = vld [vmem:[#allocation2 + $0xa8] sm:$0xff]
    %v99 = vld [vmem:[#allocation2 + $0xb0] sm:$0xff]
    %v100 = vld [vmem:[#allocation2 + $0xb8] sm:$0xff]
    %v101 = vld [vmem:[#allocation2 + $0xc0] sm:$0xff]
    %v102 = vld [vmem:[#allocation2 + $0xc8] sm:$0xff]
    %v103 = vld [vmem:[#allocation2 + $0xd0] sm:$0xff]
    %v104 = vld [vmem:[#allocation2 + $0xd8] sm:$0xff]
    %v105 = vld [vmem:[#allocation2 + $0xe0] sm:$0xff]
    %v106 = vld [vmem:[#allocation2 + $0xe8] sm:$0xff]
    %v107 = vld [vmem:[#allocation2 + $0xf0] sm:$0xff]
    %v108 = vld [vmem:[#allocation2 + $0xf8] sm:$0xff]
    %v109 = vmax.f32 %v77, %v78
    %110 = vmax.xlane.f32.xlu0 %v109
    %v111 = vpop.xlane.xlu0 %110
    %v112 = vmax.f32 %v79, %v80
    %113 = vmax.xlane.f32.xlu0 %v112
    %v114 = vpop.xlane.xlu0 %113
    %v115 = vmax.f32 %v81, %v82
    %116 = vmax.xlane.f32.xlu0 %v115
    %v117 = vpop.xlane.xlu0 %116
    %v118 = vmax.f32 %v83, %v84
    %119 = vmax.xlane.f32.xlu0 %v118
    %v120 = vpop.xlane.xlu0 %119
    %v121 = vmax.f32 %v85, %v86
    %122 = vmax.xlane.f32.xlu0 %v121
    %v123 = vpop.xlane.xlu0 %122
    %v124 = vmax.f32 %v87, %v88
    %125 = vmax.xlane.f32.xlu0 %v124
    %v126 = vpop.xlane.xlu0 %125
    %v127 = vmax.f32 %v89, %v90
    %128 = vmax.xlane.f32.xlu0 %v127
    %v129 = vpop.xlane.xlu0 %128
    %v130 = vmax.f32 %v91, %v92
    %131 = vmax.xlane.f32.xlu0 %v130
    %v132 = vpop.xlane.xlu0 %131
    %v133 = vmax.f32 %v93, %v94
    %134 = vmax.xlane.f32.xlu0 %v133
    %v135 = vpop.xlane.xlu0 %134
    %v136 = vmax.f32 %v95, %v96
    %137 = vmax.xlane.f32.xlu0 %v136
    %v138 = vpop.xlane.xlu0 %137
    %v139 = vmax.f32 %v97, %v98
    %140 = vmax.xlane.f32.xlu0 %v139
    %v141 = vpop.xlane.xlu0 %140
    %v142 = vmax.f32 %v99, %v100
    %143 = vmax.xlane.f32.xlu0 %v142
    %v144 = vpop.xlane.xlu0 %143
    %v145 = vmax.f32 %v101, %v102
    %146 = vmax.xlane.f32.xlu0 %v145
    %v147 = vpop.xlane.xlu0 %146
    %v148 = vmax.f32 %v103, %v104
    %149 = vmax.xlane.f32.xlu0 %v148
    %v150 = vpop.xlane.xlu0 %149
    %v151 = vmax.f32 %v105, %v106
    %152 = vmax.xlane.f32.xlu0 %v151
    %v153 = vpop.xlane.xlu0 %152
    %v154 = vmax.f32 %v107, %v108
    %155 = vmax.xlane.f32.xlu0 %v154
    %v156 = vpop.xlane.xlu0 %155
    %v157 = vld [vmem:[#allocation6] sm:$0xf]
    %v174 = vlaneseq
    %v175 = vand.u32 %v174, 127
    %v176 = vlaneseq
    %v177 = vshrl.u32 %v176, 7
    %v178 = vsub.s32 %v175, %v177
    %v179 = vrot.slane %v111, %v178
    %v180 = vadd.s32 %v175, 4294967288
    %v181 = vlaneseq
    %v182 = vshrl.u32 %v181, 7
    %v183 = vsub.s32 %v180, %v182
    %v184 = vrot.slane %v114, %v183
    %vm185 = vcmask 130112
    %v186 = vsel %vm185, %v184, %v179
    %v187 = vadd.s32 %v175, 4294967280
    %v188 = vlaneseq
    %v189 = vshrl.u32 %v188, 7
    %v190 = vsub.s32 %v187, %v189
    %v191 = vrot.slane %v117, %v190
    %vm192 = vcmask 195712
    %v193 = vsel %vm192, %v191, %v186
    %v194 = vadd.s32 %v175, 4294967272
    %v195 = vlaneseq
    %v196 = vshrl.u32 %v195, 7
    %v197 = vsub.s32 %v194, %v196
    %v198 = vrot.slane %v120, %v197
    %vm199 = vcmask 261312
    %v200 = vsel %vm199, %v198, %v193
    %v201 = vadd.s32 %v175, 4294967264
    %v202 = vlaneseq
    %v203 = vshrl.u32 %v202, 7
    %v204 = vsub.s32 %v201, %v203
    %v205 = vrot.slane %v123, %v204
    %vm206 = vcmask 326912
    %v207 = vsel %vm206, %v205, %v200
    %v208 = vadd.s32 %v175, 4294967256
    %v209 = vlaneseq
    %v210 = vshrl.u32 %v209, 7
    %v211 = vsub.s32 %v208, %v210
    %v212 = vrot.slane %v126, %v211
    %vm213 = vcmask 392512
    %v214 = vsel %vm213, %v212, %v207
    %v215 = vadd.s32 %v175, 4294967248
    %v216 = vlaneseq
    %v217 = vshrl.u32 %v216, 7
    %v218 = vsub.s32 %v215, %v217
    %v219 = vrot.slane %v129, %v218
    %vm220 = vcmask 458112
    %v221 = vsel %vm220, %v219, %v214
    %v222 = vadd.s32 %v175, 4294967240
    %v223 = vlaneseq
    %v224 = vshrl.u32 %v223, 7
    %v225 = vsub.s32 %v222, %v224
    %v226 = vrot.slane %v132, %v225
    %vm227 = vcmask 523712
    %v228 = vsel %vm227, %v226, %v221
    %v229 = vlaneseq
    %v230 = vshrl.u32 %v229, 7
    %v231 = vsub.s32 %v175, %v230
    %v232 = vrot.slane %v135, %v231
    %v233 = vlaneseq
    %v234 = vshrl.u32 %v233, 7
    %v235 = vsub.s32 %v180, %v234
    %v236 = vrot.slane %v138, %v235
    %v237 = vsel %vm185, %v236, %v232
    %v238 = vlaneseq
    %v239 = vshrl.u32 %v238, 7
    %v240 = vsub.s32 %v187, %v239
    %v241 = vrot.slane %v141, %v240
    %v242 = vsel %vm192, %v241, %v237
    %v243 = vlaneseq
    %v244 = vshrl.u32 %v243, 7
    %v245 = vsub.s32 %v194, %v244
    %v246 = vrot.slane %v144, %v245
    %v247 = vsel %vm199, %v246, %v242
    %v248 = vlaneseq
    %v249 = vshrl.u32 %v248, 7
    %v250 = vsub.s32 %v201, %v249
    %v251 = vrot.slane %v147, %v250
    %v252 = vsel %vm206, %v251, %v247
    %v253 = vlaneseq
    %v254 = vshrl.u32 %v253, 7
    %v255 = vsub.s32 %v208, %v254
    %v256 = vrot.slane %v150, %v255
    %v257 = vsel %vm213, %v256, %v252
    %v258 = vlaneseq
    %v259 = vshrl.u32 %v258, 7
    %v260 = vsub.s32 %v215, %v259
    %v261 = vrot.slane %v153, %v260
    %v262 = vsel %vm220, %v261, %v257
    %v263 = vlaneseq
    %v264 = vshrl.u32 %v263, 7
    %v265 = vsub.s32 %v222, %v264
    %v266 = vrot.slane %v156, %v265
    %v267 = vsel %vm227, %v266, %v262
    %vm268 = vcmask 1041409
    %vm269 = vcmask 1042434
    %v270 = vsel %vm269, %v228, %v228
    %vm271 = vcmask 1043459
    %v272 = vsel %vm271, %v228, %v270
    %v273 = vsel %vm269, %v267, %v267
    %v274 = vsel %vm271, %v267, %v273
    %v277 = vmul.f32 %v157, %v272
    %v278 = vmul.f32 %v157, %v274
    %vm279 = vcmask 519168
    %v280 = vsel %vm279, %v277, 0.0
    %281 = vadd.xlane.f32.xlu0 %v280
    %v282 = vpop.xlane.xlu0 %281
    %v283 = vsel %vm279, %v278, 0.0
    %284 = vadd.xlane.f32.xlu0 %v283
    %v285 = vpop.xlane.xlu0 %284
    %v286 = vld [vmem:[%s2] sm:$0x1]
    %v288 = vlaneseq
    %v289 = vshrl.u32 %v288, 7
    %v290 = vsub.s32 0, %v289
    %v291 = vrot.slane %v286, %v290
    %293 = vbcast.lane.b32.xlu0 %v291, 256
    %v294 = vpop.permute.xlu0 %293
    %v296 = vadd.f32 %v282, %v294
    %v297 = vadd.f32 %v285, %v294
    %v298 = vmax.f32 %v296, 0.0
    %v299 = vmax.f32 %v297, 0.0
    %v300 = vld [vmem:[#allocation8] sm:$0xf]
    %302 = vset.pattern.permute.xlu0 0
    %303 = vperm.xlu0 %302, %v298
    %v304 = vpop.permute.xlu0 %303
    %307 = vset.pattern.permute.xlu0 0
    %308 = vperm.xlu0 %307, %v299
    %v309 = vpop.permute.xlu0 %308
    %v311 = vmul.f32 %v300, %v304
    %v312 = vmul.f32 %v300, %v309
    %v313 = vsel %vm279, %v311, 0.0
    %v314 = vrot.slane %v313, 4
    %v315 = vadd.f32 %v313, %v314
    %v316 = vrot.slane %v315, 2
    %v317 = vadd.f32 %v315, %v316
    %v318 = vrot.slane %v317, 1
    %v319 = vadd.f32 %v317, %v318
    %v320 = vsel %vm279, %v312, 0.0
    %v321 = vrot.slane %v320, 4
    %v322 = vadd.f32 %v320, %v321
    %v323 = vrot.slane %v322, 2
    %v324 = vadd.f32 %v322, %v323
    %v325 = vrot.slane %v324, 1
    %v326 = vadd.f32 %v324, %v325
    %v327 = vld [vmem:[%s4] sm:$0x1]
    %v329 = vlaneseq
    %v330 = vshrl.u32 %v329, 7
    %v331 = vsub.s32 0, %v330
    %v332 = vrot.slane %v327, %v331
    %v334 = vadd.f32 %v319, %v332
    %v335 = vadd.f32 %v326, %v332
    %v336 = vxor.u32 %v334, 2147483648
    %v337 = vxor.u32 %v335, 2147483648
    %v338 = vmul.f32 %v336, 1.442695
    %v339 = vpow.pop %v338
    %v340 = vmul.f32 %v337, 1.442695
    %v341 = vpow.pop %v340
    %v342 = vadd.f32 %v339, 1.0
    %v343 = vadd.f32 %v341, 1.0
    %v344 = vrcp.pop %v342
    %v345 = vmul.f32 1.0, %v344
    %v346 = vrcp.pop %v343
    %v347 = vmul.f32 1.0, %v346
    %v348 = vlaneseq
    %v349 = vshrl.u32 %v348, 7
    %v350 = vsub.s32 0, %v349
    %v351 = vrot.slane %v345, %v350
    %353 = vbcast.lane.b32.xlu0 %v351, 256
    %v354 = vpop.permute.xlu0 %353
    %s356 = sor.u32 256, 8
    %357 = vbcast.lane.b32.xlu0 %v351, %s356
    %v358 = vpop.permute.xlu0 %357
    %s360 = sor.u32 256, 16
    %361 = vbcast.lane.b32.xlu0 %v351, %s360
    %v362 = vpop.permute.xlu0 %361
    %s364 = sor.u32 256, 24
    %365 = vbcast.lane.b32.xlu0 %v351, %s364
    %v366 = vpop.permute.xlu0 %365
    %s368 = sor.u32 256, 32
    %369 = vbcast.lane.b32.xlu0 %v351, %s368
    %v370 = vpop.permute.xlu0 %369
    %s372 = sor.u32 256, 40
    %373 = vbcast.lane.b32.xlu0 %v351, %s372
    %v374 = vpop.permute.xlu0 %373
    %s376 = sor.u32 256, 48
    %377 = vbcast.lane.b32.xlu0 %v351, %s376
    %v378 = vpop.permute.xlu0 %377
    %s380 = sor.u32 256, 56
    %381 = vbcast.lane.b32.xlu0 %v351, %s380
    %v382 = vpop.permute.xlu0 %381
    %v383 = vlaneseq
    %v384 = vshrl.u32 %v383, 7
    %v385 = vsub.s32 0, %v384
    %v386 = vrot.slane %v347, %v385
    %388 = vbcast.lane.b32.xlu0 %v386, 256
    %v389 = vpop.permute.xlu0 %388
    %s391 = sor.u32 256, 8
    %392 = vbcast.lane.b32.xlu0 %v386, %s391
    %v393 = vpop.permute.xlu0 %392
    %s395 = sor.u32 256, 16
    %396 = vbcast.lane.b32.xlu0 %v386, %s395
    %v397 = vpop.permute.xlu0 %396
    %s399 = sor.u32 256, 24
    %400 = vbcast.lane.b32.xlu0 %v386, %s399
    %v401 = vpop.permute.xlu0 %400
    %s403 = sor.u32 256, 32
    %404 = vbcast.lane.b32.xlu0 %v386, %s403
    %v405 = vpop.permute.xlu0 %404
    %s407 = sor.u32 256, 40
    %408 = vbcast.lane.b32.xlu0 %v386, %s407
    %v409 = vpop.permute.xlu0 %408
    %s411 = sor.u32 256, 48
    %412 = vbcast.lane.b32.xlu0 %v386, %s411
    %v413 = vpop.permute.xlu0 %412
    %s415 = sor.u32 256, 56
    %416 = vbcast.lane.b32.xlu0 %v386, %s415
    %v417 = vpop.permute.xlu0 %416
    %v418 = vmul.f32 %v77, %v354
    %v419 = vmul.f32 %v78, %v354
    %v420 = vmul.f32 %v79, %v358
    %v421 = vmul.f32 %v80, %v358
    %v422 = vmul.f32 %v81, %v362
    %v423 = vmul.f32 %v82, %v362
    %v424 = vmul.f32 %v83, %v366
    %v425 = vmul.f32 %v84, %v366
    %v426 = vmul.f32 %v85, %v370
    %v427 = vmul.f32 %v86, %v370
    %v428 = vmul.f32 %v87, %v374
    %v429 = vmul.f32 %v88, %v374
    %v430 = vmul.f32 %v89, %v378
    %v431 = vmul.f32 %v90, %v378
    %v432 = vmul.f32 %v91, %v382
    %v433 = vmul.f32 %v92, %v382
    %v434 = vmul.f32 %v93, %v389
    %v435 = vmul.f32 %v94, %v389
    %v436 = vmul.f32 %v95, %v393
    %v437 = vmul.f32 %v96, %v393
    %v438 = vmul.f32 %v97, %v397
    %v439 = vmul.f32 %v98, %v397
    %v440 = vmul.f32 %v99, %v401
    %v441 = vmul.f32 %v100, %v401
    %v442 = vmul.f32 %v101, %v405
    %v443 = vmul.f32 %v102, %v405
    %v444 = vmul.f32 %v103, %v409
    %v445 = vmul.f32 %v104, %v409
    %v446 = vmul.f32 %v105, %v413
    %v447 = vmul.f32 %v106, %v413
    %v448 = vmul.f32 %v107, %v417
    %v449 = vmul.f32 %v108, %v417
    %v450 = vmax.f32 %v418, %v420
    %v451 = vmax.f32 %v450, %v422
    %v452 = vmax.f32 %v451, %v424
    %v453 = vmax.f32 %v452, %v426
    %v454 = vmax.f32 %v453, %v428
    %v455 = vmax.f32 %v454, %v430
    %v456 = vmax.f32 %v455, %v432
    %v457 = vrot.slane %v456, 4
    %v458 = vmax.f32 %v456, %v457
    %v459 = vrot.slane %v458, 2
    %v460 = vmax.f32 %v458, %v459
    %v461 = vrot.slane %v460, 1
    %v462 = vmax.f32 %v460, %v461
    %v463 = vmax.f32 %v419, %v421
    %v464 = vmax.f32 %v463, %v423
    %v465 = vmax.f32 %v464, %v425
    %v466 = vmax.f32 %v465, %v427
    %v467 = vmax.f32 %v466, %v429
    %v468 = vmax.f32 %v467, %v431
    %v469 = vmax.f32 %v468, %v433
    %v470 = vrot.slane %v469, 4
    %v471 = vmax.f32 %v469, %v470
    %v472 = vrot.slane %v471, 2
    %v473 = vmax.f32 %v471, %v472
    %v474 = vrot.slane %v473, 1
    %v475 = vmax.f32 %v473, %v474
    %v476 = vmax.f32 %v434, %v436
    %v477 = vmax.f32 %v476, %v438
    %v478 = vmax.f32 %v477, %v440
    %v479 = vmax.f32 %v478, %v442
    %v480 = vmax.f32 %v479, %v444
    %v481 = vmax.f32 %v480, %v446
    %v482 = vmax.f32 %v481, %v448
    %v483 = vrot.slane %v482, 4
    %v484 = vmax.f32 %v482, %v483
    %v485 = vrot.slane %v484, 2
    %v486 = vmax.f32 %v484, %v485
    %v487 = vrot.slane %v486, 1
    %v488 = vmax.f32 %v486, %v487
    %v489 = vmax.f32 %v435, %v437
    %v490 = vmax.f32 %v489, %v439
    %v491 = vmax.f32 %v490, %v441
    %v492 = vmax.f32 %v491, %v443
    %v493 = vmax.f32 %v492, %v445
    %v494 = vmax.f32 %v493, %v447
    %v495 = vmax.f32 %v494, %v449
    %v496 = vrot.slane %v495, 4
    %v497 = vmax.f32 %v495, %v496
    %v498 = vrot.slane %v497, 2
    %v499 = vmax.f32 %v497, %v498
    %v500 = vrot.slane %v499, 1
    %v501 = vmax.f32 %v499, %v500
    %v502 = vadd.f32 %v418, %v420
    %v503 = vadd.f32 %v502, %v422
    %v504 = vadd.f32 %v503, %v424
    %v505 = vadd.f32 %v504, %v426
    %v506 = vadd.f32 %v505, %v428
    %v507 = vadd.f32 %v506, %v430
    %v508 = vadd.f32 %v507, %v432
    %v509 = vrot.slane %v508, 4
    %v510 = vadd.f32 %v508, %v509
    %v511 = vrot.slane %v510, 2
    %v512 = vadd.f32 %v510, %v511
    %v513 = vrot.slane %v512, 1
    %v514 = vadd.f32 %v512, %v513
    %v515 = vadd.f32 %v419, %v421
    %v516 = vadd.f32 %v515, %v423
    %v517 = vadd.f32 %v516, %v425
    %v518 = vadd.f32 %v517, %v427
    %v519 = vadd.f32 %v518, %v429
    %v520 = vadd.f32 %v519, %v431
    %v521 = vadd.f32 %v520, %v433
    %v522 = vrot.slane %v521, 4
    %v523 = vadd.f32 %v521, %v522
    %v524 = vrot.slane %v523, 2
    %v525 = vadd.f32 %v523, %v524
    %v526 = vrot.slane %v525, 1
    %v527 = vadd.f32 %v525, %v526
    %v528 = vadd.f32 %v434, %v436
    %v529 = vadd.f32 %v528, %v438
    %v530 = vadd.f32 %v529, %v440
    %v531 = vadd.f32 %v530, %v442
    %v532 = vadd.f32 %v531, %v444
    %v533 = vadd.f32 %v532, %v446
    %v534 = vadd.f32 %v533, %v448
    %v535 = vrot.slane %v534, 4
    %v536 = vadd.f32 %v534, %v535
    %v537 = vrot.slane %v536, 2
    %v538 = vadd.f32 %v536, %v537
    %v539 = vrot.slane %v538, 1
    %v540 = vadd.f32 %v538, %v539
    %v541 = vadd.f32 %v435, %v437
    %v542 = vadd.f32 %v541, %v439
    %v543 = vadd.f32 %v542, %v441
    %v544 = vadd.f32 %v543, %v443
    %v545 = vadd.f32 %v544, %v445
    %v546 = vadd.f32 %v545, %v447
    %v547 = vadd.f32 %v546, %v449
    %v548 = vrot.slane %v547, 4
    %v549 = vadd.f32 %v547, %v548
    %v550 = vrot.slane %v549, 2
    %v551 = vadd.f32 %v549, %v550
    %v552 = vrot.slane %v551, 1
    %v553 = vadd.f32 %v551, %v552
    %v554 = vrcp.pop 64.0
    %v555 = vmul.f32 %v514, %v554
    %v556 = vmul.f32 %v527, %v554
    %v557 = vmul.f32 %v540, %v554
    %v558 = vmul.f32 %v553, %v554
    %v563 = vsel %vm268, %v488, %v462
    %v564 = vsel %vm268, %v501, %v475
    %565 = vrot.lane.b32.xlu0 %v563, 51
    %v566 = vpop.permute.xlu0 %565
    %567 = vrot.lane.b32.xlu0 %v564, 51
    %v568 = vpop.permute.xlu0 %567
    %vm569 = vcmask 416768
    %v570 = vsel %vm569, %v566, %v568
    %v574 = vsel %vm569, 0.0, %v566
    %v575 = vsel %vm569, %v568, 0.0
    %v580 = vsel %vm268, %v557, %v555
    %v581 = vsel %vm268, %v558, %v556
    %582 = vrot.lane.b32.xlu0 %v580, 51
    %v583 = vpop.permute.xlu0 %582
    %584 = vrot.lane.b32.xlu0 %v581, 51
    %v585 = vpop.permute.xlu0 %584
    %v586 = vsel %vm569, %v583, %v585
    %v590 = vsel %vm569, 0.0, %v583
    %v591 = vsel %vm569, %v585, 0.0
    %v592 = vld [vmem:[%s5] sm:$0x7f]
    %v593 = vld [vmem:[%s5 + $0x8] sm:$0x7f]
    %s594 = sld [smem:[#allocation9]]
    %v595 = vstv %s594
    %v596 = vmul.f32 %v595, %v574
    %v597 = vmul.f32 %v595, %v570
    %s598 = sld [smem:[#allocation9 + $0x31]]
    %v599 = vstv %s598
    %v600 = vmul.f32 %v599, %v590
    %v601 = vmul.f32 %v599, %v586
    %v602 = vadd.f32 %v596, %v600
    %v603 = vadd.f32 %v597, %v601
    %v604 = vlaneseq
    %v605 = vshrl.u32 %v604, 7
    %v606 = vsub.s32 0, %v605
    %v607 = vrot.slane %v592, %v606
    %v608 = vlaneseq
    %v609 = vshrl.u32 %v608, 7
    %v610 = vsub.s32 0, %v609
    %v611 = vrot.slane %v593, %v610
    %v612 = vmul.f32 %v607, %v602
    %v613 = vmul.f32 %v611, %v603
    %v614 = vadd.f32 %v612, 0.0
    %v615 = vadd.f32 %v613, 0.0
    %s616 = sld [smem:[#allocation9 + $0x1]]
    %v617 = vstv %s616
    %v618 = vmul.f32 %v617, %v574
    %v619 = vmul.f32 %v617, %v570
    %v620 = vmul.f32 %v617, %v575
    %s621 = sld [smem:[#allocation9 + $0x32]]
    %v622 = vstv %s621
    %v623 = vmul.f32 %v622, %v590
    %v624 = vmul.f32 %v622, %v586
    %v625 = vmul.f32 %v622, %v591
    %v626 = vadd.f32 %v618, %v623
    %v627 = vadd.f32 %v619, %v624
    %v628 = vadd.f32 %v620, %v625
    %v629 = vlaneseq
    %v630 = vshrl.u32 %v629, 7
    %v631 = vsub.s32 1, %v630
    %v632 = vrot.slane %v592, %v631
    %v633 = vlaneseq
    %v634 = vshrl.u32 %v633, 7
    %v635 = vsub.s32 1, %v634
    %v636 = vrot.slane %v593, %v635
    %640 = vrot.lane.b32.xlu0 %v626, 127
    %v641 = vpop.permute.xlu0 %640
    %642 = vrot.lane.b32.xlu0 %v627, 127
    %v643 = vpop.permute.xlu0 %642
    %644 = vrot.lane.b32.xlu0 %v628, 127
    %v645 = vpop.permute.xlu0 %644
    %vm646 = vcmask 1039360
    %v647 = vsel %vm646, %v641, %v643
    %v648 = vsel %vm646, %v643, %v645
    %v651 = vmul.f32 %v632, %v647
    %v652 = vmul.f32 %v636, %v648
    %v653 = vadd.f32 %v614, %v651
    %v654 = vadd.f32 %v615, %v652
    %s655 = sld [smem:[#allocation9 + $0x2]]
    %v656 = vstv %s655
    %v657 = vmul.f32 %v656, %v574
    %v658 = vmul.f32 %v656, %v570
    %v659 = vmul.f32 %v656, %v575
    %s660 = sld [smem:[#allocation9 + $0x33]]
    %v661 = vstv %s660
    %v662 = vmul.f32 %v661, %v590
    %v663 = vmul.f32 %v661, %v586
    %v664 = vmul.f32 %v661, %v591
    %v665 = vadd.f32 %v657, %v662
    %v666 = vadd.f32 %v658, %v663
    %v667 = vadd.f32 %v659, %v664
    %v668 = vlaneseq
    %v669 = vshrl.u32 %v668, 7
    %v670 = vsub.s32 2, %v669
    %v671 = vrot.slane %v592, %v670
    %v672 = vlaneseq
    %v673 = vshrl.u32 %v672, 7
    %v674 = vsub.s32 2, %v673
    %v675 = vrot.slane %v593, %v674
    %679 = vrot.lane.b32.xlu0 %v665, 126
    %v680 = vpop.permute.xlu0 %679
    %681 = vrot.lane.b32.xlu0 %v666, 126
    %v682 = vpop.permute.xlu0 %681
    %683 = vrot.lane.b32.xlu0 %v667, 126
    %v684 = vpop.permute.xlu0 %683
    %vm685 = vcmask 1031168
    %v686 = vsel %vm685, %v680, %v682
    %v687 = vsel %vm685, %v682, %v684
    %v690 = vmul.f32 %v671, %v686
    %v691 = vmul.f32 %v675, %v687
    %v692 = vadd.f32 %v653, %v690
    %v693 = vadd.f32 %v654, %v691
    %s694 = sld [smem:[#allocation9 + $0x3]]
    %v695 = vstv %s694
    %v696 = vmul.f32 %v695, %v574
    %v697 = vmul.f32 %v695, %v570
    %v698 = vmul.f32 %v695, %v575
    %s699 = sld [smem:[#allocation9 + $0x34]]
    %v700 = vstv %s699
    %v701 = vmul.f32 %v700, %v590
    %v702 = vmul.f32 %v700, %v586
    %v703 = vmul.f32 %v700, %v591
    %v704 = vadd.f32 %v696, %v701
    %v705 = vadd.f32 %v697, %v702
    %v706 = vadd.f32 %v698, %v703
    %v707 = vlaneseq
    %v708 = vshrl.u32 %v707, 7
    %v709 = vsub.s32 3, %v708
    %v710 = vrot.slane %v592, %v709
    %v711 = vlaneseq
    %v712 = vshrl.u32 %v711, 7
    %v713 = vsub.s32 3, %v712
    %v714 = vrot.slane %v593, %v713
    %718 = vrot.lane.b32.xlu0 %v704, 125
    %v719 = vpop.permute.xlu0 %718
    %720 = vrot.lane.b32.xlu0 %v705, 125
    %v721 = vpop.permute.xlu0 %720
    %722 = vrot.lane.b32.xlu0 %v706, 125
    %v723 = vpop.permute.xlu0 %722
    %vm724 = vcmask 1022976
    %v725 = vsel %vm724, %v719, %v721
    %v726 = vsel %vm724, %v721, %v723
    %v729 = vmul.f32 %v710, %v725
    %v730 = vmul.f32 %v714, %v726
    %v731 = vadd.f32 %v692, %v729
    %v732 = vadd.f32 %v693, %v730
    %s733 = sld [smem:[#allocation9 + $0x4]]
    %v734 = vstv %s733
    %v735 = vmul.f32 %v734, %v574
    %v736 = vmul.f32 %v734, %v570
    %v737 = vmul.f32 %v734, %v575
    %s738 = sld [smem:[#allocation9 + $0x35]]
    %v739 = vstv %s738
    %v740 = vmul.f32 %v739, %v590
    %v741 = vmul.f32 %v739, %v586
    %v742 = vmul.f32 %v739, %v591
    %v743 = vadd.f32 %v735, %v740
    %v744 = vadd.f32 %v736, %v741
    %v745 = vadd.f32 %v737, %v742
    %v746 = vlaneseq
    %v747 = vshrl.u32 %v746, 7
    %v748 = vsub.s32 4, %v747
    %v749 = vrot.slane %v592, %v748
    %v750 = vlaneseq
    %v751 = vshrl.u32 %v750, 7
    %v752 = vsub.s32 4, %v751
    %v753 = vrot.slane %v593, %v752
    %757 = vrot.lane.b32.xlu0 %v743, 124
    %v758 = vpop.permute.xlu0 %757
    %759 = vrot.lane.b32.xlu0 %v744, 124
    %v760 = vpop.permute.xlu0 %759
    %761 = vrot.lane.b32.xlu0 %v745, 124
    %v762 = vpop.permute.xlu0 %761
    %vm763 = vcmask 1014784
    %v764 = vsel %vm763, %v758, %v760
    %v765 = vsel %vm763, %v760, %v762
    %v768 = vmul.f32 %v749, %v764
    %v769 = vmul.f32 %v753, %v765
    %v770 = vadd.f32 %v731, %v768
    %v771 = vadd.f32 %v732, %v769
    %s772 = sld [smem:[#allocation9 + $0x5]]
    %v773 = vstv %s772
    %v774 = vmul.f32 %v773, %v574
    %v775 = vmul.f32 %v773, %v570
    %v776 = vmul.f32 %v773, %v575
    %s777 = sld [smem:[#allocation9 + $0x36]]
    %v778 = vstv %s777
    %v779 = vmul.f32 %v778, %v590
    %v780 = vmul.f32 %v778, %v586
    %v781 = vmul.f32 %v778, %v591
    %v782 = vadd.f32 %v774, %v779
    %v783 = vadd.f32 %v775, %v780
    %v784 = vadd.f32 %v776, %v781
    %v785 = vlaneseq
    %v786 = vshrl.u32 %v785, 7
    %v787 = vsub.s32 5, %v786
    %v788 = vrot.slane %v592, %v787
    %v789 = vlaneseq
    %v790 = vshrl.u32 %v789, 7
    %v791 = vsub.s32 5, %v790
    %v792 = vrot.slane %v593, %v791
    %796 = vrot.lane.b32.xlu0 %v782, 123
    %v797 = vpop.permute.xlu0 %796
    %798 = vrot.lane.b32.xlu0 %v783, 123
    %v799 = vpop.permute.xlu0 %798
    %800 = vrot.lane.b32.xlu0 %v784, 123
    %v801 = vpop.permute.xlu0 %800
    %vm802 = vcmask 1006592
    %v803 = vsel %vm802, %v797, %v799
    %v804 = vsel %vm802, %v799, %v801
    %v807 = vmul.f32 %v788, %v803
    %v808 = vmul.f32 %v792, %v804
    %v809 = vadd.f32 %v770, %v807
    %v810 = vadd.f32 %v771, %v808
    %s811 = sld [smem:[#allocation9 + $0x6]]
    %v812 = vstv %s811
    %v813 = vmul.f32 %v812, %v574
    %v814 = vmul.f32 %v812, %v570
    %v815 = vmul.f32 %v812, %v575
    %s816 = sld [smem:[#allocation9 + $0x37]]
    %v817 = vstv %s816
    %v818 = vmul.f32 %v817, %v590
    %v819 = vmul.f32 %v817, %v586
    %v820 = vmul.f32 %v817, %v591
    %v821 = vadd.f32 %v813, %v818
    %v822 = vadd.f32 %v814, %v819
    %v823 = vadd.f32 %v815, %v820
    %v824 = vlaneseq
    %v825 = vshrl.u32 %v824, 7
    %v826 = vsub.s32 6, %v825
    %v827 = vrot.slane %v592, %v826
    %v828 = vlaneseq
    %v829 = vshrl.u32 %v828, 7
    %v830 = vsub.s32 6, %v829
    %v831 = vrot.slane %v593, %v830
    %835 = vrot.lane.b32.xlu0 %v821, 122
    %v836 = vpop.permute.xlu0 %835
    %837 = vrot.lane.b32.xlu0 %v822, 122
    %v838 = vpop.permute.xlu0 %837
    %839 = vrot.lane.b32.xlu0 %v823, 122
    %v840 = vpop.permute.xlu0 %839
    %vm841 = vcmask 998400
    %v842 = vsel %vm841, %v836, %v838
    %v843 = vsel %vm841, %v838, %v840
    %v846 = vmul.f32 %v827, %v842
    %v847 = vmul.f32 %v831, %v843
    %v848 = vadd.f32 %v809, %v846
    %v849 = vadd.f32 %v810, %v847
    %s850 = sld [smem:[#allocation9 + $0x7]]
    %v851 = vstv %s850
    %v852 = vmul.f32 %v851, %v574
    %v853 = vmul.f32 %v851, %v570
    %v854 = vmul.f32 %v851, %v575
    %s855 = sld [smem:[#allocation9 + $0x38]]
    %v856 = vstv %s855
    %v857 = vmul.f32 %v856, %v590
    %v858 = vmul.f32 %v856, %v586
    %v859 = vmul.f32 %v856, %v591
    %v860 = vadd.f32 %v852, %v857
    %v861 = vadd.f32 %v853, %v858
    %v862 = vadd.f32 %v854, %v859
    %866 = vrot.lane.b32.xlu0 %v860, 112
    %v867 = vpop.permute.xlu0 %866
    %868 = vrot.lane.b32.xlu0 %v861, 112
    %v869 = vpop.permute.xlu0 %868
    %870 = vrot.lane.b32.xlu0 %v862, 112
    %v871 = vpop.permute.xlu0 %870
    %vm872 = vcmask 916480
    %v873 = vsel %vm872, %v867, %v869
    %v874 = vsel %vm872, %v869, %v871
    %v877 = vmul.f32 %v607, %v873
    %v878 = vmul.f32 %v611, %v874
    %v879 = vadd.f32 %v877, 0.0
    %v880 = vadd.f32 %v878, 0.0
    %s881 = sld [smem:[#allocation9 + $0x8]]
    %v882 = vstv %s881
    %v883 = vmul.f32 %v882, %v574
    %v884 = vmul.f32 %v882, %v570
    %v885 = vmul.f32 %v882, %v575
    %s886 = sld [smem:[#allocation9 + $0x39]]
    %v887 = vstv %s886
    %v888 = vmul.f32 %v887, %v590
    %v889 = vmul.f32 %v887, %v586
    %v890 = vmul.f32 %v887, %v591
    %v891 = vadd.f32 %v883, %v888
    %v892 = vadd.f32 %v884, %v889
    %v893 = vadd.f32 %v885, %v890
    %897 = vrot.lane.b32.xlu0 %v891, 111
    %v898 = vpop.permute.xlu0 %897
    %899 = vrot.lane.b32.xlu0 %v892, 111
    %v900 = vpop.permute.xlu0 %899
    %901 = vrot.lane.b32.xlu0 %v893, 111
    %v902 = vpop.permute.xlu0 %901
    %vm903 = vcmask 908288
    %v904 = vsel %vm903, %v898, %v900
    %v905 = vsel %vm903, %v900, %v902
    %v908 = vmul.f32 %v632, %v904
    %v909 = vmul.f32 %v636, %v905
    %v910 = vadd.f32 %v879, %v908
    %v911 = vadd.f32 %v880, %v909
    %s912 = sld [smem:[#allocation9 + $0x9]]
    %v913 = vstv %s912
    %v914 = vmul.f32 %v913, %v574
    %v915 = vmul.f32 %v913, %v570
    %v916 = vmul.f32 %v913, %v575
    %s917 = sld [smem:[#allocation9 + $0x3a]]
    %v918 = vstv %s917
    %v919 = vmul.f32 %v918, %v590
    %v920 = vmul.f32 %v918, %v586
    %v921 = vmul.f32 %v918, %v591
    %v922 = vadd.f32 %v914, %v919
    %v923 = vadd.f32 %v915, %v920
    %v924 = vadd.f32 %v916, %v921
    %928 = vrot.lane.b32.xlu0 %v922, 110
    %v929 = vpop.permute.xlu0 %928
    %930 = vrot.lane.b32.xlu0 %v923, 110
    %v931 = vpop.permute.xlu0 %930
    %932 = vrot.lane.b32.xlu0 %v924, 110
    %v933 = vpop.permute.xlu0 %932
    %vm934 = vcmask 900096
    %v935 = vsel %vm934, %v929, %v931
    %v936 = vsel %vm934, %v931, %v933
    %v939 = vmul.f32 %v671, %v935
    %v940 = vmul.f32 %v675, %v936
    %v941 = vadd.f32 %v910, %v939
    %v942 = vadd.f32 %v911, %v940
    %s943 = sld [smem:[#allocation9 + $0xa]]
    %v944 = vstv %s943
    %v945 = vmul.f32 %v944, %v574
    %v946 = vmul.f32 %v944, %v570
    %v947 = vmul.f32 %v944, %v575
    %s948 = sld [smem:[#allocation9 + $0x3b]]
    %v949 = vstv %s948
    %v950 = vmul.f32 %v949, %v590
    %v951 = vmul.f32 %v949, %v586
    %v952 = vmul.f32 %v949, %v591
    %v953 = vadd.f32 %v945, %v950
    %v954 = vadd.f32 %v946, %v951
    %v955 = vadd.f32 %v947, %v952
    %959 = vrot.lane.b32.xlu0 %v953, 109
    %v960 = vpop.permute.xlu0 %959
    %961 = vrot.lane.b32.xlu0 %v954, 109
    %v962 = vpop.permute.xlu0 %961
    %963 = vrot.lane.b32.xlu0 %v955, 109
    %v964 = vpop.permute.xlu0 %963
    %vm965 = vcmask 891904
    %v966 = vsel %vm965, %v960, %v962
    %v967 = vsel %vm965, %v962, %v964
    %v970 = vmul.f32 %v710, %v966
    %v971 = vmul.f32 %v714, %v967
    %v972 = vadd.f32 %v941, %v970
    %v973 = vadd.f32 %v942, %v971
    %s974 = sld [smem:[#allocation9 + $0xb]]
    %v975 = vstv %s974
    %v976 = vmul.f32 %v975, %v574
    %v977 = vmul.f32 %v975, %v570
    %v978 = vmul.f32 %v975, %v575
    %s979 = sld [smem:[#allocation9 + $0x3c]]
    %v980 = vstv %s979
    %v981 = vmul.f32 %v980, %v590
    %v982 = vmul.f32 %v980, %v586
    %v983 = vmul.f32 %v980, %v591
    %v984 = vadd.f32 %v976, %v981
    %v985 = vadd.f32 %v977, %v982
    %v986 = vadd.f32 %v978, %v983
    %990 = vrot.lane.b32.xlu0 %v984, 108
    %v991 = vpop.permute.xlu0 %990
    %992 = vrot.lane.b32.xlu0 %v985, 108
    %v993 = vpop.permute.xlu0 %992
    %994 = vrot.lane.b32.xlu0 %v986, 108
    %v995 = vpop.permute.xlu0 %994
    %vm996 = vcmask 883712
    %v997 = vsel %vm996, %v991, %v993
    %v998 = vsel %vm996, %v993, %v995
    %v1001 = vmul.f32 %v749, %v997
    %v1002 = vmul.f32 %v753, %v998
    %v1003 = vadd.f32 %v972, %v1001
    %v1004 = vadd.f32 %v973, %v1002
    %s1005 = sld [smem:[#allocation9 + $0xc]]
    %v1006 = vstv %s1005
    %v1007 = vmul.f32 %v1006, %v574
    %v1008 = vmul.f32 %v1006, %v570
    %v1009 = vmul.f32 %v1006, %v575
    %s1010 = sld [smem:[#allocation9 + $0x3d]]
    %v1011 = vstv %s1010
    %v1012 = vmul.f32 %v1011, %v590
    %v1013 = vmul.f32 %v1011, %v586
    %v1014 = vmul.f32 %v1011, %v591
    %v1015 = vadd.f32 %v1007, %v1012
    %v1016 = vadd.f32 %v1008, %v1013
    %v1017 = vadd.f32 %v1009, %v1014
    %1021 = vrot.lane.b32.xlu0 %v1015, 107
    %v1022 = vpop.permute.xlu0 %1021
    %1023 = vrot.lane.b32.xlu0 %v1016, 107
    %v1024 = vpop.permute.xlu0 %1023
    %1025 = vrot.lane.b32.xlu0 %v1017, 107
    %v1026 = vpop.permute.xlu0 %1025
    %vm1027 = vcmask 875520
    %v1028 = vsel %vm1027, %v1022, %v1024
    %v1029 = vsel %vm1027, %v1024, %v1026
    %v1032 = vmul.f32 %v788, %v1028
    %v1033 = vmul.f32 %v792, %v1029
    %v1034 = vadd.f32 %v1003, %v1032
    %v1035 = vadd.f32 %v1004, %v1033
    %s1036 = sld [smem:[#allocation9 + $0xd]]
    %v1037 = vstv %s1036
    %v1038 = vmul.f32 %v1037, %v574
    %v1039 = vmul.f32 %v1037, %v570
    %v1040 = vmul.f32 %v1037, %v575
    %s1041 = sld [smem:[#allocation9 + $0x3e]]
    %v1042 = vstv %s1041
    %v1043 = vmul.f32 %v1042, %v590
    %v1044 = vmul.f32 %v1042, %v586
    %v1045 = vmul.f32 %v1042, %v591
    %v1046 = vadd.f32 %v1038, %v1043
    %v1047 = vadd.f32 %v1039, %v1044
    %v1048 = vadd.f32 %v1040, %v1045
    %1052 = vrot.lane.b32.xlu0 %v1046, 106
    %v1053 = vpop.permute.xlu0 %1052
    %1054 = vrot.lane.b32.xlu0 %v1047, 106
    %v1055 = vpop.permute.xlu0 %1054
    %1056 = vrot.lane.b32.xlu0 %v1048, 106
    %v1057 = vpop.permute.xlu0 %1056
    %vm1058 = vcmask 867328
    %v1059 = vsel %vm1058, %v1053, %v1055
    %v1060 = vsel %vm1058, %v1055, %v1057
    %v1063 = vmul.f32 %v827, %v1059
    %v1064 = vmul.f32 %v831, %v1060
    %v1065 = vadd.f32 %v1034, %v1063
    %v1066 = vadd.f32 %v1035, %v1064
    %s1067 = sld [smem:[#allocation9 + $0xe]]
    %v1068 = vstv %s1067
    %v1069 = vmul.f32 %v1068, %v574
    %v1070 = vmul.f32 %v1068, %v570
    %v1071 = vmul.f32 %v1068, %v575
    %s1072 = sld [smem:[#allocation9 + $0x3f]]
    %v1073 = vstv %s1072
    %v1074 = vmul.f32 %v1073, %v590
    %v1075 = vmul.f32 %v1073, %v586
    %v1076 = vmul.f32 %v1073, %v591
    %v1077 = vadd.f32 %v1069, %v1074
    %v1078 = vadd.f32 %v1070, %v1075
    %v1079 = vadd.f32 %v1071, %v1076
    %1083 = vrot.lane.b32.xlu0 %v1077, 96
    %v1084 = vpop.permute.xlu0 %1083
    %1085 = vrot.lane.b32.xlu0 %v1078, 96
    %v1086 = vpop.permute.xlu0 %1085
    %1087 = vrot.lane.b32.xlu0 %v1079, 96
    %v1088 = vpop.permute.xlu0 %1087
    %vm1089 = vcmask 785408
    %v1090 = vsel %vm1089, %v1084, %v1086
    %v1091 = vsel %vm1089, %v1086, %v1088
    %v1094 = vmul.f32 %v607, %v1090
    %v1095 = vmul.f32 %v611, %v1091
    %v1096 = vadd.f32 %v848, %v1094
    %v1097 = vadd.f32 %v849, %v1095
    %s1098 = sld [smem:[#allocation9 + $0xf]]
    %v1099 = vstv %s1098
    %v1100 = vmul.f32 %v1099, %v574
    %v1101 = vmul.f32 %v1099, %v570
    %v1102 = vmul.f32 %v1099, %v575
    %s1103 = sld [smem:[#allocation9 + $0x40]]
    %v1104 = vstv %s1103
    %v1105 = vmul.f32 %v1104, %v590
    %v1106 = vmul.f32 %v1104, %v586
    %v1107 = vmul.f32 %v1104, %v591
    %v1108 = vadd.f32 %v1100, %v1105
    %v1109 = vadd.f32 %v1101, %v1106
    %v1110 = vadd.f32 %v1102, %v1107
    %1114 = vrot.lane.b32.xlu0 %v1108, 95
    %v1115 = vpop.permute.xlu0 %1114
    %1116 = vrot.lane.b32.xlu0 %v1109, 95
    %v1117 = vpop.permute.xlu0 %1116
    %1118 = vrot.lane.b32.xlu0 %v1110, 95
    %v1119 = vpop.permute.xlu0 %1118
    %vm1120 = vcmask 777216
    %v1121 = vsel %vm1120, %v1115, %v1117
    %v1122 = vsel %vm1120, %v1117, %v1119
    %v1125 = vmul.f32 %v632, %v1121
    %v1126 = vmul.f32 %v636, %v1122
    %v1127 = vadd.f32 %v1096, %v1125
    %v1128 = vadd.f32 %v1097, %v1126
    %s1129 = sld [smem:[#allocation9 + $0x10]]
    %v1130 = vstv %s1129
    %v1131 = vmul.f32 %v1130, %v574
    %v1132 = vmul.f32 %v1130, %v570
    %v1133 = vmul.f32 %v1130, %v575
    %s1134 = sld [smem:[#allocation9 + $0x41]]
    %v1135 = vstv %s1134
    %v1136 = vmul.f32 %v1135, %v590
    %v1137 = vmul.f32 %v1135, %v586
    %v1138 = vmul.f32 %v1135, %v591
    %v1139 = vadd.f32 %v1131, %v1136
    %v1140 = vadd.f32 %v1132, %v1137
    %v1141 = vadd.f32 %v1133, %v1138
    %1145 = vrot.lane.b32.xlu0 %v1139, 94
    %v1146 = vpop.permute.xlu0 %1145
    %1147 = vrot.lane.b32.xlu0 %v1140, 94
    %v1148 = vpop.permute.xlu0 %1147
    %1149 = vrot.lane.b32.xlu0 %v1141, 94
    %v1150 = vpop.permute.xlu0 %1149
    %vm1151 = vcmask 769024
    %v1152 = vsel %vm1151, %v1146, %v1148
    %v1153 = vsel %vm1151, %v1148, %v1150
    %v1156 = vmul.f32 %v671, %v1152
    %v1157 = vmul.f32 %v675, %v1153
    %v1158 = vadd.f32 %v1127, %v1156
    %v1159 = vadd.f32 %v1128, %v1157
    %s1160 = sld [smem:[#allocation9 + $0x11]]
    %v1161 = vstv %s1160
    %v1162 = vmul.f32 %v1161, %v574
    %v1163 = vmul.f32 %v1161, %v570
    %v1164 = vmul.f32 %v1161, %v575
    %s1165 = sld [smem:[#allocation9 + $0x42]]
    %v1166 = vstv %s1165
    %v1167 = vmul.f32 %v1166, %v590
    %v1168 = vmul.f32 %v1166, %v586
    %v1169 = vmul.f32 %v1166, %v591
    %v1170 = vadd.f32 %v1162, %v1167
    %v1171 = vadd.f32 %v1163, %v1168
    %v1172 = vadd.f32 %v1164, %v1169
    %1176 = vrot.lane.b32.xlu0 %v1170, 93
    %v1177 = vpop.permute.xlu0 %1176
    %1178 = vrot.lane.b32.xlu0 %v1171, 93
    %v1179 = vpop.permute.xlu0 %1178
    %1180 = vrot.lane.b32.xlu0 %v1172, 93
    %v1181 = vpop.permute.xlu0 %1180
    %vm1182 = vcmask 760832
    %v1183 = vsel %vm1182, %v1177, %v1179
    %v1184 = vsel %vm1182, %v1179, %v1181
    %v1187 = vmul.f32 %v710, %v1183
    %v1188 = vmul.f32 %v714, %v1184
    %v1189 = vadd.f32 %v1158, %v1187
    %v1190 = vadd.f32 %v1159, %v1188
    %s1191 = sld [smem:[#allocation9 + $0x12]]
    %v1192 = vstv %s1191
    %v1193 = vmul.f32 %v1192, %v574
    %v1194 = vmul.f32 %v1192, %v570
    %v1195 = vmul.f32 %v1192, %v575
    %s1196 = sld [smem:[#allocation9 + $0x43]]
    %v1197 = vstv %s1196
    %v1198 = vmul.f32 %v1197, %v590
    %v1199 = vmul.f32 %v1197, %v586
    %v1200 = vmul.f32 %v1197, %v591
    %v1201 = vadd.f32 %v1193, %v1198
    %v1202 = vadd.f32 %v1194, %v1199
    %v1203 = vadd.f32 %v1195, %v1200
    %1207 = vrot.lane.b32.xlu0 %v1201, 92
    %v1208 = vpop.permute.xlu0 %1207
    %1209 = vrot.lane.b32.xlu0 %v1202, 92
    %v1210 = vpop.permute.xlu0 %1209
    %1211 = vrot.lane.b32.xlu0 %v1203, 92
    %v1212 = vpop.permute.xlu0 %1211
    %vm1213 = vcmask 752640
    %v1214 = vsel %vm1213, %v1208, %v1210
    %v1215 = vsel %vm1213, %v1210, %v1212
    %v1218 = vmul.f32 %v749, %v1214
    %v1219 = vmul.f32 %v753, %v1215
    %v1220 = vadd.f32 %v1189, %v1218
    %v1221 = vadd.f32 %v1190, %v1219
    %s1222 = sld [smem:[#allocation9 + $0x13]]
    %v1223 = vstv %s1222
    %v1224 = vmul.f32 %v1223, %v574
    %v1225 = vmul.f32 %v1223, %v570
    %v1226 = vmul.f32 %v1223, %v575
    %s1227 = sld [smem:[#allocation9 + $0x44]]
    %v1228 = vstv %s1227
    %v1229 = vmul.f32 %v1228, %v590
    %v1230 = vmul.f32 %v1228, %v586
    %v1231 = vmul.f32 %v1228, %v591
    %v1232 = vadd.f32 %v1224, %v1229
    %v1233 = vadd.f32 %v1225, %v1230
    %v1234 = vadd.f32 %v1226, %v1231
    %1238 = vrot.lane.b32.xlu0 %v1232, 91
    %v1239 = vpop.permute.xlu0 %1238
    %1240 = vrot.lane.b32.xlu0 %v1233, 91
    %v1241 = vpop.permute.xlu0 %1240
    %1242 = vrot.lane.b32.xlu0 %v1234, 91
    %v1243 = vpop.permute.xlu0 %1242
    %vm1244 = vcmask 744448
    %v1245 = vsel %vm1244, %v1239, %v1241
    %v1246 = vsel %vm1244, %v1241, %v1243
    %v1249 = vmul.f32 %v788, %v1245
    %v1250 = vmul.f32 %v792, %v1246
    %v1251 = vadd.f32 %v1220, %v1249
    %v1252 = vadd.f32 %v1221, %v1250
    %s1253 = sld [smem:[#allocation9 + $0x14]]
    %v1254 = vstv %s1253
    %v1255 = vmul.f32 %v1254, %v574
    %v1256 = vmul.f32 %v1254, %v570
    %v1257 = vmul.f32 %v1254, %v575
    %s1258 = sld [smem:[#allocation9 + $0x45]]
    %v1259 = vstv %s1258
    %v1260 = vmul.f32 %v1259, %v590
    %v1261 = vmul.f32 %v1259, %v586
    %v1262 = vmul.f32 %v1259, %v591
    %v1263 = vadd.f32 %v1255, %v1260
    %v1264 = vadd.f32 %v1256, %v1261
    %v1265 = vadd.f32 %v1257, %v1262
    %1269 = vrot.lane.b32.xlu0 %v1263, 90
    %v1270 = vpop.permute.xlu0 %1269
    %1271 = vrot.lane.b32.xlu0 %v1264, 90
    %v1272 = vpop.permute.xlu0 %1271
    %1273 = vrot.lane.b32.xlu0 %v1265, 90
    %v1274 = vpop.permute.xlu0 %1273
    %vm1275 = vcmask 736256
    %v1276 = vsel %vm1275, %v1270, %v1272
    %v1277 = vsel %vm1275, %v1272, %v1274
    %v1280 = vmul.f32 %v827, %v1276
    %v1281 = vmul.f32 %v831, %v1277
    %v1282 = vadd.f32 %v1251, %v1280
    %v1283 = vadd.f32 %v1252, %v1281
    %s1284 = sld [smem:[#allocation9 + $0x15]]
    %v1285 = vstv %s1284
    %v1286 = vmul.f32 %v1285, %v574
    %v1287 = vmul.f32 %v1285, %v570
    %v1288 = vmul.f32 %v1285, %v575
    %s1289 = sld [smem:[#allocation9 + $0x46]]
    %v1290 = vstv %s1289
    %v1291 = vmul.f32 %v1290, %v590
    %v1292 = vmul.f32 %v1290, %v586
    %v1293 = vmul.f32 %v1290, %v591
    %v1294 = vadd.f32 %v1286, %v1291
    %v1295 = vadd.f32 %v1287, %v1292
    %v1296 = vadd.f32 %v1288, %v1293
    %1300 = vrot.lane.b32.xlu0 %v1294, 80
    %v1301 = vpop.permute.xlu0 %1300
    %1302 = vrot.lane.b32.xlu0 %v1295, 80
    %v1303 = vpop.permute.xlu0 %1302
    %1304 = vrot.lane.b32.xlu0 %v1296, 80
    %v1305 = vpop.permute.xlu0 %1304
    %vm1306 = vcmask 654336
    %v1307 = vsel %vm1306, %v1301, %v1303
    %v1308 = vsel %vm1306, %v1303, %v1305
    %v1311 = vmul.f32 %v607, %v1307
    %v1312 = vmul.f32 %v611, %v1308
    %v1313 = vadd.f32 %v1065, %v1311
    %v1314 = vadd.f32 %v1066, %v1312
    %s1315 = sld [smem:[#allocation9 + $0x16]]
    %v1316 = vstv %s1315
    %v1317 = vmul.f32 %v1316, %v574
    %v1318 = vmul.f32 %v1316, %v570
    %v1319 = vmul.f32 %v1316, %v575
    %s1320 = sld [smem:[#allocation9 + $0x47]]
    %v1321 = vstv %s1320
    %v1322 = vmul.f32 %v1321, %v590
    %v1323 = vmul.f32 %v1321, %v586
    %v1324 = vmul.f32 %v1321, %v591
    %v1325 = vadd.f32 %v1317, %v1322
    %v1326 = vadd.f32 %v1318, %v1323
    %v1327 = vadd.f32 %v1319, %v1324
    %1331 = vrot.lane.b32.xlu0 %v1325, 79
    %v1332 = vpop.permute.xlu0 %1331
    %1333 = vrot.lane.b32.xlu0 %v1326, 79
    %v1334 = vpop.permute.xlu0 %1333
    %1335 = vrot.lane.b32.xlu0 %v1327, 79
    %v1336 = vpop.permute.xlu0 %1335
    %vm1337 = vcmask 646144
    %v1338 = vsel %vm1337, %v1332, %v1334
    %v1339 = vsel %vm1337, %v1334, %v1336
    %v1342 = vmul.f32 %v632, %v1338
    %v1343 = vmul.f32 %v636, %v1339
    %v1344 = vadd.f32 %v1313, %v1342
    %v1345 = vadd.f32 %v1314, %v1343
    %s1346 = sld [smem:[#allocation9 + $0x17]]
    %v1347 = vstv %s1346
    %v1348 = vmul.f32 %v1347, %v574
    %v1349 = vmul.f32 %v1347, %v570
    %v1350 = vmul.f32 %v1347, %v575
    %s1351 = sld [smem:[#allocation9 + $0x48]]
    %v1352 = vstv %s1351
    %v1353 = vmul.f32 %v1352, %v590
    %v1354 = vmul.f32 %v1352, %v586
    %v1355 = vmul.f32 %v1352, %v591
    %v1356 = vadd.f32 %v1348, %v1353
    %v1357 = vadd.f32 %v1349, %v1354
    %v1358 = vadd.f32 %v1350, %v1355
    %1362 = vrot.lane.b32.xlu0 %v1356, 78
    %v1363 = vpop.permute.xlu0 %1362
    %1364 = vrot.lane.b32.xlu0 %v1357, 78
    %v1365 = vpop.permute.xlu0 %1364
    %1366 = vrot.lane.b32.xlu0 %v1358, 78
    %v1367 = vpop.permute.xlu0 %1366
    %vm1368 = vcmask 637952
    %v1369 = vsel %vm1368, %v1363, %v1365
    %v1370 = vsel %vm1368, %v1365, %v1367
    %v1373 = vmul.f32 %v671, %v1369
    %v1374 = vmul.f32 %v675, %v1370
    %v1375 = vadd.f32 %v1344, %v1373
    %v1376 = vadd.f32 %v1345, %v1374
    %s1377 = sld [smem:[#allocation9 + $0x18]]
    %v1378 = vstv %s1377
    %v1379 = vmul.f32 %v1378, %v574
    %v1380 = vmul.f32 %v1378, %v570
    %v1381 = vmul.f32 %v1378, %v575
    %s1382 = sld [smem:[#allocation9 + $0x49]]
    %v1383 = vstv %s1382
    %v1384 = vmul.f32 %v1383, %v590
    %v1385 = vmul.f32 %v1383, %v586
    %v1386 = vmul.f32 %v1383, %v591
    %v1387 = vadd.f32 %v1379, %v1384
    %v1388 = vadd.f32 %v1380, %v1385
    %v1389 = vadd.f32 %v1381, %v1386
    %1393 = vrot.lane.b32.xlu0 %v1387, 77
    %v1394 = vpop.permute.xlu0 %1393
    %1395 = vrot.lane.b32.xlu0 %v1388, 77
    %v1396 = vpop.permute.xlu0 %1395
    %1397 = vrot.lane.b32.xlu0 %v1389, 77
    %v1398 = vpop.permute.xlu0 %1397
    %vm1399 = vcmask 629760
    %v1400 = vsel %vm1399, %v1394, %v1396
    %v1401 = vsel %vm1399, %v1396, %v1398
    %v1404 = vmul.f32 %v710, %v1400
    %v1405 = vmul.f32 %v714, %v1401
    %v1406 = vadd.f32 %v1375, %v1404
    %v1407 = vadd.f32 %v1376, %v1405
    %s1408 = sld [smem:[#allocation9 + $0x19]]
    %v1409 = vstv %s1408
    %v1410 = vmul.f32 %v1409, %v574
    %v1411 = vmul.f32 %v1409, %v570
    %v1412 = vmul.f32 %v1409, %v575
    %s1413 = sld [smem:[#allocation9 + $0x4a]]
    %v1414 = vstv %s1413
    %v1415 = vmul.f32 %v1414, %v590
    %v1416 = vmul.f32 %v1414, %v586
    %v1417 = vmul.f32 %v1414, %v591
    %v1418 = vadd.f32 %v1410, %v1415
    %v1419 = vadd.f32 %v1411, %v1416
    %v1420 = vadd.f32 %v1412, %v1417
    %1424 = vrot.lane.b32.xlu0 %v1418, 76
    %v1425 = vpop.permute.xlu0 %1424
    %1426 = vrot.lane.b32.xlu0 %v1419, 76
    %v1427 = vpop.permute.xlu0 %1426
    %1428 = vrot.lane.b32.xlu0 %v1420, 76
    %v1429 = vpop.permute.xlu0 %1428
    %vm1430 = vcmask 621568
    %v1431 = vsel %vm1430, %v1425, %v1427
    %v1432 = vsel %vm1430, %v1427, %v1429
    %v1435 = vmul.f32 %v749, %v1431
    %v1436 = vmul.f32 %v753, %v1432
    %v1437 = vadd.f32 %v1406, %v1435
    %v1438 = vadd.f32 %v1407, %v1436
    %s1439 = sld [smem:[#allocation9 + $0x1a]]
    %v1440 = vstv %s1439
    %v1441 = vmul.f32 %v1440, %v574
    %v1442 = vmul.f32 %v1440, %v570
    %v1443 = vmul.f32 %v1440, %v575
    %s1444 = sld [smem:[#allocation9 + $0x4b]]
    %v1445 = vstv %s1444
    %v1446 = vmul.f32 %v1445, %v590
    %v1447 = vmul.f32 %v1445, %v586
    %v1448 = vmul.f32 %v1445, %v591
    %v1449 = vadd.f32 %v1441, %v1446
    %v1450 = vadd.f32 %v1442, %v1447
    %v1451 = vadd.f32 %v1443, %v1448
    %1455 = vrot.lane.b32.xlu0 %v1449, 75
    %v1456 = vpop.permute.xlu0 %1455
    %1457 = vrot.lane.b32.xlu0 %v1450, 75
    %v1458 = vpop.permute.xlu0 %1457
    %1459 = vrot.lane.b32.xlu0 %v1451, 75
    %v1460 = vpop.permute.xlu0 %1459
    %vm1461 = vcmask 613376
    %v1462 = vsel %vm1461, %v1456, %v1458
    %v1463 = vsel %vm1461, %v1458, %v1460
    %v1466 = vmul.f32 %v788, %v1462
    %v1467 = vmul.f32 %v792, %v1463
    %v1468 = vadd.f32 %v1437, %v1466
    %v1469 = vadd.f32 %v1438, %v1467
    %s1470 = sld [smem:[#allocation9 + $0x1b]]
    %v1471 = vstv %s1470
    %v1472 = vmul.f32 %v1471, %v574
    %v1473 = vmul.f32 %v1471, %v570
    %v1474 = vmul.f32 %v1471, %v575
    %s1475 = sld [smem:[#allocation9 + $0x4c]]
    %v1476 = vstv %s1475
    %v1477 = vmul.f32 %v1476, %v590
    %v1478 = vmul.f32 %v1476, %v586
    %v1479 = vmul.f32 %v1476, %v591
    %v1480 = vadd.f32 %v1472, %v1477
    %v1481 = vadd.f32 %v1473, %v1478
    %v1482 = vadd.f32 %v1474, %v1479
    %1486 = vrot.lane.b32.xlu0 %v1480, 74
    %v1487 = vpop.permute.xlu0 %1486
    %1488 = vrot.lane.b32.xlu0 %v1481, 74
    %v1489 = vpop.permute.xlu0 %1488
    %1490 = vrot.lane.b32.xlu0 %v1482, 74
    %v1491 = vpop.permute.xlu0 %1490
    %vm1492 = vcmask 605184
    %v1493 = vsel %vm1492, %v1487, %v1489
    %v1494 = vsel %vm1492, %v1489, %v1491
    %v1497 = vmul.f32 %v827, %v1493
    %v1498 = vmul.f32 %v831, %v1494
    %v1499 = vadd.f32 %v1468, %v1497
    %v1500 = vadd.f32 %v1469, %v1498
    %s1501 = sld [smem:[#allocation9 + $0x1c]]
    %v1502 = vstv %s1501
    %v1503 = vmul.f32 %v1502, %v574
    %v1504 = vmul.f32 %v1502, %v570
    %v1505 = vmul.f32 %v1502, %v575
    %s1506 = sld [smem:[#allocation9 + $0x4d]]
    %v1507 = vstv %s1506
    %v1508 = vmul.f32 %v1507, %v590
    %v1509 = vmul.f32 %v1507, %v586
    %v1510 = vmul.f32 %v1507, %v591
    %v1511 = vadd.f32 %v1503, %v1508
    %v1512 = vadd.f32 %v1504, %v1509
    %v1513 = vadd.f32 %v1505, %v1510
    %1517 = vrot.lane.b32.xlu0 %v1511, 64
    %v1518 = vpop.permute.xlu0 %1517
    %1519 = vrot.lane.b32.xlu0 %v1512, 64
    %v1520 = vpop.permute.xlu0 %1519
    %1521 = vrot.lane.b32.xlu0 %v1513, 64
    %v1522 = vpop.permute.xlu0 %1521
    %vm1523 = vcmask 523264
    %v1524 = vsel %vm1523, %v1518, %v1520
    %v1525 = vsel %vm1523, %v1520, %v1522
    %v1528 = vmul.f32 %v607, %v1524
    %v1529 = vmul.f32 %v611, %v1525
    %v1530 = vadd.f32 %v1282, %v1528
    %v1531 = vadd.f32 %v1283, %v1529
    %s1532 = sld [smem:[#allocation9 + $0x1d]]
    %v1533 = vstv %s1532
    %v1534 = vmul.f32 %v1533, %v574
    %v1535 = vmul.f32 %v1533, %v570
    %v1536 = vmul.f32 %v1533, %v575
    %s1537 = sld [smem:[#allocation9 + $0x4e]]
    %v1538 = vstv %s1537
    %v1539 = vmul.f32 %v1538, %v590
    %v1540 = vmul.f32 %v1538, %v586
    %v1541 = vmul.f32 %v1538, %v591
    %v1542 = vadd.f32 %v1534, %v1539
    %v1543 = vadd.f32 %v1535, %v1540
    %v1544 = vadd.f32 %v1536, %v1541
    %1548 = vrot.lane.b32.xlu0 %v1542, 63
    %v1549 = vpop.permute.xlu0 %1548
    %1550 = vrot.lane.b32.xlu0 %v1543, 63
    %v1551 = vpop.permute.xlu0 %1550
    %1552 = vrot.lane.b32.xlu0 %v1544, 63
    %v1553 = vpop.permute.xlu0 %1552
    %vm1554 = vcmask 515072
    %v1555 = vsel %vm1554, %v1549, %v1551
    %v1556 = vsel %vm1554, %v1551, %v1553
    %v1559 = vmul.f32 %v632, %v1555
    %v1560 = vmul.f32 %v636, %v1556
    %v1561 = vadd.f32 %v1530, %v1559
    %v1562 = vadd.f32 %v1531, %v1560
    %s1563 = sld [smem:[#allocation9 + $0x1e]]
    %v1564 = vstv %s1563
    %v1565 = vmul.f32 %v1564, %v574
    %v1566 = vmul.f32 %v1564, %v570
    %v1567 = vmul.f32 %v1564, %v575
    %s1568 = sld [smem:[#allocation9 + $0x4f]]
    %v1569 = vstv %s1568
    %v1570 = vmul.f32 %v1569, %v590
    %v1571 = vmul.f32 %v1569, %v586
    %v1572 = vmul.f32 %v1569, %v591
    %v1573 = vadd.f32 %v1565, %v1570
    %v1574 = vadd.f32 %v1566, %v1571
    %v1575 = vadd.f32 %v1567, %v1572
    %1579 = vrot.lane.b32.xlu0 %v1573, 62
    %v1580 = vpop.permute.xlu0 %1579
    %1581 = vrot.lane.b32.xlu0 %v1574, 62
    %v1582 = vpop.permute.xlu0 %1581
    %1583 = vrot.lane.b32.xlu0 %v1575, 62
    %v1584 = vpop.permute.xlu0 %1583
    %vm1585 = vcmask 506880
    %v1586 = vsel %vm1585, %v1580, %v1582
    %v1587 = vsel %vm1585, %v1582, %v1584
    %v1590 = vmul.f32 %v671, %v1586
    %v1591 = vmul.f32 %v675, %v1587
    %v1592 = vadd.f32 %v1561, %v1590
    %v1593 = vadd.f32 %v1562, %v1591
    %s1594 = sld [smem:[#allocation9 + $0x1f]]
    %v1595 = vstv %s1594
    %v1596 = vmul.f32 %v1595, %v574
    %v1597 = vmul.f32 %v1595, %v570
    %v1598 = vmul.f32 %v1595, %v575
    %s1599 = sld [smem:[#allocation9 + $0x50]]
    %v1600 = vstv %s1599
    %v1601 = vmul.f32 %v1600, %v590
    %v1602 = vmul.f32 %v1600, %v586
    %v1603 = vmul.f32 %v1600, %v591
    %v1604 = vadd.f32 %v1596, %v1601
    %v1605 = vadd.f32 %v1597, %v1602
    %v1606 = vadd.f32 %v1598, %v1603
    %1610 = vrot.lane.b32.xlu0 %v1604, 61
    %v1611 = vpop.permute.xlu0 %1610
    %1612 = vrot.lane.b32.xlu0 %v1605, 61
    %v1613 = vpop.permute.xlu0 %1612
    %1614 = vrot.lane.b32.xlu0 %v1606, 61
    %v1615 = vpop.permute.xlu0 %1614
    %vm1616 = vcmask 498688
    %v1617 = vsel %vm1616, %v1611, %v1613
    %v1618 = vsel %vm1616, %v1613, %v1615
    %v1621 = vmul.f32 %v710, %v1617
    %v1622 = vmul.f32 %v714, %v1618
    %v1623 = vadd.f32 %v1592, %v1621
    %v1624 = vadd.f32 %v1593, %v1622
    %s1625 = sld [smem:[#allocation9 + $0x20]]
    %v1626 = vstv %s1625
    %v1627 = vmul.f32 %v1626, %v574
    %v1628 = vmul.f32 %v1626, %v570
    %v1629 = vmul.f32 %v1626, %v575
    %s1630 = sld [smem:[#allocation9 + $0x51]]
    %v1631 = vstv %s1630
    %v1632 = vmul.f32 %v1631, %v590
    %v1633 = vmul.f32 %v1631, %v586
    %v1634 = vmul.f32 %v1631, %v591
    %v1635 = vadd.f32 %v1627, %v1632
    %v1636 = vadd.f32 %v1628, %v1633
    %v1637 = vadd.f32 %v1629, %v1634
    %1641 = vrot.lane.b32.xlu0 %v1635, 60
    %v1642 = vpop.permute.xlu0 %1641
    %1643 = vrot.lane.b32.xlu0 %v1636, 60
    %v1644 = vpop.permute.xlu0 %1643
    %1645 = vrot.lane.b32.xlu0 %v1637, 60
    %v1646 = vpop.permute.xlu0 %1645
    %vm1647 = vcmask 490496
    %v1648 = vsel %vm1647, %v1642, %v1644
    %v1649 = vsel %vm1647, %v1644, %v1646
    %v1652 = vmul.f32 %v749, %v1648
    %v1653 = vmul.f32 %v753, %v1649
    %v1654 = vadd.f32 %v1623, %v1652
    %v1655 = vadd.f32 %v1624, %v1653
    %s1656 = sld [smem:[#allocation9 + $0x21]]
    %v1657 = vstv %s1656
    %v1658 = vmul.f32 %v1657, %v574
    %v1659 = vmul.f32 %v1657, %v570
    %v1660 = vmul.f32 %v1657, %v575
    %s1661 = sld [smem:[#allocation9 + $0x52]]
    %v1662 = vstv %s1661
    %v1663 = vmul.f32 %v1662, %v590
    %v1664 = vmul.f32 %v1662, %v586
    %v1665 = vmul.f32 %v1662, %v591
    %v1666 = vadd.f32 %v1658, %v1663
    %v1667 = vadd.f32 %v1659, %v1664
    %v1668 = vadd.f32 %v1660, %v1665
    %1672 = vrot.lane.b32.xlu0 %v1666, 59
    %v1673 = vpop.permute.xlu0 %1672
    %1674 = vrot.lane.b32.xlu0 %v1667, 59
    %v1675 = vpop.permute.xlu0 %1674
    %1676 = vrot.lane.b32.xlu0 %v1668, 59
    %v1677 = vpop.permute.xlu0 %1676
    %vm1678 = vcmask 482304
    %v1679 = vsel %vm1678, %v1673, %v1675
    %v1680 = vsel %vm1678, %v1675, %v1677
    %v1683 = vmul.f32 %v788, %v1679
    %v1684 = vmul.f32 %v792, %v1680
    %v1685 = vadd.f32 %v1654, %v1683
    %v1686 = vadd.f32 %v1655, %v1684
    %s1687 = sld [smem:[#allocation9 + $0x22]]
    %v1688 = vstv %s1687
    %v1689 = vmul.f32 %v1688, %v574
    %v1690 = vmul.f32 %v1688, %v570
    %v1691 = vmul.f32 %v1688, %v575
    %s1692 = sld [smem:[#allocation9 + $0x53]]
    %v1693 = vstv %s1692
    %v1694 = vmul.f32 %v1693, %v590
    %v1695 = vmul.f32 %v1693, %v586
    %v1696 = vmul.f32 %v1693, %v591
    %v1697 = vadd.f32 %v1689, %v1694
    %v1698 = vadd.f32 %v1690, %v1695
    %v1699 = vadd.f32 %v1691, %v1696
    %1703 = vrot.lane.b32.xlu0 %v1697, 58
    %v1704 = vpop.permute.xlu0 %1703
    %1705 = vrot.lane.b32.xlu0 %v1698, 58
    %v1706 = vpop.permute.xlu0 %1705
    %1707 = vrot.lane.b32.xlu0 %v1699, 58
    %v1708 = vpop.permute.xlu0 %1707
    %vm1709 = vcmask 474112
    %v1710 = vsel %vm1709, %v1704, %v1706
    %v1711 = vsel %vm1709, %v1706, %v1708
    %v1714 = vmul.f32 %v827, %v1710
    %v1715 = vmul.f32 %v831, %v1711
    %v1716 = vadd.f32 %v1685, %v1714
    %v1717 = vadd.f32 %v1686, %v1715
    %s1718 = sld [smem:[#allocation9 + $0x23]]
    %v1719 = vstv %s1718
    %v1720 = vmul.f32 %v1719, %v574
    %v1721 = vmul.f32 %v1719, %v570
    %v1722 = vmul.f32 %v1719, %v575
    %s1723 = sld [smem:[#allocation9 + $0x54]]
    %v1724 = vstv %s1723
    %v1725 = vmul.f32 %v1724, %v590
    %v1726 = vmul.f32 %v1724, %v586
    %v1727 = vmul.f32 %v1724, %v591
    %v1728 = vadd.f32 %v1720, %v1725
    %v1729 = vadd.f32 %v1721, %v1726
    %v1730 = vadd.f32 %v1722, %v1727
    %1734 = vrot.lane.b32.xlu0 %v1728, 48
    %v1735 = vpop.permute.xlu0 %1734
    %1736 = vrot.lane.b32.xlu0 %v1729, 48
    %v1737 = vpop.permute.xlu0 %1736
    %1738 = vrot.lane.b32.xlu0 %v1730, 48
    %v1739 = vpop.permute.xlu0 %1738
    %vm1740 = vcmask 392192
    %v1741 = vsel %vm1740, %v1735, %v1737
    %v1742 = vsel %vm1740, %v1737, %v1739
    %v1745 = vmul.f32 %v607, %v1741
    %v1746 = vmul.f32 %v611, %v1742
    %v1747 = vadd.f32 %v1499, %v1745
    %v1748 = vadd.f32 %v1500, %v1746
    %s1749 = sld [smem:[#allocation9 + $0x24]]
    %v1750 = vstv %s1749
    %v1751 = vmul.f32 %v1750, %v574
    %v1752 = vmul.f32 %v1750, %v570
    %v1753 = vmul.f32 %v1750, %v575
    %s1754 = sld [smem:[#allocation9 + $0x55]]
    %v1755 = vstv %s1754
    %v1756 = vmul.f32 %v1755, %v590
    %v1757 = vmul.f32 %v1755, %v586
    %v1758 = vmul.f32 %v1755, %v591
    %v1759 = vadd.f32 %v1751, %v1756
    %v1760 = vadd.f32 %v1752, %v1757
    %v1761 = vadd.f32 %v1753, %v1758
    %1765 = vrot.lane.b32.xlu0 %v1759, 47
    %v1766 = vpop.permute.xlu0 %1765
    %1767 = vrot.lane.b32.xlu0 %v1760, 47
    %v1768 = vpop.permute.xlu0 %1767
    %1769 = vrot.lane.b32.xlu0 %v1761, 47
    %v1770 = vpop.permute.xlu0 %1769
    %vm1771 = vcmask 384000
    %v1772 = vsel %vm1771, %v1766, %v1768
    %v1773 = vsel %vm1771, %v1768, %v1770
    %v1776 = vmul.f32 %v632, %v1772
    %v1777 = vmul.f32 %v636, %v1773
    %v1778 = vadd.f32 %v1747, %v1776
    %v1779 = vadd.f32 %v1748, %v1777
    %s1780 = sld [smem:[#allocation9 + $0x25]]
    %v1781 = vstv %s1780
    %v1782 = vmul.f32 %v1781, %v574
    %v1783 = vmul.f32 %v1781, %v570
    %v1784 = vmul.f32 %v1781, %v575
    %s1785 = sld [smem:[#allocation9 + $0x56]]
    %v1786 = vstv %s1785
    %v1787 = vmul.f32 %v1786, %v590
    %v1788 = vmul.f32 %v1786, %v586
    %v1789 = vmul.f32 %v1786, %v591
    %v1790 = vadd.f32 %v1782, %v1787
    %v1791 = vadd.f32 %v1783, %v1788
    %v1792 = vadd.f32 %v1784, %v1789
    %1796 = vrot.lane.b32.xlu0 %v1790, 46
    %v1797 = vpop.permute.xlu0 %1796
    %1798 = vrot.lane.b32.xlu0 %v1791, 46
    %v1799 = vpop.permute.xlu0 %1798
    %1800 = vrot.lane.b32.xlu0 %v1792, 46
    %v1801 = vpop.permute.xlu0 %1800
    %vm1802 = vcmask 375808
    %v1803 = vsel %vm1802, %v1797, %v1799
    %v1804 = vsel %vm1802, %v1799, %v1801
    %v1807 = vmul.f32 %v671, %v1803
    %v1808 = vmul.f32 %v675, %v1804
    %v1809 = vadd.f32 %v1778, %v1807
    %v1810 = vadd.f32 %v1779, %v1808
    %s1811 = sld [smem:[#allocation9 + $0x26]]
    %v1812 = vstv %s1811
    %v1813 = vmul.f32 %v1812, %v574
    %v1814 = vmul.f32 %v1812, %v570
    %v1815 = vmul.f32 %v1812, %v575
    %s1816 = sld [smem:[#allocation9 + $0x57]]
    %v1817 = vstv %s1816
    %v1818 = vmul.f32 %v1817, %v590
    %v1819 = vmul.f32 %v1817, %v586
    %v1820 = vmul.f32 %v1817, %v591
    %v1821 = vadd.f32 %v1813, %v1818
    %v1822 = vadd.f32 %v1814, %v1819
    %v1823 = vadd.f32 %v1815, %v1820
    %1827 = vrot.lane.b32.xlu0 %v1821, 45
    %v1828 = vpop.permute.xlu0 %1827
    %1829 = vrot.lane.b32.xlu0 %v1822, 45
    %v1830 = vpop.permute.xlu0 %1829
    %1831 = vrot.lane.b32.xlu0 %v1823, 45
    %v1832 = vpop.permute.xlu0 %1831
    %vm1833 = vcmask 367616
    %v1834 = vsel %vm1833, %v1828, %v1830
    %v1835 = vsel %vm1833, %v1830, %v1832
    %v1838 = vmul.f32 %v710, %v1834
    %v1839 = vmul.f32 %v714, %v1835
    %v1840 = vadd.f32 %v1809, %v1838
    %v1841 = vadd.f32 %v1810, %v1839
    %s1842 = sld [smem:[#allocation9 + $0x27]]
    %v1843 = vstv %s1842
    %v1844 = vmul.f32 %v1843, %v574
    %v1845 = vmul.f32 %v1843, %v570
    %v1846 = vmul.f32 %v1843, %v575
    %s1847 = sld [smem:[#allocation9 + $0x58]]
    %v1848 = vstv %s1847
    %v1849 = vmul.f32 %v1848, %v590
    %v1850 = vmul.f32 %v1848, %v586
    %v1851 = vmul.f32 %v1848, %v591
    %v1852 = vadd.f32 %v1844, %v1849
    %v1853 = vadd.f32 %v1845, %v1850
    %v1854 = vadd.f32 %v1846, %v1851
    %1858 = vrot.lane.b32.xlu0 %v1852, 44
    %v1859 = vpop.permute.xlu0 %1858
    %1860 = vrot.lane.b32.xlu0 %v1853, 44
    %v1861 = vpop.permute.xlu0 %1860
    %1862 = vrot.lane.b32.xlu0 %v1854, 44
    %v1863 = vpop.permute.xlu0 %1862
    %vm1864 = vcmask 359424
    %v1865 = vsel %vm1864, %v1859, %v1861
    %v1866 = vsel %vm1864, %v1861, %v1863
    %v1869 = vmul.f32 %v749, %v1865
    %v1870 = vmul.f32 %v753, %v1866
    %v1871 = vadd.f32 %v1840, %v1869
    %v1872 = vadd.f32 %v1841, %v1870
    %s1873 = sld [smem:[#allocation9 + $0x28]]
    %v1874 = vstv %s1873
    %v1875 = vmul.f32 %v1874, %v574
    %v1876 = vmul.f32 %v1874, %v570
    %v1877 = vmul.f32 %v1874, %v575
    %s1878 = sld [smem:[#allocation9 + $0x59]]
    %v1879 = vstv %s1878
    %v1880 = vmul.f32 %v1879, %v590
    %v1881 = vmul.f32 %v1879, %v586
    %v1882 = vmul.f32 %v1879, %v591
    %v1883 = vadd.f32 %v1875, %v1880
    %v1884 = vadd.f32 %v1876, %v1881
    %v1885 = vadd.f32 %v1877, %v1882
    %1889 = vrot.lane.b32.xlu0 %v1883, 43
    %v1890 = vpop.permute.xlu0 %1889
    %1891 = vrot.lane.b32.xlu0 %v1884, 43
    %v1892 = vpop.permute.xlu0 %1891
    %1893 = vrot.lane.b32.xlu0 %v1885, 43
    %v1894 = vpop.permute.xlu0 %1893
    %vm1895 = vcmask 351232
    %v1896 = vsel %vm1895, %v1890, %v1892
    %v1897 = vsel %vm1895, %v1892, %v1894
    %v1900 = vmul.f32 %v788, %v1896
    %v1901 = vmul.f32 %v792, %v1897
    %v1902 = vadd.f32 %v1871, %v1900
    %v1903 = vadd.f32 %v1872, %v1901
    %s1904 = sld [smem:[#allocation9 + $0x29]]
    %v1905 = vstv %s1904
    %v1906 = vmul.f32 %v1905, %v574
    %v1907 = vmul.f32 %v1905, %v570
    %v1908 = vmul.f32 %v1905, %v575
    %s1909 = sld [smem:[#allocation9 + $0x5a]]
    %v1910 = vstv %s1909
    %v1911 = vmul.f32 %v1910, %v590
    %v1912 = vmul.f32 %v1910, %v586
    %v1913 = vmul.f32 %v1910, %v591
    %v1914 = vadd.f32 %v1906, %v1911
    %v1915 = vadd.f32 %v1907, %v1912
    %v1916 = vadd.f32 %v1908, %v1913
    %1920 = vrot.lane.b32.xlu0 %v1914, 42
    %v1921 = vpop.permute.xlu0 %1920
    %1922 = vrot.lane.b32.xlu0 %v1915, 42
    %v1923 = vpop.permute.xlu0 %1922
    %1924 = vrot.lane.b32.xlu0 %v1916, 42
    %v1925 = vpop.permute.xlu0 %1924
    %vm1926 = vcmask 343040
    %v1927 = vsel %vm1926, %v1921, %v1923
    %v1928 = vsel %vm1926, %v1923, %v1925
    %v1931 = vmul.f32 %v827, %v1927
    %v1932 = vmul.f32 %v831, %v1928
    %v1933 = vadd.f32 %v1902, %v1931
    %v1934 = vadd.f32 %v1903, %v1932
    %s1935 = sld [smem:[#allocation9 + $0x2a]]
    %v1936 = vstv %s1935
    %v1937 = vmul.f32 %v1936, %v574
    %v1938 = vmul.f32 %v1936, %v570
    %v1939 = vmul.f32 %v1936, %v575
    %s1940 = sld [smem:[#allocation9 + $0x5b]]
    %v1941 = vstv %s1940
    %v1942 = vmul.f32 %v1941, %v590
    %v1943 = vmul.f32 %v1941, %v586
    %v1944 = vmul.f32 %v1941, %v591
    %v1945 = vadd.f32 %v1937, %v1942
    %v1946 = vadd.f32 %v1938, %v1943
    %v1947 = vadd.f32 %v1939, %v1944
    %1951 = vrot.lane.b32.xlu0 %v1945, 32
    %v1952 = vpop.permute.xlu0 %1951
    %1953 = vrot.lane.b32.xlu0 %v1946, 32
    %v1954 = vpop.permute.xlu0 %1953
    %1955 = vrot.lane.b32.xlu0 %v1947, 32
    %v1956 = vpop.permute.xlu0 %1955
    %vm1957 = vcmask 261120
    %v1958 = vsel %vm1957, %v1952, %v1954
    %v1959 = vsel %vm1957, %v1954, %v1956
    %v1962 = vmul.f32 %v607, %v1958
    %v1963 = vmul.f32 %v611, %v1959
    %v1964 = vadd.f32 %v1716, %v1962
    %v1965 = vadd.f32 %v1717, %v1963
    %s1966 = sld [smem:[#allocation9 + $0x2b]]
    %v1967 = vstv %s1966
    %v1968 = vmul.f32 %v1967, %v574
    %v1969 = vmul.f32 %v1967, %v570
    %v1970 = vmul.f32 %v1967, %v575
    %s1971 = sld [smem:[#allocation9 + $0x5c]]
    %v1972 = vstv %s1971
    %v1973 = vmul.f32 %v1972, %v590
    %v1974 = vmul.f32 %v1972, %v586
    %v1975 = vmul.f32 %v1972, %v591
    %v1976 = vadd.f32 %v1968, %v1973
    %v1977 = vadd.f32 %v1969, %v1974
    %v1978 = vadd.f32 %v1970, %v1975
    %1982 = vrot.lane.b32.xlu0 %v1976, 31
    %v1983 = vpop.permute.xlu0 %1982
    %1984 = vrot.lane.b32.xlu0 %v1977, 31
    %v1985 = vpop.permute.xlu0 %1984
    %1986 = vrot.lane.b32.xlu0 %v1978, 31
    %v1987 = vpop.permute.xlu0 %1986
    %vm1988 = vcmask 252928
    %v1989 = vsel %vm1988, %v1983, %v1985
    %v1990 = vsel %vm1988, %v1985, %v1987
    %v1993 = vmul.f32 %v632, %v1989
    %v1994 = vmul.f32 %v636, %v1990
    %v1995 = vadd.f32 %v1964, %v1993
    %v1996 = vadd.f32 %v1965, %v1994
    %s1997 = sld [smem:[#allocation9 + $0x2c]]
    %v1998 = vstv %s1997
    %v1999 = vmul.f32 %v1998, %v574
    %v2000 = vmul.f32 %v1998, %v570
    %v2001 = vmul.f32 %v1998, %v575
    %s2002 = sld [smem:[#allocation9 + $0x5d]]
    %v2003 = vstv %s2002
    %v2004 = vmul.f32 %v2003, %v590
    %v2005 = vmul.f32 %v2003, %v586
    %v2006 = vmul.f32 %v2003, %v591
    %v2007 = vadd.f32 %v1999, %v2004
    %v2008 = vadd.f32 %v2000, %v2005
    %v2009 = vadd.f32 %v2001, %v2006
    %2013 = vrot.lane.b32.xlu0 %v2007, 30
    %v2014 = vpop.permute.xlu0 %2013
    %2015 = vrot.lane.b32.xlu0 %v2008, 30
    %v2016 = vpop.permute.xlu0 %2015
    %2017 = vrot.lane.b32.xlu0 %v2009, 30
    %v2018 = vpop.permute.xlu0 %2017
    %vm2019 = vcmask 244736
    %v2020 = vsel %vm2019, %v2014, %v2016
    %v2021 = vsel %vm2019, %v2016, %v2018
    %v2024 = vmul.f32 %v671, %v2020
    %v2025 = vmul.f32 %v675, %v2021
    %v2026 = vadd.f32 %v1995, %v2024
    %v2027 = vadd.f32 %v1996, %v2025
    %s2028 = sld [smem:[#allocation9 + $0x2d]]
    %v2029 = vstv %s2028
    %v2030 = vmul.f32 %v2029, %v574
    %v2031 = vmul.f32 %v2029, %v570
    %v2032 = vmul.f32 %v2029, %v575
    %s2033 = sld [smem:[#allocation9 + $0x5e]]
    %v2034 = vstv %s2033
    %v2035 = vmul.f32 %v2034, %v590
    %v2036 = vmul.f32 %v2034, %v586
    %v2037 = vmul.f32 %v2034, %v591
    %v2038 = vadd.f32 %v2030, %v2035
    %v2039 = vadd.f32 %v2031, %v2036
    %v2040 = vadd.f32 %v2032, %v2037
    %2044 = vrot.lane.b32.xlu0 %v2038, 29
    %v2045 = vpop.permute.xlu0 %2044
    %2046 = vrot.lane.b32.xlu0 %v2039, 29
    %v2047 = vpop.permute.xlu0 %2046
    %2048 = vrot.lane.b32.xlu0 %v2040, 29
    %v2049 = vpop.permute.xlu0 %2048
    %vm2050 = vcmask 236544
    %v2051 = vsel %vm2050, %v2045, %v2047
    %v2052 = vsel %vm2050, %v2047, %v2049
    %v2055 = vmul.f32 %v710, %v2051
    %v2056 = vmul.f32 %v714, %v2052
    %v2057 = vadd.f32 %v2026, %v2055
    %v2058 = vadd.f32 %v2027, %v2056
    %s2059 = sld [smem:[#allocation9 + $0x2e]]
    %v2060 = vstv %s2059
    %v2061 = vmul.f32 %v2060, %v574
    %v2062 = vmul.f32 %v2060, %v570
    %v2063 = vmul.f32 %v2060, %v575
    %s2064 = sld [smem:[#allocation9 + $0x5f]]
    %v2065 = vstv %s2064
    %v2066 = vmul.f32 %v2065, %v590
    %v2067 = vmul.f32 %v2065, %v586
    %v2068 = vmul.f32 %v2065, %v591
    %v2069 = vadd.f32 %v2061, %v2066
    %v2070 = vadd.f32 %v2062, %v2067
    %v2071 = vadd.f32 %v2063, %v2068
    %2075 = vrot.lane.b32.xlu0 %v2069, 28
    %v2076 = vpop.permute.xlu0 %2075
    %2077 = vrot.lane.b32.xlu0 %v2070, 28
    %v2078 = vpop.permute.xlu0 %2077
    %2079 = vrot.lane.b32.xlu0 %v2071, 28
    %v2080 = vpop.permute.xlu0 %2079
    %vm2081 = vcmask 228352
    %v2082 = vsel %vm2081, %v2076, %v2078
    %v2083 = vsel %vm2081, %v2078, %v2080
    %v2086 = vmul.f32 %v749, %v2082
    %v2087 = vmul.f32 %v753, %v2083
    %v2088 = vadd.f32 %v2057, %v2086
    %v2089 = vadd.f32 %v2058, %v2087
    %s2090 = sld [smem:[#allocation9 + $0x2f]]
    %v2091 = vstv %s2090
    %v2092 = vmul.f32 %v2091, %v574
    %v2093 = vmul.f32 %v2091, %v570
    %v2094 = vmul.f32 %v2091, %v575
    %s2095 = sld [smem:[#allocation9 + $0x60]]
    %v2096 = vstv %s2095
    %v2097 = vmul.f32 %v2096, %v590
    %v2098 = vmul.f32 %v2096, %v586
    %v2099 = vmul.f32 %v2096, %v591
    %v2100 = vadd.f32 %v2092, %v2097
    %v2101 = vadd.f32 %v2093, %v2098
    %v2102 = vadd.f32 %v2094, %v2099
    %2106 = vrot.lane.b32.xlu0 %v2100, 27
    %v2107 = vpop.permute.xlu0 %2106
    %2108 = vrot.lane.b32.xlu0 %v2101, 27
    %v2109 = vpop.permute.xlu0 %2108
    %2110 = vrot.lane.b32.xlu0 %v2102, 27
    %v2111 = vpop.permute.xlu0 %2110
    %vm2112 = vcmask 220160
    %v2113 = vsel %vm2112, %v2107, %v2109
    %v2114 = vsel %vm2112, %v2109, %v2111
    %v2117 = vmul.f32 %v788, %v2113
    %v2118 = vmul.f32 %v792, %v2114
    %v2119 = vadd.f32 %v2088, %v2117
    %v2120 = vadd.f32 %v2089, %v2118
    %s2121 = sld [smem:[#allocation9 + $0x30]]
    %v2122 = vstv %s2121
    %v2123 = vmul.f32 %v2122, %v574
    %v2124 = vmul.f32 %v2122, %v570
    %v2125 = vmul.f32 %v2122, %v575
    %s2126 = sld [smem:[#allocation9 + $0x61]]
    %v2127 = vstv %s2126
    %v2128 = vmul.f32 %v2127, %v590
    %v2129 = vmul.f32 %v2127, %v586
    %v2130 = vmul.f32 %v2127, %v591
    %v2131 = vadd.f32 %v2123, %v2128
    %v2132 = vadd.f32 %v2124, %v2129
    %v2133 = vadd.f32 %v2125, %v2130
    %2137 = vrot.lane.b32.xlu0 %v2131, 26
    %v2138 = vpop.permute.xlu0 %2137
    %2139 = vrot.lane.b32.xlu0 %v2132, 26
    %v2140 = vpop.permute.xlu0 %2139
    %2141 = vrot.lane.b32.xlu0 %v2133, 26
    %v2142 = vpop.permute.xlu0 %2141
    %vm2143 = vcmask 211968
    %v2144 = vsel %vm2143, %v2138, %v2140
    %v2145 = vsel %vm2143, %v2140, %v2142
    %v2148 = vmul.f32 %v827, %v2144
    %v2149 = vmul.f32 %v831, %v2145
    %v2150 = vadd.f32 %v2119, %v2148
    %v2151 = vadd.f32 %v2120, %v2149
    %v2152 = vadd.f32 %v2150, %v1933
    %v2153 = vadd.f32 %v2151, %v1934
    %s2154 = sld [smem:[#allocation9 + $0x62]]
    %v2155 = vstv %s2154
    %v2156 = vadd.f32 %v2152, %v2155
    %v2157 = vadd.f32 %v2153, %v2155
    %v2158 = vxor.u32 %v2156, 2147483648
    %v2159 = vxor.u32 %v2157, 2147483648
    %v2160 = vmul.f32 %v2158, 1.442695
    %v2161 = vpow.pop %v2160
    %v2162 = vmul.f32 %v2159, 1.442695
    %v2163 = vpow.pop %v2162
    %v2164 = vadd.f32 %v2161, 1.0
    %v2165 = vadd.f32 %v2163, 1.0
    %v2166 = vrcp.pop %v2164
    %v2167 = vmul.f32 1.0, %v2166
    %v2168 = vrcp.pop %v2165
    %v2169 = vmul.f32 1.0, %v2168
    %v2172 = vcombine.low %v2167, %v2169
    %v2174 = vunpack.c.l.s4 1966171168
    %v2175 = vunpack.c.0.s8 %v2174
    %v2176 = vlaneseq
    %v2177 = vshrl.u32 %v2176, 7
    %v2178 = vsub.s32 %v2175, %v2177
    %v2179 = vrot.slane %v2172, %v2178
    %v2180 = vcombine.high %v2179, %v2179
    %v2182 = vunpack.c.l.s4 1966171168
    %v2183 = vunpack.c.0.s8 %v2182
    %v2184 = vlaneseq
    %v2185 = vshrl.u32 %v2184, 7
    %v2186 = vsub.s32 %v2183, %v2185
    %v2187 = vrot.slane %v2179, %v2186
    %v2189 = vunpack.c.l.s4 1966171168
    %v2190 = vunpack.c.0.s8 %v2189
    %v2191 = vlaneseq
    %v2192 = vshrl.u32 %v2191, 7
    %v2193 = vsub.s32 %v2190, %v2192
    %v2194 = vrot.slane %v2180, %v2193
    %v2195 = vlaneseq
    %v2196 = vshrl.u32 %v2195, 7
    %v2197 = vsub.s32 0, %v2196
    %v2198 = vrot.slane %v2187, %v2197
    %v2199 = vlaneseq
    %v2200 = vshrl.u32 %v2199, 7
    %v2201 = vsub.s32 1, %v2200
    %v2202 = vrot.slane %v2187, %v2201
    %v2203 = vlaneseq
    %v2204 = vshrl.u32 %v2203, 7
    %v2205 = vsub.s32 0, %v2204
    %v2206 = vrot.slane %v2194, %v2205
    %v2207 = vlaneseq
    %v2208 = vshrl.u32 %v2207, 7
    %v2209 = vsub.s32 1, %v2208
    %v2210 = vrot.slane %v2194, %v2209
    %v2215 = vmul.f32 %v418, %v2198
    %v2216 = vmul.f32 %v419, %v2202
    %v2217 = vmul.f32 %v420, %v2198
    %v2218 = vmul.f32 %v421, %v2202
    %v2219 = vmul.f32 %v422, %v2198
    %v2220 = vmul.f32 %v423, %v2202
    %v2221 = vmul.f32 %v424, %v2198
    %v2222 = vmul.f32 %v425, %v2202
    %v2223 = vmul.f32 %v426, %v2198
    %v2224 = vmul.f32 %v427, %v2202
    %v2225 = vmul.f32 %v428, %v2198
    %v2226 = vmul.f32 %v429, %v2202
    %v2227 = vmul.f32 %v430, %v2198
    %v2228 = vmul.f32 %v431, %v2202
    %v2229 = vmul.f32 %v432, %v2198
    %v2230 = vmul.f32 %v433, %v2202
    %v2231 = vmul.f32 %v434, %v2206
    %v2232 = vmul.f32 %v435, %v2210
    %v2233 = vmul.f32 %v436, %v2206
    %v2234 = vmul.f32 %v437, %v2210
    %v2235 = vmul.f32 %v438, %v2206
    %v2236 = vmul.f32 %v439, %v2210
    %v2237 = vmul.f32 %v440, %v2206
    %v2238 = vmul.f32 %v441, %v2210
    %v2239 = vmul.f32 %v442, %v2206
    %v2240 = vmul.f32 %v443, %v2210
    %v2241 = vmul.f32 %v444, %v2206
    %v2242 = vmul.f32 %v445, %v2210
    %v2243 = vmul.f32 %v446, %v2206
    %v2244 = vmul.f32 %v447, %v2210
    %v2245 = vmul.f32 %v448, %v2206
    %v2246 = vmul.f32 %v449, %v2210
    %2247 = vst [vmem:[#allocation10] sm:$0xff] %v2215
    %2248 = vst [vmem:[#allocation10 + $0x8] sm:$0xff] %v2216
    %2249 = vst [vmem:[#allocation10 + $0x10] sm:$0xff] %v2217
    %2250 = vst [vmem:[#allocation10 + $0x18] sm:$0xff] %v2218
    %2251 = vst [vmem:[#allocation10 + $0x20] sm:$0xff] %v2219
    %2252 = vst [vmem:[#allocation10 + $0x28] sm:$0xff] %v2220
    %2253 = vst [vmem:[#allocation10 + $0x30] sm:$0xff] %v2221
    %2254 = vst [vmem:[#allocation10 + $0x38] sm:$0xff] %v2222
    %2255 = vst [vmem:[#allocation10 + $0x40] sm:$0xff] %v2223
    %2256 = vst [vmem:[#allocation10 + $0x48] sm:$0xff] %v2224
    %2257 = vst [vmem:[#allocation10 + $0x50] sm:$0xff] %v2225
    %2258 = vst [vmem:[#allocation10 + $0x58] sm:$0xff] %v2226
    %2259 = vst [vmem:[#allocation10 + $0x60] sm:$0xff] %v2227
    %2260 = vst [vmem:[#allocation10 + $0x68] sm:$0xff] %v2228
    %2261 = vst [vmem:[#allocation10 + $0x70] sm:$0xff] %v2229
    %2262 = vst [vmem:[#allocation10 + $0x78] sm:$0xff] %v2230
    %2263 = vst [vmem:[#allocation10 + $0x80] sm:$0xff] %v2231
    %2264 = vst [vmem:[#allocation10 + $0x88] sm:$0xff] %v2232
    %2265 = vst [vmem:[#allocation10 + $0x90] sm:$0xff] %v2233
    %2266 = vst [vmem:[#allocation10 + $0x98] sm:$0xff] %v2234
    %2267 = vst [vmem:[#allocation10 + $0xa0] sm:$0xff] %v2235
    %2268 = vst [vmem:[#allocation10 + $0xa8] sm:$0xff] %v2236
    %2269 = vst [vmem:[#allocation10 + $0xb0] sm:$0xff] %v2237
    %2270 = vst [vmem:[#allocation10 + $0xb8] sm:$0xff] %v2238
    %2271 = vst [vmem:[#allocation10 + $0xc0] sm:$0xff] %v2239
    %2272 = vst [vmem:[#allocation10 + $0xc8] sm:$0xff] %v2240
    %2273 = vst [vmem:[#allocation10 + $0xd0] sm:$0xff] %v2241
    %2274 = vst [vmem:[#allocation10 + $0xd8] sm:$0xff] %v2242
    %2275 = vst [vmem:[#allocation10 + $0xe0] sm:$0xff] %v2243
    %2276 = vst [vmem:[#allocation10 + $0xe8] sm:$0xff] %v2244
    %2277 = vst [vmem:[#allocation10 + $0xf0] sm:$0xff] %v2245
    %2278 = vst [vmem:[#allocation10 + $0xf8] sm:$0xff] %v2246
    // Predicated region
    $region46: #{tpu_custom_call.1} parent=1 // pred_check
      _
    $region47: #{tpu_custom_call.1} parent=1 // pred_check_branch
      %2280 = sbr.rel (0) target = $region49
    $region48: #{tpu_custom_call.1} parent=1 // pred_region
      %s2282 = ssub.s32 4096, 4096
      %2283 = vsyncadd [#allocation4], %s2282
      %s2284 = sshll.u32 [#allocation10], 4
      %s2285 = int_to_ptr.vmem [resolvable:$true] %s2284
      %2290 = dma.vmem_to_hbm [thread:$0]  %s2285, 4096, %s7, [#allocation4], 256, 256, 16
    $region49: #{tpu_custom_call.1} parent=1 // pred_fallthru
      _
    // Predicated region
    $region50: #{tpu_custom_call.1} parent=1 // pred_check
      _
    $region51: #{tpu_custom_call.1} parent=1 // pred_check_branch
      %2292 = sbr.rel (0) target = $region53
    $region52: #{tpu_custom_call.1} parent=1 // pred_region
      %2293 = dma.done [#allocation4], 4096
    $region53: #{tpu_custom_call.1} parent=1 // pred_fallthru
      _
    %2294 = vsyncpa [#allocation3], 1
    %2295 = vsyncpa [#allocation7], 1
    %2296 = vsyncpa [#allocation4], 1
    %2297 = vsyncpa [#allocation5], 1

</llo_original>
